<compile_context>
chip_gen: v7x
topology: tpu7x:2x2x1
jax: 0.10.0
libtpu: 0.0.40
codegen_flags: <defaults>
</compile_context>

<pallas_src>
import functools

import jax
import jax.numpy as jnp
from jax.experimental import pallas as pl
from jax.experimental.pallas import tpu as pltpu


_VMEM_LIMIT = 48 * 1024 * 1024  # headroom for v7x's 64 MiB physical VMEM


def _round_up(x, m):
    return ((x + m - 1) // m) * m


# ----------------------------------------------------------------------------
# Pallas kernels
# ----------------------------------------------------------------------------

def _matmul_bias_kernel(a_ref, b_ref, bias_ref, o_ref, *, activation):
    # a: (TM, K) bf16, b: (K, Npad) bf16, bias: (1, Npad) f32 -> o: (TM, Npad) f32
    acc = jnp.dot(a_ref[...], b_ref[...], preferred_element_type=jnp.float32)
    acc = acc + bias_ref[...]
    if activation == "tanh":
        acc = jnp.tanh(acc)
    o_ref[...] = acc


def _inorm_kernel(x_ref, o_ref, *, relu, eps, inv_l):
    # x: (ROW_TILE, L) f32; rows are (n, c) instances, L = H*W.
    x = x_ref[...]
    s = jnp.sum(x, axis=1, keepdims=True)
    ss = jnp.sum(x * x, axis=1, keepdims=True)
    mean = s * inv_l
    var = jnp.maximum(ss * inv_l - mean * mean, 0.0)
    y = (x - mean) * jax.lax.rsqrt(var + eps)
    if relu:
        y = jnp.maximum(y, 0.0)
    o_ref[...] = y


def _inorm_residual_kernel(x_ref, res_ref, o_ref, *, eps, inv_l):
    # out = res + InstanceNorm(x)
    x = x_ref[...]
    s = jnp.sum(x, axis=1, keepdims=True)
    ss = jnp.sum(x * x, axis=1, keepdims=True)
    mean = s * inv_l
    var = jnp.maximum(ss * inv_l - mean * mean, 0.0)
    y = (x - mean) * jax.lax.rsqrt(var + eps)
    o_ref[...] = res_ref[...] + y


# ----------------------------------------------------------------------------
# Pallas wrappers
# ----------------------------------------------------------------------------

def matmul_bias_act(patches, wm, bias, activation=None):
    """act(patches @ wm + bias).  patches: (M, K), wm: (K, Ncols), bias: (Ncols,)."""
    M, K = patches.shape
    Ncols = wm.shape[1]
    Npad = _round_up(Ncols, 128)                    # lane-dense output
    TM = min(512, _round_up(M, 16))                 # row tile (mult of 16 for bf16)
    Mp = _round_up(M, TM)

    a = jnp.pad(patches.astype(jnp.bfloat16), ((0, Mp - M), (0, 0)))
    b = jnp.pad(wm.astype(jnp.bfloat16), ((0, 0), (0, Npad - Ncols)))
    bb = jnp.pad(bias.astype(jnp.float32).reshape(1, Ncols),
                 ((0, 0), (0, Npad - Ncols)))

    kern = functools.partial(_matmul_bias_kernel, activation=activation)
    out = pl.pallas_call(
        kern,
        out_shape=jax.ShapeDtypeStruct((Mp, Npad), jnp.float32),
        grid=(Mp // TM,),
        in_specs=[
            pl.BlockSpec((TM, K), lambda i: (i, 0)),
            pl.BlockSpec((K, Npad), lambda i: (0, 0)),   # resident weights
            pl.BlockSpec((1, Npad), lambda i: (0, 0)),   # resident bias
        ],
        out_specs=pl.BlockSpec((TM, Npad), lambda i: (i, 0)),
        compiler_params=pltpu.CompilerParams(
            dimension_semantics=("parallel",),
            vmem_limit_bytes=_VMEM_LIMIT),
        cost_estimate=pl.CostEstimate(
            flops=2 * Mp * K * Npad,
            transcendentals=Mp * Npad if activation == "tanh" else 0,
            bytes_accessed=Mp * K * 2 + K * Npad * 2 + Mp * Npad * 4),
    )(a, b, bb)
    return out[:M, :Ncols]


def _extract_patches(x, kh, kw, stride):
    """x: (N, C, H, W) already padded -> (N*Ho*Wo, C*kh*kw), Ho, Wo."""
    N, C, H, W = x.shape
    Ho = (H - kh) // stride + 1
    Wo = (W - kw) // stride + 1
    cols = []
    for i in range(kh):
        for j in range(kw):
            cols.append(x[:, :, i:i + stride * Ho:stride, j:j + stride * Wo:stride])
    patches = jnp.stack(cols, axis=0)                       # (kh*kw, N, C, Ho, Wo)
    patches = patches.transpose(1, 3, 4, 2, 0).reshape(N * Ho * Wo, C * kh * kw)
    return patches, Ho, Wo


def conv2d_pallas(x, w, b, stride=1, activation=None):
    """Conv2d on pre-padded NCHW input; weight (Cout, Cin, kh, kw)."""
    N, C, H, W = x.shape
    Cout, Cin, kh, kw = w.shape
    patches, Ho, Wo = _extract_patches(x.astype(jnp.bfloat16), kh, kw, stride)
    wm = w.reshape(Cout, Cin * kh * kw).T                   # (K, Cout)
    out = matmul_bias_act(patches, wm, b, activation=activation)
    return out.reshape(N, Ho, Wo, Cout).transpose(0, 3, 1, 2)


def _make_subpixel_weight(w):
    """PyTorch ConvTranspose2d weight (Cin, Cout, 3, 3), k=3 s=2 p=1 op=1 ->
    (Cin*4, 4*Cout) matrix mapping 2x2 input patches to the 4 output phases."""
    Cin, Cout = w.shape[0], w.shape[1]
    Wsp = jnp.zeros((Cin, 2, 2, 2, 2, Cout), jnp.float32)   # (ci, di, dj, a, b, co)
    for a in range(2):
        for b_ in range(2):
            for di in range(2):
                for dj in range(2):
                    u = 1 - 2 * di + a
                    v = 1 - 2 * dj + b_
                    if 0 <= u <= 2 and 0 <= v <= 2:
                        Wsp = Wsp.at[:, di, dj, a, b_, :].set(w[:, :, u, v])
    return Wsp.reshape(Cin * 4, 4 * Cout)


def conv_transpose2d_pallas(x, w, b):
    """ConvTranspose2d(k=3, s=2, p=1, op=1) via sub-pixel decomposition
    (no zero-dilated rows -> ~2.25x fewer MXU FLOPs, 4x less im2col DMA)."""
    N, C, H, W = x.shape
    Cout = w.shape[1]
    # 2x2 patches of x padded with one zero row/col at bottom-right.
    xp = jnp.pad(x.astype(jnp.bfloat16), ((0, 0), (0, 0), (0, 1), (0, 1)))
    patches, _, _ = _extract_patches(xp, 2, 2, 1)           # (N*H*W, C*4)
    W_sp = _make_subpixel_weight(w)                         # (C*4, 4*Cout)
    b_sp = jnp.tile(b, 4)                                   # (4*Cout,)
    out = matmul_bias_act(patches, W_sp, b_sp)              # (N*H*W, 4*Cout)
    out = out.reshape(N, H, W, 2, 2, Cout)
    out = out.transpose(0, 5, 1, 3, 2, 4).reshape(N, Cout, 2 * H, 2 * W)
    return out


def instance_norm_pallas(x, relu=False, residual=None, eps=1e-5):
    """InstanceNorm2d (affine=False) + optional ReLU or residual add."""
    N, C, H, W = x.shape
    L = H * W
    R = N * C
    # Row tile: multiple of 8, sized so a block stays ~<=2 MiB even at big H*W.
    max_rows_by_vmem = max(8, ((2 * 1024 * 1024) // (4 * L)) // 8 * 8)
    ROW_TILE = min(128, max_rows_by_vmem, _round_up(R, 8))
    Rp = _round_up(R, ROW_TILE)

    xr = jnp.pad(x.reshape(R, L).astype(jnp.float32), ((0, Rp - R), (0, 0)))
    row_spec = pl.BlockSpec((ROW_TILE, L), lambda i: (i, 0))
    cp = pltpu.CompilerParams(dimension_semantics=("parallel",),
                              vmem_limit_bytes=_VMEM_LIMIT)

    if residual is None:
        kern = functools.partial(_inorm_kernel, relu=relu, eps=eps, inv_l=1.0 / L)
        out = pl.pallas_call(
            kern,
            out_shape=jax.ShapeDtypeStruct((Rp, L), jnp.float32),
            grid=(Rp // ROW_TILE,),
            in_specs=[row_spec],
            out_specs=row_spec,
            compiler_params=cp,
        )(xr)
    else:
        rr = jnp.pad(residual.reshape(R, L).astype(jnp.float32),
                     ((0, Rp - R), (0, 0)))
        kern = functools.partial(_inorm_residual_kernel, eps=eps, inv_l=1.0 / L)
        out = pl.pallas_call(
            kern,
            out_shape=jax.ShapeDtypeStruct((Rp, L), jnp.float32),
            grid=(Rp // ROW_TILE,),
            in_specs=[row_spec, row_spec],
            out_specs=row_spec,
            compiler_params=cp,
        )(xr, rr)
    return out[:R].reshape(N, C, H, W)


# ----------------------------------------------------------------------------
# ResNetGenerator forward
# ----------------------------------------------------------------------------

def make_params(key, input_nc=3, output_nc=3, ngf=8, n_blocks=2):
    """Deterministic synthetic parameters matching the PyTorch module shapes."""
    params = {}

    def nxt():
        nonlocal key
        key, sub = jax.random.split(key)
        return sub

    def conv_p(cin, cout, k):
        w = jax.random.normal(nxt(), (cout, cin, k, k), jnp.float32) * 0.05
        b = jax.random.normal(nxt(), (cout,), jnp.float32) * 0.01
        return w, b

    def convT_p(cin, cout, k):
        w = jax.random.normal(nxt(), (cin, cout, k, k), jnp.float32) * 0.05
        b = jax.random.normal(nxt(), (cout,), jnp.float32) * 0.01
        return w, b

    params['conv1_w'], params['conv1_b'] = conv_p(input_nc, ngf, 7)
    n_down = 2
    for i in range(n_down):
        mult = 2 ** i
        params[f'down{i}_w'], params[f'down{i}_b'] = conv_p(ngf * mult, ngf * mult * 2, 3)
    mult = 2 ** n_down
    for i in range(n_blocks):
        params[f'blk{i}_w1'], params[f'blk{i}_b1'] = conv_p(ngf * mult, ngf * mult, 3)
        params[f'blk{i}_w2'], params[f'blk{i}_b2'] = conv_p(ngf * mult, ngf * mult, 3)
    for i in range(n_down):
        m = 2 ** (n_down - i)
        params[f'up{i}_w'], params[f'up{i}_b'] = convT_p(ngf * m, ngf * m // 2, 3)
    params['out_w'], params['out_b'] = conv_p(ngf, output_nc, 7)
    return params


def resnet_generator_forward(x, params, n_blocks=2):
    # stem: ReflectionPad(3) -> Conv7x7 -> InstanceNorm -> ReLU
    h = jnp.pad(x, ((0, 0), (0, 0), (3, 3), (3, 3)), mode='reflect')
    h = conv2d_pallas(h, params['conv1_w'], params['conv1_b'])
    h = instance_norm_pallas(h, relu=True)

    # downsampling: Conv3x3 s2 p1 -> InstanceNorm -> ReLU  (x2)
    for i in range(2):
        h = jnp.pad(h, ((0, 0), (0, 0), (1, 1), (1, 1)))
        h = conv2d_pallas(h, params[f'down{i}_w'], params[f'down{i}_b'], stride=2)
        h = instance_norm_pallas(h, relu=True)

    # ResNet blocks: x + IN(Conv(ReLU(IN(Conv(ReflPad(x))))))
    for i in range(n_blocks):
        res = h
        t = jnp.pad(h, ((0, 0), (0, 0), (1, 1), (1, 1)), mode='reflect')
        t = conv2d_pallas(t, params[f'blk{i}_w1'], params[f'blk{i}_b1'])
        t = instance_norm_pallas(t, relu=True)
        t = jnp.pad(t, ((0, 0), (0, 0), (1, 1), (1, 1)), mode='reflect')
        t = conv2d_pallas(t, params[f'blk{i}_w2'], params[f'blk{i}_b2'])
        h = instance_norm_pallas(t, relu=False, residual=res)

    # upsampling: ConvTranspose3x3 s2 p1 op1 -> InstanceNorm -> ReLU  (x2)
    for i in range(2):
        h = conv_transpose2d_pallas(h, params[f'up{i}_w'], params[f'up{i}_b'])
        h = instance_norm_pallas(h, relu=True)

    # head: ReflectionPad(3) -> Conv7x7 -> Tanh  (tanh fused into matmul epilogue)
    h = jnp.pad(h, ((0, 0), (0, 0), (3, 3), (3, 3)), mode='reflect')
    h = conv2d_pallas(h, params['out_w'], params['out_b'], activation="tanh")
    return h


if __name__ == "__main__":
    # Small shapes consistent with the module: batch=2, 3 input channels,
    # 16x16 spatial, ngf=8, n_blocks=2.
    key = jax.random.PRNGKey(0)
    k_x, k_p = jax.random.split(key)
    x = jax.random.normal(k_x, (2, 3, 16, 16), jnp.float32)
    params = make_params(k_p, input_nc=3, output_nc=3, ngf=8, n_blocks=2)

    fwd = jax.jit(functools.partial(resnet_generator_forward, n_blocks=2))
    out = fwd(x, params)
    out = jax.block_until_ready(out)

    assert out.shape == (2, 3, 16, 16), out.shape
    assert bool(jnp.all(jnp.isfinite(out)))
    print("KERNEL_OK")
</pallas_src>

<mosaic_0001>
module attributes {stable_mosaic.version = 11 : i64} {
  func.func @_matmul_bias_kernel(%arg0: i32, %arg1: memref<512x147xbf16, #tpu.memory_space<vmem>>, %arg2: memref<147x128xbf16, #tpu.memory_space<vmem>>, %arg3: memref<1x128xf32, #tpu.memory_space<vmem>>, %arg4: memref<512x128xf32, #tpu.memory_space<vmem>>) attributes {dimension_semantics = [#tpu.dimension_semantics<parallel>], iteration_bounds = array<i64: 1>, scalar_prefetch = 0 : i64, scratch_operands = 0 : i64, tpu.core_type = #tpu.core_type<tc>, window_params = [{transform_indices = @transform_0, window_bounds = array<i64: 512, 147>}, {pipeline_mode = #tpu.pipeline_mode<synchronous>, transform_indices = @transform_1, window_bounds = array<i64: 147, 128>}, {pipeline_mode = #tpu.pipeline_mode<synchronous>, transform_indices = @transform_2, window_bounds = array<i64: 1, 128>}, {transform_indices = @transform_3, window_bounds = array<i64: 512, 128>}]} {
    %c0 = arith.constant 0 : index
    %c0_0 = arith.constant 0 : index
    %0 = vector.load %arg1[%c0, %c0_0] : memref<512x147xbf16, #tpu.memory_space<vmem>>, vector<512x147xbf16>
    %c0_1 = arith.constant 0 : index
    %c0_2 = arith.constant 0 : index
    %1 = vector.load %arg2[%c0_1, %c0_2] : memref<147x128xbf16, #tpu.memory_space<vmem>>, vector<147x128xbf16>
    %cst = arith.constant dense<0.000000e+00> : vector<512x128xf32>
    %2 = tpu.matmul %0, %1, %cst {dimension_numbers = #tpu.dot_dimension_numbers<[1], [0], [0], [1], [0, 0, 1, 1], [], []>} : vector<512x147xbf16>, vector<147x128xbf16>, vector<512x128xf32> -> vector<512x128xf32>
    %c0_3 = arith.constant 0 : index
    %c0_4 = arith.constant 0 : index
    %3 = vector.load %arg3[%c0_3, %c0_4] : memref<1x128xf32, #tpu.memory_space<vmem>>, vector<1x128xf32>
    %4 = vector.broadcast %3 : vector<1x128xf32> to vector<512x128xf32>
    %5 = arith.addf %2, %4 : vector<512x128xf32>
    %c0_5 = arith.constant 0 : index
    %c0_6 = arith.constant 0 : index
    %6 = vector.load %arg4[%c0_5, %c0_6] : memref<512x128xf32, #tpu.memory_space<vmem>>, vector<512x128xf32>
    tpu.vector_store %arg4[%c0_5, %c0_6], %5 {strides = array<i32>} : memref<512x128xf32, #tpu.memory_space<vmem>>, vector<512x128xf32>,
    return
  }
  func.func @transform_0(%arg0: i32) -> (i32, i32) {
    %c0_i32 = arith.constant 0 : i32
    %c0_i32_0 = arith.constant 0 : i32
    return %arg0, %c0_i32 : i32, i32
  }
  func.func @transform_1(%arg0: i32) -> (i32, i32) {
    %c0_i32 = arith.constant 0 : i32
    %c0_i32_0 = arith.constant 0 : i32
    %c0_i32_1 = arith.constant 0 : i32
    return %c0_i32, %c0_i32_0 : i32, i32
  }
  func.func @transform_2(%arg0: i32) -> (i32, i32) {
    %c0_i32 = arith.constant 0 : i32
    %c0_i32_0 = arith.constant 0 : i32
    %c0_i32_1 = arith.constant 0 : i32
    return %c0_i32, %c0_i32_0 : i32, i32
  }
  func.func @transform_3(%arg0: i32) -> (i32, i32) {
    %c0_i32 = arith.constant 0 : i32
    %c0_i32_0 = arith.constant 0 : i32
    return %arg0, %c0_i32 : i32, i32
  }
}

module attributes {stable_mosaic.version = 11 : i64} {
  func.func @_inorm_kernel(%arg0: i32, %arg1: memref<16x256xf32, #tpu.memory_space<vmem>>, %arg2: memref<16x256xf32, #tpu.memory_space<vmem>>) attributes {dimension_semantics = [#tpu.dimension_semantics<parallel>], iteration_bounds = array<i64: 1>, scalar_prefetch = 0 : i64, scratch_operands = 0 : i64, tpu.core_type = #tpu.core_type<tc>, window_params = [{transform_indices = @transform_0, window_bounds = array<i64: 16, 256>}, {transform_indices = @transform_1, window_bounds = array<i64: 16, 256>}]} {
    %c0 = arith.constant 0 : index
    %c0_0 = arith.constant 0 : index
    %0 = vector.load %arg1[%c0, %c0_0] : memref<16x256xf32, #tpu.memory_space<vmem>>, vector<16x256xf32>
    %cst = arith.constant dense<0.000000e+00> : vector<16xf32>
    %1 = vector.multi_reduction <add>, %0, %cst [1] : vector<16x256xf32> to vector<16xf32>
    %2 = vector.shape_cast %1 : vector<16xf32> to vector<16x1xf32>
    %3 = arith.mulf %0, %0 : vector<16x256xf32>
    %cst_1 = arith.constant dense<0.000000e+00> : vector<16xf32>
    %4 = vector.multi_reduction <add>, %3, %cst_1 [1] : vector<16x256xf32> to vector<16xf32>
    %5 = vector.shape_cast %4 : vector<16xf32> to vector<16x1xf32>
    %cst_2 = arith.constant 3.906250e-03 : f32
    %6 = vector.broadcast %cst_2 : f32 to vector<16x1xf32>
    %7 = arith.mulf %2, %6 : vector<16x1xf32>
    %cst_3 = arith.constant 3.906250e-03 : f32
    %8 = vector.broadcast %cst_3 : f32 to vector<16x1xf32>
    %9 = arith.mulf %5, %8 : vector<16x1xf32>
    %10 = arith.mulf %7, %7 : vector<16x1xf32>
    %11 = arith.subf %9, %10 : vector<16x1xf32>
    %cst_4 = arith.constant 0.000000e+00 : f32
    %12 = vector.broadcast %cst_4 : f32 to vector<16x1xf32>
    %13 = arith.maximumf %11, %12 : vector<16x1xf32>
    %14 = vector.broadcast %7 : vector<16x1xf32> to vector<16x256xf32>
    %15 = arith.subf %0, %14 : vector<16x256xf32>
    %cst_5 = arith.constant 9.99999974E-6 : f32
    %16 = vector.broadcast %cst_5 : f32 to vector<16x1xf32>
    %17 = arith.addf %13, %16 : vector<16x1xf32>
    %18 = math.rsqrt %17 : vector<16x1xf32>
    %19 = vector.broadcast %18 : vector<16x1xf32> to vector<16x256xf32>
    %20 = arith.mulf %15, %19 : vector<16x256xf32>
    %cst_6 = arith.constant 0.000000e+00 : f32
    %21 = vector.broadcast %cst_6 : f32 to vector<16x256xf32>
    %22 = arith.maximumf %20, %21 : vector<16x256xf32>
    %c0_7 = arith.constant 0 : index
    %c0_8 = arith.constant 0 : index
    %23 = vector.load %arg2[%c0_7, %c0_8] : memref<16x256xf32, #tpu.memory_space<vmem>>, vector<16x256xf32>
    tpu.vector_store %arg2[%c0_7, %c0_8], %22 {strides = array<i32>} : memref<16x256xf32, #tpu.memory_space<vmem>>, vector<16x256xf32>,
    return
  }
  func.func @transform_0(%arg0: i32) -> (i32, i32) {
    %c0_i32 = arith.constant 0 : i32
    %c0_i32_0 = arith.constant 0 : i32
    return %arg0, %c0_i32 : i32, i32
  }
  func.func @transform_1(%arg0: i32) -> (i32, i32) {
    %c0_i32 = arith.constant 0 : i32
    %c0_i32_0 = arith.constant 0 : i32
    return %arg0, %c0_i32 : i32, i32
  }
}

module attributes {stable_mosaic.version = 11 : i64} {
  func.func @_matmul_bias_kernel(%arg0: i32, %arg1: memref<128x72xbf16, #tpu.memory_space<vmem>>, %arg2: memref<72x128xbf16, #tpu.memory_space<vmem>>, %arg3: memref<1x128xf32, #tpu.memory_space<vmem>>, %arg4: memref<128x128xf32, #tpu.memory_space<vmem>>) attributes {dimension_semantics = [#tpu.dimension_semantics<parallel>], iteration_bounds = array<i64: 1>, scalar_prefetch = 0 : i64, scratch_operands = 0 : i64, tpu.core_type = #tpu.core_type<tc>, window_params = [{transform_indices = @transform_0, window_bounds = array<i64: 128, 72>}, {pipeline_mode = #tpu.pipeline_mode<synchronous>, transform_indices = @transform_1, window_bounds = array<i64: 72, 128>}, {pipeline_mode = #tpu.pipeline_mode<synchronous>, transform_indices = @transform_2, window_bounds = array<i64: 1, 128>}, {transform_indices = @transform_3, window_bounds = array<i64: 128, 128>}]} {
    %c0 = arith.constant 0 : index
    %c0_0 = arith.constant 0 : index
    %0 = vector.load %arg1[%c0, %c0_0] : memref<128x72xbf16, #tpu.memory_space<vmem>>, vector<128x72xbf16>
    %c0_1 = arith.constant 0 : index
    %c0_2 = arith.constant 0 : index
    %1 = vector.load %arg2[%c0_1, %c0_2] : memref<72x128xbf16, #tpu.memory_space<vmem>>, vector<72x128xbf16>
    %cst = arith.constant dense<0.000000e+00> : vector<128x128xf32>
    %2 = tpu.matmul %0, %1, %cst {dimension_numbers = #tpu.dot_dimension_numbers<[1], [0], [0], [1], [0, 0, 1, 1], [], []>} : vector<128x72xbf16>, vector<72x128xbf16>, vector<128x128xf32> -> vector<128x128xf32>
    %c0_3 = arith.constant 0 : index
    %c0_4 = arith.constant 0 : index
    %3 = vector.load %arg3[%c0_3, %c0_4] : memref<1x128xf32, #tpu.memory_space<vmem>>, vector<1x128xf32>
    %4 = vector.broadcast %3 : vector<1x128xf32> to vector<128x128xf32>
    %5 = arith.addf %2, %4 : vector<128x128xf32>
    %c0_5 = arith.constant 0 : index
    %c0_6 = arith.constant 0 : index
    %6 = vector.load %arg4[%c0_5, %c0_6] : memref<128x128xf32, #tpu.memory_space<vmem>>, vector<128x128xf32>
    tpu.vector_store %arg4[%c0_5, %c0_6], %5 {strides = array<i32>} : memref<128x128xf32, #tpu.memory_space<vmem>>, vector<128x128xf32>,
    return
  }
  func.func @transform_0(%arg0: i32) -> (i32, i32) {
    %c0_i32 = arith.constant 0 : i32
    %c0_i32_0 = arith.constant 0 : i32
    return %arg0, %c0_i32 : i32, i32
  }
  func.func @transform_1(%arg0: i32) -> (i32, i32) {
    %c0_i32 = arith.constant 0 : i32
    %c0_i32_0 = arith.constant 0 : i32
    %c0_i32_1 = arith.constant 0 : i32
    return %c0_i32, %c0_i32_0 : i32, i32
  }
  func.func @transform_2(%arg0: i32) -> (i32, i32) {
    %c0_i32 = arith.constant 0 : i32
    %c0_i32_0 = arith.constant 0 : i32
    %c0_i32_1 = arith.constant 0 : i32
    return %c0_i32, %c0_i32_0 : i32, i32
  }
  func.func @transform_3(%arg0: i32) -> (i32, i32) {
    %c0_i32 = arith.constant 0 : i32
    %c0_i32_0 = arith.constant 0 : i32
    return %arg0, %c0_i32 : i32, i32
  }
}

module attributes {stable_mosaic.version = 11 : i64} {
  func.func @_inorm_kernel(%arg0: i32, %arg1: memref<32x64xf32, #tpu.memory_space<vmem>>, %arg2: memref<32x64xf32, #tpu.memory_space<vmem>>) attributes {dimension_semantics = [#tpu.dimension_semantics<parallel>], iteration_bounds = array<i64: 1>, scalar_prefetch = 0 : i64, scratch_operands = 0 : i64, tpu.core_type = #tpu.core_type<tc>, window_params = [{transform_indices = @transform_0, window_bounds = array<i64: 32, 64>}, {transform_indices = @transform_1, window_bounds = array<i64: 32, 64>}]} {
    %c0 = arith.constant 0 : index
    %c0_0 = arith.constant 0 : index
    %0 = vector.load %arg1[%c0, %c0_0] : memref<32x64xf32, #tpu.memory_space<vmem>>, vector<32x64xf32>
    %cst = arith.constant dense<0.000000e+00> : vector<32xf32>
    %1 = vector.multi_reduction <add>, %0, %cst [1] : vector<32x64xf32> to vector<32xf32>
    %2 = vector.shape_cast %1 : vector<32xf32> to vector<32x1xf32>
    %3 = arith.mulf %0, %0 : vector<32x64xf32>
    %cst_1 = arith.constant dense<0.000000e+00> : vector<32xf32>
    %4 = vector.multi_reduction <add>, %3, %cst_1 [1] : vector<32x64xf32> to vector<32xf32>
    %5 = vector.shape_cast %4 : vector<32xf32> to vector<32x1xf32>
    %cst_2 = arith.constant 1.562500e-02 : f32
    %6 = vector.broadcast %cst_2 : f32 to vector<32x1xf32>
    %7 = arith.mulf %2, %6 : vector<32x1xf32>
    %cst_3 = arith.constant 1.562500e-02 : f32
    %8 = vector.broadcast %cst_3 : f32 to vector<32x1xf32>
    %9 = arith.mulf %5, %8 : vector<32x1xf32>
    %10 = arith.mulf %7, %7 : vector<32x1xf32>
    %11 = arith.subf %9, %10 : vector<32x1xf32>
    %cst_4 = arith.constant 0.000000e+00 : f32
    %12 = vector.broadcast %cst_4 : f32 to vector<32x1xf32>
    %13 = arith.maximumf %11, %12 : vector<32x1xf32>
    %14 = vector.broadcast %7 : vector<32x1xf32> to vector<32x64xf32>
    %15 = arith.subf %0, %14 : vector<32x64xf32>
    %cst_5 = arith.constant 9.99999974E-6 : f32
    %16 = vector.broadcast %cst_5 : f32 to vector<32x1xf32>
    %17 = arith.addf %13, %16 : vector<32x1xf32>
    %18 = math.rsqrt %17 : vector<32x1xf32>
    %19 = vector.broadcast %18 : vector<32x1xf32> to vector<32x64xf32>
    %20 = arith.mulf %15, %19 : vector<32x64xf32>
    %cst_6 = arith.constant 0.000000e+00 : f32
    %21 = vector.broadcast %cst_6 : f32 to vector<32x64xf32>
    %22 = arith.maximumf %20, %21 : vector<32x64xf32>
    %c0_7 = arith.constant 0 : index
    %c0_8 = arith.constant 0 : index
    %23 = vector.load %arg2[%c0_7, %c0_8] : memref<32x64xf32, #tpu.memory_space<vmem>>, vector<32x64xf32>
    tpu.vector_store %arg2[%c0_7, %c0_8], %22 {strides = array<i32>} : memref<32x64xf32, #tpu.memory_space<vmem>>, vector<32x64xf32>,
    return
  }
  func.func @transform_0(%arg0: i32) -> (i32, i32) {
    %c0_i32 = arith.constant 0 : i32
    %c0_i32_0 = arith.constant 0 : i32
    return %arg0, %c0_i32 : i32, i32
  }
  func.func @transform_1(%arg0: i32) -> (i32, i32) {
    %c0_i32 = arith.constant 0 : i32
    %c0_i32_0 = arith.constant 0 : i32
    return %arg0, %c0_i32 : i32, i32
  }
}

module attributes {stable_mosaic.version = 11 : i64} {
  func.func @_inorm_kernel(%arg0: i32, %arg1: memref<64x16xf32, #tpu.memory_space<vmem>>, %arg2: memref<64x16xf32, #tpu.memory_space<vmem>>) attributes {dimension_semantics = [#tpu.dimension_semantics<parallel>], iteration_bounds = array<i64: 1>, scalar_prefetch = 0 : i64, scratch_operands = 0 : i64, tpu.core_type = #tpu.core_type<tc>, window_params = [{transform_indices = @transform_0, window_bounds = array<i64: 64, 16>}, {transform_indices = @transform_1, window_bounds = array<i64: 64, 16>}]} {
    %c0 = arith.constant 0 : index
    %c0_0 = arith.constant 0 : index
    %0 = vector.load %arg1[%c0, %c0_0] : memref<64x16xf32, #tpu.memory_space<vmem>>, vector<64x16xf32>
    %cst = arith.constant dense<0.000000e+00> : vector<64xf32>
    %1 = vector.multi_reduction <add>, %0, %cst [1] : vector<64x16xf32> to vector<64xf32>
    %2 = vector.shape_cast %1 : vector<64xf32> to vector<64x1xf32>
    %3 = arith.mulf %0, %0 : vector<64x16xf32>
    %cst_1 = arith.constant dense<0.000000e+00> : vector<64xf32>
    %4 = vector.multi_reduction <add>, %3, %cst_1 [1] : vector<64x16xf32> to vector<64xf32>
    %5 = vector.shape_cast %4 : vector<64xf32> to vector<64x1xf32>
    %cst_2 = arith.constant 6.250000e-02 : f32
    %6 = vector.broadcast %cst_2 : f32 to vector<64x1xf32>
    %7 = arith.mulf %2, %6 : vector<64x1xf32>
    %cst_3 = arith.constant 6.250000e-02 : f32
    %8 = vector.broadcast %cst_3 : f32 to vector<64x1xf32>
    %9 = arith.mulf %5, %8 : vector<64x1xf32>
    %10 = arith.mulf %7, %7 : vector<64x1xf32>
    %11 = arith.subf %9, %10 : vector<64x1xf32>
    %cst_4 = arith.constant 0.000000e+00 : f32
    %12 = vector.broadcast %cst_4 : f32 to vector<64x1xf32>
    %13 = arith.maximumf %11, %12 : vector<64x1xf32>
    %14 = vector.broadcast %7 : vector<64x1xf32> to vector<64x16xf32>
    %15 = arith.subf %0, %14 : vector<64x16xf32>
    %cst_5 = arith.constant 9.99999974E-6 : f32
    %16 = vector.broadcast %cst_5 : f32 to vector<64x1xf32>
    %17 = arith.addf %13, %16 : vector<64x1xf32>
    %18 = math.rsqrt %17 : vector<64x1xf32>
    %19 = vector.broadcast %18 : vector<64x1xf32> to vector<64x16xf32>
    %20 = arith.mulf %15, %19 : vector<64x16xf32>
    %cst_6 = arith.constant 0.000000e+00 : f32
    %21 = vector.broadcast %cst_6 : f32 to vector<64x16xf32>
    %22 = arith.maximumf %20, %21 : vector<64x16xf32>
    %c0_7 = arith.constant 0 : index
    %c0_8 = arith.constant 0 : index
    %23 = vector.load %arg2[%c0_7, %c0_8] : memref<64x16xf32, #tpu.memory_space<vmem>>, vector<64x16xf32>
    tpu.vector_store %arg2[%c0_7, %c0_8], %22 {strides = array<i32>} : memref<64x16xf32, #tpu.memory_space<vmem>>, vector<64x16xf32>,
    return
  }
  func.func @transform_0(%arg0: i32) -> (i32, i32) {
    %c0_i32 = arith.constant 0 : i32
    %c0_i32_0 = arith.constant 0 : i32
    return %arg0, %c0_i32 : i32, i32
  }
  func.func @transform_1(%arg0: i32) -> (i32, i32) {
    %c0_i32 = arith.constant 0 : i32
    %c0_i32_0 = arith.constant 0 : i32
    return %arg0, %c0_i32 : i32, i32
  }
}

module attributes {stable_mosaic.version = 11 : i64} {
  func.func @_matmul_bias_kernel(%arg0: i32, %arg1: memref<32x144xbf16, #tpu.memory_space<vmem>>, %arg2: memref<144x128xbf16, #tpu.memory_space<vmem>>, %arg3: memref<1x128xf32, #tpu.memory_space<vmem>>, %arg4: memref<32x128xf32, #tpu.memory_space<vmem>>) attributes {dimension_semantics = [#tpu.dimension_semantics<parallel>], iteration_bounds = array<i64: 1>, scalar_prefetch = 0 : i64, scratch_operands = 0 : i64, tpu.core_type = #tpu.core_type<tc>, window_params = [{transform_indices = @transform_0, window_bounds = array<i64: 32, 144>}, {pipeline_mode = #tpu.pipeline_mode<synchronous>, transform_indices = @transform_1, window_bounds = array<i64: 144, 128>}, {pipeline_mode = #tpu.pipeline_mode<synchronous>, transform_indices = @transform_2, window_bounds = array<i64: 1, 128>}, {transform_indices = @transform_3, window_bounds = array<i64: 32, 128>}]} {
    %c0 = arith.constant 0 : index
    %c0_0 = arith.constant 0 : index
    %0 = vector.load %arg1[%c0, %c0_0] : memref<32x144xbf16, #tpu.memory_space<vmem>>, vector<32x144xbf16>
    %c0_1 = arith.constant 0 : index
    %c0_2 = arith.constant 0 : index
    %1 = vector.load %arg2[%c0_1, %c0_2] : memref<144x128xbf16, #tpu.memory_space<vmem>>, vector<144x128xbf16>
    %cst = arith.constant dense<0.000000e+00> : vector<32x128xf32>
    %2 = tpu.matmul %0, %1, %cst {dimension_numbers = #tpu.dot_dimension_numbers<[1], [0], [0], [1], [0, 0, 1, 1], [], []>} : vector<32x144xbf16>, vector<144x128xbf16>, vector<32x128xf32> -> vector<32x128xf32>
    %c0_3 = arith.constant 0 : index
    %c0_4 = arith.constant 0 : index
    %3 = vector.load %arg3[%c0_3, %c0_4] : memref<1x128xf32, #tpu.memory_space<vmem>>, vector<1x128xf32>
    %4 = vector.broadcast %3 : vector<1x128xf32> to vector<32x128xf32>
    %5 = arith.addf %2, %4 : vector<32x128xf32>
    %c0_5 = arith.constant 0 : index
    %c0_6 = arith.constant 0 : index
    %6 = vector.load %arg4[%c0_5, %c0_6] : memref<32x128xf32, #tpu.memory_space<vmem>>, vector<32x128xf32>
    tpu.vector_store %arg4[%c0_5, %c0_6], %5 {strides = array<i32>} : memref<32x128xf32, #tpu.memory_space<vmem>>, vector<32x128xf32>,
    return
  }
  func.func @transform_0(%arg0: i32) -> (i32, i32) {
    %c0_i32 = arith.constant 0 : i32
    %c0_i32_0 = arith.constant 0 : i32
    return %arg0, %c0_i32 : i32, i32
  }
  func.func @transform_1(%arg0: i32) -> (i32, i32) {
    %c0_i32 = arith.constant 0 : i32
    %c0_i32_0 = arith.constant 0 : i32
    %c0_i32_1 = arith.constant 0 : i32
    return %c0_i32, %c0_i32_0 : i32, i32
  }
  func.func @transform_2(%arg0: i32) -> (i32, i32) {
    %c0_i32 = arith.constant 0 : i32
    %c0_i32_0 = arith.constant 0 : i32
    %c0_i32_1 = arith.constant 0 : i32
    return %c0_i32, %c0_i32_0 : i32, i32
  }
  func.func @transform_3(%arg0: i32) -> (i32, i32) {
    %c0_i32 = arith.constant 0 : i32
    %c0_i32_0 = arith.constant 0 : i32
    return %arg0, %c0_i32 : i32, i32
  }
}

module attributes {stable_mosaic.version = 11 : i64} {
  func.func @_matmul_bias_kernel(%arg0: i32, %arg1: memref<32x288xbf16, #tpu.memory_space<vmem>>, %arg2: memref<288x128xbf16, #tpu.memory_space<vmem>>, %arg3: memref<1x128xf32, #tpu.memory_space<vmem>>, %arg4: memref<32x128xf32, #tpu.memory_space<vmem>>) attributes {dimension_semantics = [#tpu.dimension_semantics<parallel>], iteration_bounds = array<i64: 1>, scalar_prefetch = 0 : i64, scratch_operands = 0 : i64, tpu.core_type = #tpu.core_type<tc>, window_params = [{transform_indices = @transform_0, window_bounds = array<i64: 32, 288>}, {pipeline_mode = #tpu.pipeline_mode<synchronous>, transform_indices = @transform_1, window_bounds = array<i64: 288, 128>}, {pipeline_mode = #tpu.pipeline_mode<synchronous>, transform_indices = @transform_2, window_bounds = array<i64: 1, 128>}, {transform_indices = @transform_3, window_bounds = array<i64: 32, 128>}]} {
    %c0 = arith.constant 0 : index
    %c0_0 = arith.constant 0 : index
    %0 = vector.load %arg1[%c0, %c0_0] : memref<32x288xbf16, #tpu.memory_space<vmem>>, vector<32x288xbf16>
    %c0_1 = arith.constant 0 : index
    %c0_2 = arith.constant 0 : index
    %1 = vector.load %arg2[%c0_1, %c0_2] : memref<288x128xbf16, #tpu.memory_space<vmem>>, vector<288x128xbf16>
    %cst = arith.constant dense<0.000000e+00> : vector<32x128xf32>
    %2 = tpu.matmul %0, %1, %cst {dimension_numbers = #tpu.dot_dimension_numbers<[1], [0], [0], [1], [0, 0, 1, 1], [], []>} : vector<32x288xbf16>, vector<288x128xbf16>, vector<32x128xf32> -> vector<32x128xf32>
    %c0_3 = arith.constant 0 : index
    %c0_4 = arith.constant 0 : index
    %3 = vector.load %arg3[%c0_3, %c0_4] : memref<1x128xf32, #tpu.memory_space<vmem>>, vector<1x128xf32>
    %4 = vector.broadcast %3 : vector<1x128xf32> to vector<32x128xf32>
    %5 = arith.addf %2, %4 : vector<32x128xf32>
    %c0_5 = arith.constant 0 : index
    %c0_6 = arith.constant 0 : index
    %6 = vector.load %arg4[%c0_5, %c0_6] : memref<32x128xf32, #tpu.memory_space<vmem>>, vector<32x128xf32>
    tpu.vector_store %arg4[%c0_5, %c0_6], %5 {strides = array<i32>} : memref<32x128xf32, #tpu.memory_space<vmem>>, vector<32x128xf32>,
    return
  }
  func.func @transform_0(%arg0: i32) -> (i32, i32) {
    %c0_i32 = arith.constant 0 : i32
    %c0_i32_0 = arith.constant 0 : i32
    return %arg0, %c0_i32 : i32, i32
  }
  func.func @transform_1(%arg0: i32) -> (i32, i32) {
    %c0_i32 = arith.constant 0 : i32
    %c0_i32_0 = arith.constant 0 : i32
    %c0_i32_1 = arith.constant 0 : i32
    return %c0_i32, %c0_i32_0 : i32, i32
  }
  func.func @transform_2(%arg0: i32) -> (i32, i32) {
    %c0_i32 = arith.constant 0 : i32
    %c0_i32_0 = arith.constant 0 : i32
    %c0_i32_1 = arith.constant 0 : i32
    return %c0_i32, %c0_i32_0 : i32, i32
  }
  func.func @transform_3(%arg0: i32) -> (i32, i32) {
    %c0_i32 = arith.constant 0 : i32
    %c0_i32_0 = arith.constant 0 : i32
    return %arg0, %c0_i32 : i32, i32
  }
}

module attributes {stable_mosaic.version = 11 : i64} {
  func.func @_inorm_residual_kernel(%arg0: i32, %arg1: memref<64x16xf32, #tpu.memory_space<vmem>>, %arg2: memref<64x16xf32, #tpu.memory_space<vmem>>, %arg3: memref<64x16xf32, #tpu.memory_space<vmem>>) attributes {dimension_semantics = [#tpu.dimension_semantics<parallel>], iteration_bounds = array<i64: 1>, scalar_prefetch = 0 : i64, scratch_operands = 0 : i64, tpu.core_type = #tpu.core_type<tc>, window_params = [{transform_indices = @transform_0, window_bounds = array<i64: 64, 16>}, {transform_indices = @transform_1, window_bounds = array<i64: 64, 16>}, {transform_indices = @transform_2, window_bounds = array<i64: 64, 16>}]} {
    %c0 = arith.constant 0 : index
    %c0_0 = arith.constant 0 : index
    %0 = vector.load %arg1[%c0, %c0_0] : memref<64x16xf32, #tpu.memory_space<vmem>>, vector<64x16xf32>
    %cst = arith.constant dense<0.000000e+00> : vector<64xf32>
    %1 = vector.multi_reduction <add>, %0, %cst [1] : vector<64x16xf32> to vector<64xf32>
    %2 = vector.shape_cast %1 : vector<64xf32> to vector<64x1xf32>
    %3 = arith.mulf %0, %0 : vector<64x16xf32>
    %cst_1 = arith.constant dense<0.000000e+00> : vector<64xf32>
    %4 = vector.multi_reduction <add>, %3, %cst_1 [1] : vector<64x16xf32> to vector<64xf32>
    %5 = vector.shape_cast %4 : vector<64xf32> to vector<64x1xf32>
    %cst_2 = arith.constant 6.250000e-02 : f32
    %6 = vector.broadcast %cst_2 : f32 to vector<64x1xf32>
    %7 = arith.mulf %2, %6 : vector<64x1xf32>
    %cst_3 = arith.constant 6.250000e-02 : f32
    %8 = vector.broadcast %cst_3 : f32 to vector<64x1xf32>
    %9 = arith.mulf %5, %8 : vector<64x1xf32>
    %10 = arith.mulf %7, %7 : vector<64x1xf32>
    %11 = arith.subf %9, %10 : vector<64x1xf32>
    %cst_4 = arith.constant 0.000000e+00 : f32
    %12 = vector.broadcast %cst_4 : f32 to vector<64x1xf32>
    %13 = arith.maximumf %11, %12 : vector<64x1xf32>
    %14 = vector.broadcast %7 : vector<64x1xf32> to vector<64x16xf32>
    %15 = arith.subf %0, %14 : vector<64x16xf32>
    %cst_5 = arith.constant 9.99999974E-6 : f32
    %16 = vector.broadcast %cst_5 : f32 to vector<64x1xf32>
    %17 = arith.addf %13, %16 : vector<64x1xf32>
    %18 = math.rsqrt %17 : vector<64x1xf32>
    %19 = vector.broadcast %18 : vector<64x1xf32> to vector<64x16xf32>
    %20 = arith.mulf %15, %19 : vector<64x16xf32>
    %c0_6 = arith.constant 0 : index
    %c0_7 = arith.constant 0 : index
    %21 = vector.load %arg2[%c0_6, %c0_7] : memref<64x16xf32, #tpu.memory_space<vmem>>, vector<64x16xf32>
    %22 = arith.addf %21, %20 : vector<64x16xf32>
    %c0_8 = arith.constant 0 : index
    %c0_9 = arith.constant 0 : index
    %23 = vector.load %arg3[%c0_8, %c0_9] : memref<64x16xf32, #tpu.memory_space<vmem>>, vector<64x16xf32>
    tpu.vector_store %arg3[%c0_8, %c0_9], %22 {strides = array<i32>} : memref<64x16xf32, #tpu.memory_space<vmem>>, vector<64x16xf32>,
    return
  }
  func.func @transform_0(%arg0: i32) -> (i32, i32) {
    %c0_i32 = arith.constant 0 : i32
    %c0_i32_0 = arith.constant 0 : i32
    return %arg0, %c0_i32 : i32, i32
  }
  func.func @transform_1(%arg0: i32) -> (i32, i32) {
    %c0_i32 = arith.constant 0 : i32
    %c0_i32_0 = arith.constant 0 : i32
    return %arg0, %c0_i32 : i32, i32
  }
  func.func @transform_2(%arg0: i32) -> (i32, i32) {
    %c0_i32 = arith.constant 0 : i32
    %c0_i32_0 = arith.constant 0 : i32
    return %arg0, %c0_i32 : i32, i32
  }
}

module attributes {stable_mosaic.version = 11 : i64} {
  func.func @_matmul_bias_kernel(%arg0: i32, %arg1: memref<32x128xbf16, #tpu.memory_space<vmem>>, %arg2: memref<128x128xbf16, #tpu.memory_space<vmem>>, %arg3: memref<1x128xf32, #tpu.memory_space<vmem>>, %arg4: memref<32x128xf32, #tpu.memory_space<vmem>>) attributes {dimension_semantics = [#tpu.dimension_semantics<parallel>], iteration_bounds = array<i64: 1>, scalar_prefetch = 0 : i64, scratch_operands = 0 : i64, tpu.core_type = #tpu.core_type<tc>, window_params = [{transform_indices = @transform_0, window_bounds = array<i64: 32, 128>}, {pipeline_mode = #tpu.pipeline_mode<synchronous>, transform_indices = @transform_1, window_bounds = array<i64: 128, 128>}, {pipeline_mode = #tpu.pipeline_mode<synchronous>, transform_indices = @transform_2, window_bounds = array<i64: 1, 128>}, {transform_indices = @transform_3, window_bounds = array<i64: 32, 128>}]} {
    %c0 = arith.constant 0 : index
    %c0_0 = arith.constant 0 : index
    %0 = vector.load %arg1[%c0, %c0_0] : memref<32x128xbf16, #tpu.memory_space<vmem>>, vector<32x128xbf16>
    %c0_1 = arith.constant 0 : index
    %c0_2 = arith.constant 0 : index
    %1 = vector.load %arg2[%c0_1, %c0_2] : memref<128x128xbf16, #tpu.memory_space<vmem>>, vector<128x128xbf16>
    %cst = arith.constant dense<0.000000e+00> : vector<32x128xf32>
    %2 = tpu.matmul %0, %1, %cst {dimension_numbers = #tpu.dot_dimension_numbers<[1], [0], [0], [1], [0, 0, 1, 1], [], []>} : vector<32x128xbf16>, vector<128x128xbf16>, vector<32x128xf32> -> vector<32x128xf32>
    %c0_3 = arith.constant 0 : index
    %c0_4 = arith.constant 0 : index
    %3 = vector.load %arg3[%c0_3, %c0_4] : memref<1x128xf32, #tpu.memory_space<vmem>>, vector<1x128xf32>
    %4 = vector.broadcast %3 : vector<1x128xf32> to vector<32x128xf32>
    %5 = arith.addf %2, %4 : vector<32x128xf32>
    %c0_5 = arith.constant 0 : index
    %c0_6 = arith.constant 0 : index
    %6 = vector.load %arg4[%c0_5, %c0_6] : memref<32x128xf32, #tpu.memory_space<vmem>>, vector<32x128xf32>
    tpu.vector_store %arg4[%c0_5, %c0_6], %5 {strides = array<i32>} : memref<32x128xf32, #tpu.memory_space<vmem>>, vector<32x128xf32>,
    return
  }
  func.func @transform_0(%arg0: i32) -> (i32, i32) {
    %c0_i32 = arith.constant 0 : i32
    %c0_i32_0 = arith.constant 0 : i32
    return %arg0, %c0_i32 : i32, i32
  }
  func.func @transform_1(%arg0: i32) -> (i32, i32) {
    %c0_i32 = arith.constant 0 : i32
    %c0_i32_0 = arith.constant 0 : i32
    %c0_i32_1 = arith.constant 0 : i32
    return %c0_i32, %c0_i32_0 : i32, i32
  }
  func.func @transform_2(%arg0: i32) -> (i32, i32) {
    %c0_i32 = arith.constant 0 : i32
    %c0_i32_0 = arith.constant 0 : i32
    %c0_i32_1 = arith.constant 0 : i32
    return %c0_i32, %c0_i32_0 : i32, i32
  }
  func.func @transform_3(%arg0: i32) -> (i32, i32) {
    %c0_i32 = arith.constant 0 : i32
    %c0_i32_0 = arith.constant 0 : i32
    return %arg0, %c0_i32 : i32, i32
  }
}

module attributes {stable_mosaic.version = 11 : i64} {
  func.func @_matmul_bias_kernel(%arg0: i32, %arg1: memref<128x64xbf16, #tpu.memory_space<vmem>>, %arg2: memref<64x128xbf16, #tpu.memory_space<vmem>>, %arg3: memref<1x128xf32, #tpu.memory_space<vmem>>, %arg4: memref<128x128xf32, #tpu.memory_space<vmem>>) attributes {dimension_semantics = [#tpu.dimension_semantics<parallel>], iteration_bounds = array<i64: 1>, scalar_prefetch = 0 : i64, scratch_operands = 0 : i64, tpu.core_type = #tpu.core_type<tc>, window_params = [{transform_indices = @transform_0, window_bounds = array<i64: 128, 64>}, {pipeline_mode = #tpu.pipeline_mode<synchronous>, transform_indices = @transform_1, window_bounds = array<i64: 64, 128>}, {pipeline_mode = #tpu.pipeline_mode<synchronous>, transform_indices = @transform_2, window_bounds = array<i64: 1, 128>}, {transform_indices = @transform_3, window_bounds = array<i64: 128, 128>}]} {
    %c0 = arith.constant 0 : index
    %c0_0 = arith.constant 0 : index
    %0 = vector.load %arg1[%c0, %c0_0] : memref<128x64xbf16, #tpu.memory_space<vmem>>, vector<128x64xbf16>
    %c0_1 = arith.constant 0 : index
    %c0_2 = arith.constant 0 : index
    %1 = vector.load %arg2[%c0_1, %c0_2] : memref<64x128xbf16, #tpu.memory_space<vmem>>, vector<64x128xbf16>
    %cst = arith.constant dense<0.000000e+00> : vector<128x128xf32>
    %2 = tpu.matmul %0, %1, %cst {dimension_numbers = #tpu.dot_dimension_numbers<[1], [0], [0], [1], [0, 0, 1, 1], [], []>} : vector<128x64xbf16>, vector<64x128xbf16>, vector<128x128xf32> -> vector<128x128xf32>
    %c0_3 = arith.constant 0 : index
    %c0_4 = arith.constant 0 : index
    %3 = vector.load %arg3[%c0_3, %c0_4] : memref<1x128xf32, #tpu.memory_space<vmem>>, vector<1x128xf32>
    %4 = vector.broadcast %3 : vector<1x128xf32> to vector<128x128xf32>
    %5 = arith.addf %2, %4 : vector<128x128xf32>
    %c0_5 = arith.constant 0 : index
    %c0_6 = arith.constant 0 : index
    %6 = vector.load %arg4[%c0_5, %c0_6] : memref<128x128xf32, #tpu.memory_space<vmem>>, vector<128x128xf32>
    tpu.vector_store %arg4[%c0_5, %c0_6], %5 {strides = array<i32>} : memref<128x128xf32, #tpu.memory_space<vmem>>, vector<128x128xf32>,
    return
  }
  func.func @transform_0(%arg0: i32) -> (i32, i32) {
    %c0_i32 = arith.constant 0 : i32
    %c0_i32_0 = arith.constant 0 : i32
    return %arg0, %c0_i32 : i32, i32
  }
  func.func @transform_1(%arg0: i32) -> (i32, i32) {
    %c0_i32 = arith.constant 0 : i32
    %c0_i32_0 = arith.constant 0 : i32
    %c0_i32_1 = arith.constant 0 : i32
    return %c0_i32, %c0_i32_0 : i32, i32
  }
  func.func @transform_2(%arg0: i32) -> (i32, i32) {
    %c0_i32 = arith.constant 0 : i32
    %c0_i32_0 = arith.constant 0 : i32
    %c0_i32_1 = arith.constant 0 : i32
    return %c0_i32, %c0_i32_0 : i32, i32
  }
  func.func @transform_3(%arg0: i32) -> (i32, i32) {
    %c0_i32 = arith.constant 0 : i32
    %c0_i32_0 = arith.constant 0 : i32
    return %arg0, %c0_i32 : i32, i32
  }
}

module attributes {stable_mosaic.version = 11 : i64} {
  func.func @_matmul_bias_kernel(%arg0: i32, %arg1: memref<512x392xbf16, #tpu.memory_space<vmem>>, %arg2: memref<392x128xbf16, #tpu.memory_space<vmem>>, %arg3: memref<1x128xf32, #tpu.memory_space<vmem>>, %arg4: memref<512x128xf32, #tpu.memory_space<vmem>>) attributes {dimension_semantics = [#tpu.dimension_semantics<parallel>], iteration_bounds = array<i64: 1>, scalar_prefetch = 0 : i64, scratch_operands = 0 : i64, tpu.core_type = #tpu.core_type<tc>, window_params = [{transform_indices = @transform_0, window_bounds = array<i64: 512, 392>}, {pipeline_mode = #tpu.pipeline_mode<synchronous>, transform_indices = @transform_1, window_bounds = array<i64: 392, 128>}, {pipeline_mode = #tpu.pipeline_mode<synchronous>, transform_indices = @transform_2, window_bounds = array<i64: 1, 128>}, {transform_indices = @transform_3, window_bounds = array<i64: 512, 128>}]} {
    %c0 = arith.constant 0 : index
    %c0_0 = arith.constant 0 : index
    %0 = vector.load %arg1[%c0, %c0_0] : memref<512x392xbf16, #tpu.memory_space<vmem>>, vector<512x392xbf16>
    %c0_1 = arith.constant 0 : index
    %c0_2 = arith.constant 0 : index
    %1 = vector.load %arg2[%c0_1, %c0_2] : memref<392x128xbf16, #tpu.memory_space<vmem>>, vector<392x128xbf16>
    %cst = arith.constant dense<0.000000e+00> : vector<512x128xf32>
    %2 = tpu.matmul %0, %1, %cst {dimension_numbers = #tpu.dot_dimension_numbers<[1], [0], [0], [1], [0, 0, 1, 1], [], []>} : vector<512x392xbf16>, vector<392x128xbf16>, vector<512x128xf32> -> vector<512x128xf32>
    %c0_3 = arith.constant 0 : index
    %c0_4 = arith.constant 0 : index
    %3 = vector.load %arg3[%c0_3, %c0_4] : memref<1x128xf32, #tpu.memory_space<vmem>>, vector<1x128xf32>
    %4 = vector.broadcast %3 : vector<1x128xf32> to vector<512x128xf32>
    %5 = arith.addf %2, %4 : vector<512x128xf32>
    %6 = math.tanh %5 : vector<512x128xf32>
    %c0_5 = arith.constant 0 : index
    %c0_6 = arith.constant 0 : index
    %7 = vector.load %arg4[%c0_5, %c0_6] : memref<512x128xf32, #tpu.memory_space<vmem>>, vector<512x128xf32>
    tpu.vector_store %arg4[%c0_5, %c0_6], %6 {strides = array<i32>} : memref<512x128xf32, #tpu.memory_space<vmem>>, vector<512x128xf32>,
    return
  }
  func.func @transform_0(%arg0: i32) -> (i32, i32) {
    %c0_i32 = arith.constant 0 : i32
    %c0_i32_0 = arith.constant 0 : i32
    return %arg0, %c0_i32 : i32, i32
  }
  func.func @transform_1(%arg0: i32) -> (i32, i32) {
    %c0_i32 = arith.constant 0 : i32
    %c0_i32_0 = arith.constant 0 : i32
    %c0_i32_1 = arith.constant 0 : i32
    return %c0_i32, %c0_i32_0 : i32, i32
  }
  func.func @transform_2(%arg0: i32) -> (i32, i32) {
    %c0_i32 = arith.constant 0 : i32
    %c0_i32_0 = arith.constant 0 : i32
    %c0_i32_1 = arith.constant 0 : i32
    return %c0_i32, %c0_i32_0 : i32, i32
  }
  func.func @transform_3(%arg0: i32) -> (i32, i32) {
    %c0_i32 = arith.constant 0 : i32
    %c0_i32_0 = arith.constant 0 : i32
    return %arg0, %c0_i32 : i32, i32
  }
}

</mosaic_0001>

<llo_original>
// kernel: resnet_generator_forward.20
$region0: #{resnet_generator_forward.20}
  #allocation0 [shape = 'u32[]', space=smem, size = 0x4, offset = 0x4, fixed_abs, tag = 'smem constant byte address 0x4 - core index']
  #allocation1 [shape = 'u32[144,128]{1,0:T(1,128)}', space=vmem, size = 0x12000, scoped, tag = 'internal scratch']
  %s0 = inlined_call_operand.vmem [shape: f32[16,256], index: 0, kind: input, shape index: {}]
  %s1 = inlined_call_operand.vmem [shape: f32[16,256], index: 1, kind: output, shape index: {}]
  %s2 = sld [smem:[#allocation0]]
  $region14: #{resnet_generator_forward.20} parent=0
    _
  %s4 = ssub.s32 1, %s2
  %s5 = scalar_select 0, %s4, %s2
  // Predicated region
  $region2: #{resnet_generator_forward.20} parent=0 // pred_check
    _
  $region3: #{resnet_generator_forward.20} parent=0 // pred_check_branch
    %7 = sbr.rel (0) target = $region5
  $region4: #{resnet_generator_forward.20} parent=0 // pred_region
    _
  $region5: #{resnet_generator_forward.20} parent=0 // pred_fallthru
    _
  %v8 = vld [vmem:[%s0] sm:$0xff]
  %v9 = vld [vmem:[%s0 + $0x8] sm:$0xff]
  %v10 = vld [vmem:[%s0 + $0x10] sm:$0xff]
  %v11 = vld [vmem:[%s0 + $0x18] sm:$0xff]
  %v12 = vadd.f32 %v8, %v9
  %13 = vadd.xlane.f32.xlu0 %v12
  %v14 = vpop.xlane.xlu0 %13
  %v15 = vadd.f32 %v10, %v11
  %16 = vadd.xlane.f32.xlu0 %v15
  %v17 = vpop.xlane.xlu0 %16
  %v18 = vmul.f32 %v8, %v8
  %v19 = vmul.f32 %v9, %v9
  %v20 = vmul.f32 %v10, %v10
  %v21 = vmul.f32 %v11, %v11
  %v22 = vadd.f32 %v18, %v19
  %23 = vadd.xlane.f32.xlu0 %v22
  %v24 = vpop.xlane.xlu0 %23
  %v25 = vadd.f32 %v20, %v21
  %26 = vadd.xlane.f32.xlu0 %v25
  %v27 = vpop.xlane.xlu0 %26
  %v28 = vmul.f32 %v14, 0.00390625
  %v29 = vmul.f32 %v17, 0.00390625
  %v30 = vmul.f32 %v24, 0.00390625
  %v31 = vmul.f32 %v27, 0.00390625
  %v32 = vmul.f32 %v28, %v28
  %v33 = vmul.f32 %v29, %v29
  %v34 = vsub.f32 %v30, %v32
  %v35 = vsub.f32 %v31, %v33
  %v36 = vmax.f32 %v34, 0.0
  %v37 = vmax.f32 %v35, 0.0
  %v38 = vsub.f32 %v8, %v28
  %v39 = vsub.f32 %v9, %v28
  %v40 = vsub.f32 %v10, %v29
  %v41 = vsub.f32 %v11, %v29
  %v42 = vadd.f32 %v36, 1e-05
  %v43 = vadd.f32 %v37, 1e-05
  %v44 = vrsqrt.pop %v42
  %v45 = vrsqrt.pop %v43
  %v46 = vmul.f32 %v38, %v44
  %v47 = vmul.f32 %v39, %v44
  %v48 = vmul.f32 %v40, %v45
  %v49 = vmul.f32 %v41, %v45
  %v50 = vmax.f32 %v46, 0.0
  %v51 = vmax.f32 %v47, 0.0
  %v52 = vmax.f32 %v48, 0.0
  %v53 = vmax.f32 %v49, 0.0
  %54 = vst [vmem:[%s1] sm:$0xff] %v50
  %55 = vst [vmem:[%s1 + $0x8] sm:$0xff] %v51
  %56 = vst [vmem:[%s1 + $0x10] sm:$0xff] %v52
  %57 = vst [vmem:[%s1 + $0x18] sm:$0xff] %v53
  // Predicated region
  $region6: #{resnet_generator_forward.20} parent=0 // pred_check
    _
  $region7: #{resnet_generator_forward.20} parent=0 // pred_check_branch
    %59 = sbr.rel (0) target = $region9
  $region8: #{resnet_generator_forward.20} parent=0 // pred_region
    _
  $region9: #{resnet_generator_forward.20} parent=0 // pred_fallthru
    _
  // Predicated region
  $region10: #{resnet_generator_forward.20} parent=0 // pred_check
    _
  $region11: #{resnet_generator_forward.20} parent=0 // pred_check_branch
    %61 = sbr.rel (0) target = $region13
  $region12: #{resnet_generator_forward.20} parent=0 // pred_region
    _
  $region13: #{resnet_generator_forward.20} parent=0 // pred_fallthru
    _

// kernel: resnet_generator_forward.19
$region0: #{resnet_generator_forward.19}
  #allocation0 [shape = 'u32[]', space=smem, size = 0x4, offset = 0x4, fixed_abs, tag = 'smem constant byte address 0x4 - core index']
  #allocation1 [shape = 'u32[144,128]{1,0:T(1,128)}', space=vmem, size = 0x12000, scoped, tag = 'internal scratch']
  %s0 = inlined_call_operand.vmem [shape: bf16[512,147], index: 0, kind: input, shape index: {}]
  %s1 = inlined_call_operand.vmem [shape: bf16[147,128], index: 1, kind: input, shape index: {}]
  %s2 = inlined_call_operand.vmem [shape: f32[1,128], index: 2, kind: input, shape index: {}]
  %s3 = inlined_call_operand.vmem [shape: f32[512,128], index: 3, kind: output, shape index: {}]
  %s4 = sld [smem:[#allocation0]]
  $region22: #{resnet_generator_forward.19} parent=0
    _
  %s6 = ssub.s32 1, %s4
  %s7 = scalar_select 0, %s6, %s4
  // Predicated region
  $region2: #{resnet_generator_forward.19} parent=0 // pred_check
    _
  $region3: #{resnet_generator_forward.19} parent=0 // pred_check_branch
    %9 = sbr.rel (0) target = $region5
  $region4: #{resnet_generator_forward.19} parent=0 // pred_region
    _
  $region5: #{resnet_generator_forward.19} parent=0 // pred_fallthru
    _
  // Predicated region
  $region6: #{resnet_generator_forward.19} parent=0 // pred_check
    _
  $region7: #{resnet_generator_forward.19} parent=0 // pred_check_branch
    %11 = sbr.rel (0) target = $region9
  $region8: #{resnet_generator_forward.19} parent=0 // pred_region
    _
  $region9: #{resnet_generator_forward.19} parent=0 // pred_fallthru
    _
  // Predicated region
  $region10: #{resnet_generator_forward.19} parent=0 // pred_check
    _
  $region11: #{resnet_generator_forward.19} parent=0 // pred_check_branch
    %13 = sbr.rel (0) target = $region13
  $region12: #{resnet_generator_forward.19} parent=0 // pred_region
    _
  $region13: #{resnet_generator_forward.19} parent=0 // pred_fallthru
    _
  %v15 = vld [vmem:[%s0] sm:$0xff]
  %v16 = vld [vmem:[%s0 + $0x8] sm:$0xff]
  %v17 = vld [vmem:[%s0 + $0x10] sm:$0xff]
  %v18 = vld [vmem:[%s0 + $0x18] sm:$0xff]
  %v19 = vld [vmem:[%s0 + $0x20] sm:$0xff]
  %v20 = vld [vmem:[%s0 + $0x28] sm:$0xff]
  %v21 = vld [vmem:[%s0 + $0x30] sm:$0xff]
  %v22 = vld [vmem:[%s0 + $0x38] sm:$0xff]
  %v23 = vld [vmem:[%s0 + $0x40] sm:$0xff]
  %v24 = vld [vmem:[%s0 + $0x48] sm:$0xff]
  %v25 = vld [vmem:[%s0 + $0x50] sm:$0xff]
  %v26 = vld [vmem:[%s0 + $0x58] sm:$0xff]
  %v27 = vld [vmem:[%s0 + $0x60] sm:$0xff]
  %v28 = vld [vmem:[%s0 + $0x68] sm:$0xff]
  %v29 = vld [vmem:[%s0 + $0x70] sm:$0xff]
  %v30 = vld [vmem:[%s0 + $0x78] sm:$0xff]
  %v31 = vld [vmem:[%s0 + $0x80] sm:$0xff]
  %v32 = vld [vmem:[%s0 + $0x88] sm:$0xff]
  %v33 = vld [vmem:[%s0 + $0x90] sm:$0xff]
  %v34 = vld [vmem:[%s0 + $0x98] sm:$0xff]
  %v35 = vld [vmem:[%s0 + $0xa0] sm:$0xff]
  %v36 = vld [vmem:[%s0 + $0xa8] sm:$0xff]
  %v37 = vld [vmem:[%s0 + $0xb0] sm:$0xff]
  %v38 = vld [vmem:[%s0 + $0xb8] sm:$0xff]
  %v39 = vld [vmem:[%s0 + $0xc0] sm:$0xff]
  %v40 = vld [vmem:[%s0 + $0xc8] sm:$0xff]
  %v41 = vld [vmem:[%s0 + $0xd0] sm:$0xff]
  %v42 = vld [vmem:[%s0 + $0xd8] sm:$0xff]
  %v43 = vld [vmem:[%s0 + $0xe0] sm:$0xff]
  %v44 = vld [vmem:[%s0 + $0xe8] sm:$0xff]
  %v45 = vld [vmem:[%s0 + $0xf0] sm:$0xff]
  %v46 = vld [vmem:[%s0 + $0xf8] sm:$0xff]
  %v47 = vld [vmem:[%s0 + $0x100] sm:$0xff]
  %v48 = vld [vmem:[%s0 + $0x108] sm:$0xff]
  %v49 = vld [vmem:[%s0 + $0x110] sm:$0xff]
  %v50 = vld [vmem:[%s0 + $0x118] sm:$0xff]
  %v51 = vld [vmem:[%s0 + $0x120] sm:$0xff]
  %v52 = vld [vmem:[%s0 + $0x128] sm:$0xff]
  %v53 = vld [vmem:[%s0 + $0x130] sm:$0xff]
  %v54 = vld [vmem:[%s0 + $0x138] sm:$0xff]
  %v55 = vld [vmem:[%s0 + $0x140] sm:$0xff]
  %v56 = vld [vmem:[%s0 + $0x148] sm:$0xff]
  %v57 = vld [vmem:[%s0 + $0x150] sm:$0xff]
  %v58 = vld [vmem:[%s0 + $0x158] sm:$0xff]
  %v59 = vld [vmem:[%s0 + $0x160] sm:$0xff]
  %v60 = vld [vmem:[%s0 + $0x168] sm:$0xff]
  %v61 = vld [vmem:[%s0 + $0x170] sm:$0xff]
  %v62 = vld [vmem:[%s0 + $0x178] sm:$0xff]
  %v63 = vld [vmem:[%s0 + $0x180] sm:$0xff]
  %v64 = vld [vmem:[%s0 + $0x188] sm:$0xff]
  %v65 = vld [vmem:[%s0 + $0x190] sm:$0xff]
  %v66 = vld [vmem:[%s0 + $0x198] sm:$0xff]
  %v67 = vld [vmem:[%s0 + $0x1a0] sm:$0xff]
  %v68 = vld [vmem:[%s0 + $0x1a8] sm:$0xff]
  %v69 = vld [vmem:[%s0 + $0x1b0] sm:$0xff]
  %v70 = vld [vmem:[%s0 + $0x1b8] sm:$0xff]
  %v71 = vld [vmem:[%s0 + $0x1c0] sm:$0xff]
  %v72 = vld [vmem:[%s0 + $0x1c8] sm:$0xff]
  %v73 = vld [vmem:[%s0 + $0x1d0] sm:$0xff]
  %v74 = vld [vmem:[%s0 + $0x1d8] sm:$0xff]
  %v75 = vld [vmem:[%s0 + $0x1e0] sm:$0xff]
  %v76 = vld [vmem:[%s0 + $0x1e8] sm:$0xff]
  %v77 = vld [vmem:[%s0 + $0x1f0] sm:$0xff]
  %v78 = vld [vmem:[%s0 + $0x1f8] sm:$0xff]
  %v79 = vld [vmem:[%s1] sm:$0xf]
  %v80 = vld [vmem:[%s1 + $0x4] sm:$0xf]
  %v81 = vld [vmem:[%s1 + $0x8] sm:$0xf]
  %v82 = vld [vmem:[%s1 + $0xc] sm:$0xf]
  %v83 = vld [vmem:[%s1 + $0x10] sm:$0xf]
  %v84 = vld [vmem:[%s1 + $0x14] sm:$0xf]
  %v85 = vld [vmem:[%s1 + $0x18] sm:$0xf]
  %v86 = vld [vmem:[%s1 + $0x1c] sm:$0xf]
  %v87 = vld [vmem:[%s1 + $0x20] sm:$0xf]
  %v88 = vld [vmem:[%s1 + $0x24] sm:$0xf]
  %v89 = vld [vmem:[%s1 + $0x28] sm:$0xf]
  %v90 = vld [vmem:[%s1 + $0x2c] sm:$0xf]
  %v91 = vld [vmem:[%s1 + $0x30] sm:$0xf]
  %v92 = vld [vmem:[%s1 + $0x34] sm:$0xf]
  %v93 = vld [vmem:[%s1 + $0x38] sm:$0xf]
  %v94 = vld [vmem:[%s1 + $0x3c] sm:$0xf]
  %v95 = vld [vmem:[%s1 + $0x40] sm:$0xf]
  %v96 = vld [vmem:[%s1 + $0x44] sm:$0xf]
  %v97 = vld [vmem:[%s1 + $0x48] sm:$0x3]
  %v98 = vld [vmem:[%s2] sm:$0x1]
  %v100 = vlaneseq
  %v101 = vshrl.u32 %v100, 7
  %v102 = vsub.s32 0, %v101
  %v103 = vrot.slane %v98, %v102
  %v169 = vunpack.c.l.b16 %v15
  %v170 = vunpack.c.h.b16 %v15
  %v171 = vunpack.c.l.b16 %v16
  %v172 = vunpack.c.h.b16 %v16
  %v173 = vunpack.c.l.b16 %v17
  %v174 = vunpack.c.h.b16 %v17
  %v175 = vunpack.c.l.b16 %v18
  %v176 = vunpack.c.h.b16 %v18
  %v177 = vunpack.c.l.b16 %v19
  %v178 = vunpack.c.h.b16 %v19
  %v179 = vunpack.c.l.b16 %v20
  %v180 = vunpack.c.h.b16 %v20
  %v181 = vunpack.c.l.b16 %v21
  %v182 = vunpack.c.h.b16 %v21
  %v183 = vunpack.c.l.b16 %v22
  %v184 = vunpack.c.h.b16 %v22
  %v185 = vunpack.c.l.b16 %v23
  %v186 = vunpack.c.h.b16 %v23
  %v187 = vunpack.c.l.b16 %v24
  %v188 = vunpack.c.h.b16 %v24
  %v189 = vunpack.c.l.b16 %v25
  %v190 = vunpack.c.h.b16 %v25
  %v191 = vunpack.c.l.b16 %v26
  %v192 = vunpack.c.h.b16 %v26
  %v193 = vunpack.c.l.b16 %v27
  %v194 = vunpack.c.h.b16 %v27
  %v195 = vunpack.c.l.b16 %v28
  %v196 = vunpack.c.h.b16 %v28
  %v197 = vunpack.c.l.b16 %v29
  %v198 = vunpack.c.h.b16 %v29
  %v199 = vunpack.c.l.b16 %v30
  %v200 = vunpack.c.h.b16 %v30
  %v201 = vunpack.c.l.b16 %v31
  %v202 = vunpack.c.h.b16 %v31
  %v203 = vunpack.c.l.b16 %v32
  %v204 = vunpack.c.h.b16 %v32
  %v205 = vunpack.c.l.b16 %v33
  %v206 = vunpack.c.h.b16 %v33
  %v207 = vunpack.c.l.b16 %v34
  %v208 = vunpack.c.h.b16 %v34
  %v209 = vunpack.c.l.b16 %v35
  %v210 = vunpack.c.h.b16 %v35
  %v211 = vunpack.c.l.b16 %v36
  %v212 = vunpack.c.h.b16 %v36
  %v213 = vunpack.c.l.b16 %v37
  %v214 = vunpack.c.h.b16 %v37
  %v215 = vunpack.c.l.b16 %v38
  %v216 = vunpack.c.h.b16 %v38
  %v217 = vunpack.c.l.b16 %v39
  %v218 = vunpack.c.h.b16 %v39
  %v219 = vunpack.c.l.b16 %v40
  %v220 = vunpack.c.h.b16 %v40
  %v221 = vunpack.c.l.b16 %v41
  %v222 = vunpack.c.h.b16 %v41
  %v223 = vunpack.c.l.b16 %v42
  %v224 = vunpack.c.h.b16 %v42
  %v225 = vunpack.c.l.b16 %v43
  %v226 = vunpack.c.h.b16 %v43
  %v227 = vunpack.c.l.b16 %v44
  %v228 = vunpack.c.h.b16 %v44
  %v229 = vunpack.c.l.b16 %v45
  %v230 = vunpack.c.h.b16 %v45
  %v231 = vunpack.c.l.b16 %v46
  %v232 = vunpack.c.h.b16 %v46
  %v233 = vunpack.c.l.b16 %v47
  %v234 = vunpack.c.h.b16 %v47
  %v235 = vunpack.c.l.b16 %v48
  %v236 = vunpack.c.h.b16 %v48
  %v237 = vunpack.c.l.b16 %v49
  %v238 = vunpack.c.h.b16 %v49
  %v239 = vunpack.c.l.b16 %v50
  %v240 = vunpack.c.h.b16 %v50
  %v241 = vunpack.c.l.b16 %v51
  %v242 = vunpack.c.h.b16 %v51
  %v243 = vunpack.c.l.b16 %v52
  %v244 = vunpack.c.h.b16 %v52
  %v245 = vunpack.c.l.b16 %v53
  %v246 = vunpack.c.h.b16 %v53
  %v247 = vunpack.c.l.b16 %v54
  %v248 = vunpack.c.h.b16 %v54
  %v249 = vunpack.c.l.b16 %v55
  %v250 = vunpack.c.h.b16 %v55
  %v251 = vunpack.c.l.b16 %v56
  %v252 = vunpack.c.h.b16 %v56
  %v253 = vunpack.c.l.b16 %v57
  %v254 = vunpack.c.h.b16 %v57
  %v255 = vunpack.c.l.b16 %v58
  %v256 = vunpack.c.h.b16 %v58
  %v257 = vunpack.c.l.b16 %v59
  %v258 = vunpack.c.h.b16 %v59
  %v259 = vunpack.c.l.b16 %v60
  %v260 = vunpack.c.h.b16 %v60
  %v261 = vunpack.c.l.b16 %v61
  %v262 = vunpack.c.h.b16 %v61
  %v263 = vunpack.c.l.b16 %v62
  %v264 = vunpack.c.h.b16 %v62
  %v265 = vunpack.c.l.b16 %v63
  %v266 = vunpack.c.h.b16 %v63
  %v267 = vunpack.c.l.b16 %v64
  %v268 = vunpack.c.h.b16 %v64
  %v269 = vunpack.c.l.b16 %v65
  %v270 = vunpack.c.h.b16 %v65
  %v271 = vunpack.c.l.b16 %v66
  %v272 = vunpack.c.h.b16 %v66
  %v273 = vunpack.c.l.b16 %v67
  %v274 = vunpack.c.h.b16 %v67
  %v275 = vunpack.c.l.b16 %v68
  %v276 = vunpack.c.h.b16 %v68
  %v277 = vunpack.c.l.b16 %v69
  %v278 = vunpack.c.h.b16 %v69
  %v279 = vunpack.c.l.b16 %v70
  %v280 = vunpack.c.h.b16 %v70
  %v281 = vunpack.c.l.b16 %v71
  %v282 = vunpack.c.h.b16 %v71
  %v283 = vunpack.c.l.b16 %v72
  %v284 = vunpack.c.h.b16 %v72
  %v285 = vunpack.c.l.b16 %v73
  %v286 = vunpack.c.h.b16 %v73
  %v287 = vunpack.c.l.b16 %v74
  %v288 = vunpack.c.h.b16 %v74
  %v289 = vunpack.c.l.b16 %v75
  %v290 = vunpack.c.h.b16 %v75
  %v291 = vunpack.c.l.b16 %v76
  %v292 = vunpack.c.h.b16 %v76
  %v293 = vunpack.c.l.b16 %v77
  %v294 = vunpack.c.h.b16 %v77
  %v295 = vunpack.c.l.b16 %v78
  %v296 = vunpack.c.h.b16 %v78
  %v297 = vpack.c.b16 %v171, %v169
  %v298 = vpack.c.b16 %v172, %v170
  %v299 = vpack.c.b16 %v175, %v173
  %v300 = vpack.c.b16 %v176, %v174
  %v301 = vpack.c.b16 %v179, %v177
  %v302 = vpack.c.b16 %v180, %v178
  %v303 = vpack.c.b16 %v183, %v181
  %v304 = vpack.c.b16 %v184, %v182
  %v305 = vpack.c.b16 %v187, %v185
  %v306 = vpack.c.b16 %v188, %v186
  %v307 = vpack.c.b16 %v191, %v189
  %v308 = vpack.c.b16 %v192, %v190
  %v309 = vpack.c.b16 %v195, %v193
  %v310 = vpack.c.b16 %v196, %v194
  %v311 = vpack.c.b16 %v199, %v197
  %v312 = vpack.c.b16 %v200, %v198
  %v313 = vpack.c.b16 %v203, %v201
  %v314 = vpack.c.b16 %v204, %v202
  %v315 = vpack.c.b16 %v207, %v205
  %v316 = vpack.c.b16 %v208, %v206
  %v317 = vpack.c.b16 %v211, %v209
  %v318 = vpack.c.b16 %v212, %v210
  %v319 = vpack.c.b16 %v215, %v213
  %v320 = vpack.c.b16 %v216, %v214
  %v321 = vpack.c.b16 %v219, %v217
  %v322 = vpack.c.b16 %v220, %v218
  %v323 = vpack.c.b16 %v223, %v221
  %v324 = vpack.c.b16 %v224, %v222
  %v325 = vpack.c.b16 %v227, %v225
  %v326 = vpack.c.b16 %v228, %v226
  %v327 = vpack.c.b16 %v231, %v229
  %v328 = vpack.c.b16 %v232, %v230
  %v329 = vpack.c.b16 %v235, %v233
  %v330 = vpack.c.b16 %v236, %v234
  %v331 = vpack.c.b16 %v239, %v237
  %v332 = vpack.c.b16 %v240, %v238
  %v333 = vpack.c.b16 %v243, %v241
  %v334 = vpack.c.b16 %v244, %v242
  %v335 = vpack.c.b16 %v247, %v245
  %v336 = vpack.c.b16 %v248, %v246
  %v337 = vpack.c.b16 %v251, %v249
  %v338 = vpack.c.b16 %v252, %v250
  %v339 = vpack.c.b16 %v255, %v253
  %v340 = vpack.c.b16 %v256, %v254
  %v341 = vpack.c.b16 %v259, %v257
  %v342 = vpack.c.b16 %v260, %v258
  %v343 = vpack.c.b16 %v263, %v261
  %v344 = vpack.c.b16 %v264, %v262
  %v345 = vpack.c.b16 %v267, %v265
  %v346 = vpack.c.b16 %v268, %v266
  %v347 = vpack.c.b16 %v271, %v269
  %v348 = vpack.c.b16 %v272, %v270
  %v349 = vpack.c.b16 %v275, %v273
  %v350 = vpack.c.b16 %v276, %v274
  %v351 = vpack.c.b16 %v279, %v277
  %v352 = vpack.c.b16 %v280, %v278
  %v353 = vpack.c.b16 %v283, %v281
  %v354 = vpack.c.b16 %v284, %v282
  %v355 = vpack.c.b16 %v287, %v285
  %v356 = vpack.c.b16 %v288, %v286
  %v357 = vpack.c.b16 %v291, %v289
  %v358 = vpack.c.b16 %v292, %v290
  %v359 = vpack.c.b16 %v295, %v293
  %v360 = vpack.c.b16 %v296, %v294
  %v412 = vunpack.c.l.b16 %v79
  %v413 = vunpack.c.l.b16 %v80
  %v414 = vunpack.c.l.b16 %v81
  %v415 = vunpack.c.l.b16 %v82
  %v416 = vunpack.c.l.b16 %v83
  %v417 = vunpack.c.l.b16 %v84
  %v418 = vunpack.c.l.b16 %v85
  %v419 = vunpack.c.l.b16 %v86
  %v420 = vunpack.c.l.b16 %v87
  %v421 = vunpack.c.l.b16 %v88
  %v422 = vunpack.c.l.b16 %v89
  %v423 = vunpack.c.l.b16 %v90
  %v424 = vunpack.c.l.b16 %v91
  %v425 = vunpack.c.l.b16 %v92
  %v426 = vunpack.c.l.b16 %v93
  %v427 = vunpack.c.l.b16 %v94
  %v428 = vunpack.c.l.b16 %v95
  %v429 = vunpack.c.l.b16 %v96
  %v430 = vunpack.c.l.b16 %v97
  %v431 = vpack.c.b16 %v413, %v412
  %v432 = vpack.c.b16 %v415, %v414
  %v433 = vpack.c.b16 %v417, %v416
  %v434 = vpack.c.b16 %v419, %v418
  %v435 = vpack.c.b16 %v421, %v420
  %v436 = vpack.c.b16 %v423, %v422
  %v437 = vpack.c.b16 %v425, %v424
  %v438 = vpack.c.b16 %v427, %v426
  %v439 = vpack.c.b16 %v429, %v428
  %v440 = vpack.c.b16 %v430, %v430
  %vm450 = vcmask 154624
  %v452 = vsel %vm450, %v298, 0
  %v455 = vsel %vm450, %v300, 0
  %v458 = vsel %vm450, %v302, 0
  %v461 = vsel %vm450, %v304, 0
  %v464 = vsel %vm450, %v306, 0
  %v467 = vsel %vm450, %v308, 0
  %v470 = vsel %vm450, %v310, 0
  %v473 = vsel %vm450, %v312, 0
  %v476 = vsel %vm450, %v314, 0
  %v479 = vsel %vm450, %v316, 0
  %v482 = vsel %vm450, %v318, 0
  %v485 = vsel %vm450, %v320, 0
  %v488 = vsel %vm450, %v322, 0
  %v491 = vsel %vm450, %v324, 0
  %v494 = vsel %vm450, %v326, 0
  %v497 = vsel %vm450, %v328, 0
  %v500 = vsel %vm450, %v330, 0
  %v503 = vsel %vm450, %v332, 0
  %v506 = vsel %vm450, %v334, 0
  %v509 = vsel %vm450, %v336, 0
  %v512 = vsel %vm450, %v338, 0
  %v515 = vsel %vm450, %v340, 0
  %v518 = vsel %vm450, %v342, 0
  %v521 = vsel %vm450, %v344, 0
  %v524 = vsel %vm450, %v346, 0
  %v527 = vsel %vm450, %v348, 0
  %v530 = vsel %vm450, %v350, 0
  %v533 = vsel %vm450, %v352, 0
  %v536 = vsel %vm450, %v354, 0
  %v539 = vsel %vm450, %v356, 0
  %v542 = vsel %vm450, %v358, 0
  %v545 = vsel %vm450, %v360, 0
  %vm547 = vcmask 1040384
  %vm548 = vcmask 1041408
  %v549 = vsel %vm547, 4294967295, 65535
  %v550 = vsel %vm548, %v549, 0
  %v552 = vand.u32 %v440, %v550
  %554 = vmatprep.subr.bf16.mxu0 0
  %555 = vmatpush1.bf16.msra.mxu0 %v431
  %556 = vmatprep.subr.bf16.mxu0 0
  %557 = vmatpush1.bf16.msra.mxu0 %v432
  %558 = vmatprep.subr.bf16.mxu0 0
  %559 = vmatpush1.bf16.msra.mxu0 %v433
  %560 = vmatprep.subr.bf16.mxu0 0
  %561 = vmatpush1.bf16.msra.mxu0 %v434
  %562 = vmatprep.subr.bf16.mxu0 0
  %563 = vmatpush1.bf16.msra.mxu0 %v435
  %564 = vmatprep.subr.bf16.mxu0 0
  %565 = vmatpush1.bf16.msra.mxu0 %v436
  %566 = vmatprep.subr.bf16.mxu0 0
  %567 = vmatpush1.bf16.msra.mxu0 %v437
  %568 = vmatprep.subr.bf16.mxu0 0
  %569 = vmatpush1.bf16.msra.mxu0 %v438
  %570 = vmatprep.subr.bf16.mxu0 0
  %571 = vmatpush1.bf16.msra.mxu0 %v439
  %572 = vmatprep.subr.bf16.mxu0 0
  %573 = vmatpush1.bf16.msra.mxu0 %v552
  %574 = vmatprep.subr.bf16.mxu0 0
  %575 = vmatpush1.bf16.msra.mxu0 0
  %576 = vmatprep.subr.bf16.mxu0 0
  %577 = vmatpush1.bf16.msra.mxu0 0
  %578 = vmatprep.subr.bf16.mxu0 0
  %579 = vmatpush1.bf16.msra.mxu0 0
  %580 = vmatprep.subr.bf16.mxu0 0
  %581 = vmatpush1.bf16.msra.mxu0 0
  %582 = vmatprep.subr.bf16.mxu0 0
  %583 = vmatpush1.bf16.msra.mxu0 0
  %584 = vmatprep.subr.bf16.mxu0 0
  %585 = vmatpush1.bf16.msra.mxu0 0
  %586 = vmatprep.mubr.bf16.mxu0 %v452
  %587 = vmatmul.mubr.bf16.gmra.mrb[0].mxu0 %v297
  %v588 = vpop.f32.mrb[0].mxu0
  %v589 = vadd.f32 %v103, %v588
  %v590 = vpop.f32.mrb[0].mxu0
  %v591 = vpop.f32.mrb[0].mxu0
  %v592 = vadd.f32 %v103, %v591
  %v593 = vpop.f32.mrb[0].mxu0
  %594 = vmatprep.mubr.bf16.mxu0 %v455
  %595 = vmatmul.mubr.bf16.gmra.mrb[0].mxu0 %v299
  %v596 = vpop.f32.mrb[0].mxu0
  %v597 = vadd.f32 %v103, %v596
  %v598 = vpop.f32.mrb[0].mxu0
  %v599 = vpop.f32.mrb[0].mxu0
  %v600 = vadd.f32 %v103, %v599
  %v601 = vpop.f32.mrb[0].mxu0
  %602 = vmatprep.mubr.bf16.mxu0 %v458
  %603 = vmatmul.mubr.bf16.gmra.mrb[0].mxu0 %v301
  %v604 = vpop.f32.mrb[0].mxu0
  %v605 = vadd.f32 %v103, %v604
  %v606 = vpop.f32.mrb[0].mxu0
  %v607 = vpop.f32.mrb[0].mxu0
  %v608 = vadd.f32 %v103, %v607
  %v609 = vpop.f32.mrb[0].mxu0
  %610 = vmatprep.mubr.bf16.mxu0 %v461
  %611 = vmatmul.mubr.bf16.gmra.mrb[0].mxu0 %v303
  %v612 = vpop.f32.mrb[0].mxu0
  %v613 = vadd.f32 %v103, %v612
  %v614 = vpop.f32.mrb[0].mxu0
  %v615 = vpop.f32.mrb[0].mxu0
  %v616 = vadd.f32 %v103, %v615
  %v617 = vpop.f32.mrb[0].mxu0
  %618 = vmatprep.mubr.bf16.mxu0 %v464
  %619 = vmatmul.mubr.bf16.gmra.mrb[0].mxu0 %v305
  %v620 = vpop.f32.mrb[0].mxu0
  %v621 = vadd.f32 %v103, %v620
  %v622 = vpop.f32.mrb[0].mxu0
  %v623 = vpop.f32.mrb[0].mxu0
  %v624 = vadd.f32 %v103, %v623
  %v625 = vpop.f32.mrb[0].mxu0
  %626 = vmatprep.mubr.bf16.mxu0 %v467
  %627 = vmatmul.mubr.bf16.gmra.mrb[0].mxu0 %v307
  %v628 = vpop.f32.mrb[0].mxu0
  %v629 = vadd.f32 %v103, %v628
  %v630 = vpop.f32.mrb[0].mxu0
  %v631 = vpop.f32.mrb[0].mxu0
  %v632 = vadd.f32 %v103, %v631
  %v633 = vpop.f32.mrb[0].mxu0
  %634 = vmatprep.mubr.bf16.mxu0 %v470
  %635 = vmatmul.mubr.bf16.gmra.mrb[0].mxu0 %v309
  %v636 = vpop.f32.mrb[0].mxu0
  %v637 = vadd.f32 %v103, %v636
  %v638 = vpop.f32.mrb[0].mxu0
  %v639 = vpop.f32.mrb[0].mxu0
  %v640 = vadd.f32 %v103, %v639
  %v641 = vpop.f32.mrb[0].mxu0
  %642 = vmatprep.mubr.bf16.mxu0 %v473
  %643 = vmatmul.mubr.bf16.gmra.mrb[0].mxu0 %v311
  %v644 = vpop.f32.mrb[0].mxu0
  %v645 = vadd.f32 %v103, %v644
  %v646 = vpop.f32.mrb[0].mxu0
  %v647 = vpop.f32.mrb[0].mxu0
  %v648 = vadd.f32 %v103, %v647
  %v649 = vpop.f32.mrb[0].mxu0
  %650 = vmatprep.mubr.bf16.mxu0 %v476
  %651 = vmatmul.mubr.bf16.gmra.mrb[0].mxu0 %v313
  %v652 = vpop.f32.mrb[0].mxu0
  %v653 = vadd.f32 %v103, %v652
  %v654 = vpop.f32.mrb[0].mxu0
  %v655 = vpop.f32.mrb[0].mxu0
  %v656 = vadd.f32 %v103, %v655
  %v657 = vpop.f32.mrb[0].mxu0
  %658 = vmatprep.mubr.bf16.mxu0 %v479
  %659 = vmatmul.mubr.bf16.gmra.mrb[0].mxu0 %v315
  %v660 = vpop.f32.mrb[0].mxu0
  %v661 = vadd.f32 %v103, %v660
  %v662 = vpop.f32.mrb[0].mxu0
  %v663 = vpop.f32.mrb[0].mxu0
  %v664 = vadd.f32 %v103, %v663
  %v665 = vpop.f32.mrb[0].mxu0
  %666 = vmatprep.mubr.bf16.mxu0 %v482
  %667 = vmatmul.mubr.bf16.gmra.mrb[0].mxu0 %v317
  %v668 = vpop.f32.mrb[0].mxu0
  %v669 = vadd.f32 %v103, %v668
  %v670 = vpop.f32.mrb[0].mxu0
  %v671 = vpop.f32.mrb[0].mxu0
  %v672 = vadd.f32 %v103, %v671
  %v673 = vpop.f32.mrb[0].mxu0
  %674 = vmatprep.mubr.bf16.mxu0 %v485
  %675 = vmatmul.mubr.bf16.gmra.mrb[0].mxu0 %v319
  %v676 = vpop.f32.mrb[0].mxu0
  %v677 = vadd.f32 %v103, %v676
  %v678 = vpop.f32.mrb[0].mxu0
  %v679 = vpop.f32.mrb[0].mxu0
  %v680 = vadd.f32 %v103, %v679
  %v681 = vpop.f32.mrb[0].mxu0
  %682 = vmatprep.mubr.bf16.mxu0 %v488
  %683 = vmatmul.mubr.bf16.gmra.mrb[0].mxu0 %v321
  %v684 = vpop.f32.mrb[0].mxu0
  %v685 = vadd.f32 %v103, %v684
  %v686 = vpop.f32.mrb[0].mxu0
  %v687 = vpop.f32.mrb[0].mxu0
  %v688 = vadd.f32 %v103, %v687
  %v689 = vpop.f32.mrb[0].mxu0
  %690 = vmatprep.mubr.bf16.mxu0 %v491
  %691 = vmatmul.mubr.bf16.gmra.mrb[0].mxu0 %v323
  %v692 = vpop.f32.mrb[0].mxu0
  %v693 = vadd.f32 %v103, %v692
  %v694 = vpop.f32.mrb[0].mxu0
  %v695 = vpop.f32.mrb[0].mxu0
  %v696 = vadd.f32 %v103, %v695
  %v697 = vpop.f32.mrb[0].mxu0
  %698 = vmatprep.mubr.bf16.mxu0 %v494
  %699 = vmatmul.mubr.bf16.gmra.mrb[0].mxu0 %v325
  %v700 = vpop.f32.mrb[0].mxu0
  %v701 = vadd.f32 %v103, %v700
  %v702 = vpop.f32.mrb[0].mxu0
  %v703 = vpop.f32.mrb[0].mxu0
  %v704 = vadd.f32 %v103, %v703
  %v705 = vpop.f32.mrb[0].mxu0
  %706 = vmatprep.mubr.bf16.mxu0 %v497
  %707 = vmatmul.mubr.bf16.gmra.mrb[0].mxu0 %v327
  %v708 = vpop.f32.mrb[0].mxu0
  %v709 = vadd.f32 %v103, %v708
  %v710 = vpop.f32.mrb[0].mxu0
  %v711 = vpop.f32.mrb[0].mxu0
  %v712 = vadd.f32 %v103, %v711
  %v713 = vpop.f32.mrb[0].mxu0
  %714 = vmatprep.mubr.bf16.mxu0 %v500
  %715 = vmatmul.mubr.bf16.gmra.mrb[0].mxu0 %v329
  %v716 = vpop.f32.mrb[0].mxu0
  %v717 = vadd.f32 %v103, %v716
  %v718 = vpop.f32.mrb[0].mxu0
  %v719 = vpop.f32.mrb[0].mxu0
  %v720 = vadd.f32 %v103, %v719
  %v721 = vpop.f32.mrb[0].mxu0
  %722 = vmatprep.mubr.bf16.mxu0 %v503
  %723 = vmatmul.mubr.bf16.gmra.mrb[0].mxu0 %v331
  %v724 = vpop.f32.mrb[0].mxu0
  %v725 = vadd.f32 %v103, %v724
  %v726 = vpop.f32.mrb[0].mxu0
  %v727 = vpop.f32.mrb[0].mxu0
  %v728 = vadd.f32 %v103, %v727
  %v729 = vpop.f32.mrb[0].mxu0
  %730 = vmatprep.mubr.bf16.mxu0 %v506
  %731 = vmatmul.mubr.bf16.gmra.mrb[0].mxu0 %v333
  %v732 = vpop.f32.mrb[0].mxu0
  %v733 = vadd.f32 %v103, %v732
  %v734 = vpop.f32.mrb[0].mxu0
  %v735 = vpop.f32.mrb[0].mxu0
  %v736 = vadd.f32 %v103, %v735
  %v737 = vpop.f32.mrb[0].mxu0
  %738 = vmatprep.mubr.bf16.mxu0 %v509
  %739 = vmatmul.mubr.bf16.gmra.mrb[0].mxu0 %v335
  %v740 = vpop.f32.mrb[0].mxu0
  %v741 = vadd.f32 %v103, %v740
  %v742 = vpop.f32.mrb[0].mxu0
  %v743 = vpop.f32.mrb[0].mxu0
  %v744 = vadd.f32 %v103, %v743
  %v745 = vpop.f32.mrb[0].mxu0
  %746 = vmatprep.mubr.bf16.mxu0 %v512
  %747 = vmatmul.mubr.bf16.gmra.mrb[0].mxu0 %v337
  %v748 = vpop.f32.mrb[0].mxu0
  %v749 = vadd.f32 %v103, %v748
  %v750 = vpop.f32.mrb[0].mxu0
  %v751 = vpop.f32.mrb[0].mxu0
  %v752 = vadd.f32 %v103, %v751
  %v753 = vpop.f32.mrb[0].mxu0
  %754 = vmatprep.mubr.bf16.mxu0 %v515
  %755 = vmatmul.mubr.bf16.gmra.mrb[0].mxu0 %v339
  %v756 = vpop.f32.mrb[0].mxu0
  %v757 = vadd.f32 %v103, %v756
  %v758 = vpop.f32.mrb[0].mxu0
  %v759 = vpop.f32.mrb[0].mxu0
  %v760 = vadd.f32 %v103, %v759
  %v761 = vpop.f32.mrb[0].mxu0
  %762 = vmatprep.mubr.bf16.mxu0 %v518
  %763 = vmatmul.mubr.bf16.gmra.mrb[0].mxu0 %v341
  %v764 = vpop.f32.mrb[0].mxu0
  %v765 = vadd.f32 %v103, %v764
  %v766 = vpop.f32.mrb[0].mxu0
  %v767 = vpop.f32.mrb[0].mxu0
  %v768 = vadd.f32 %v103, %v767
  %v769 = vpop.f32.mrb[0].mxu0
  %770 = vmatprep.mubr.bf16.mxu0 %v521
  %771 = vmatmul.mubr.bf16.gmra.mrb[0].mxu0 %v343
  %v772 = vpop.f32.mrb[0].mxu0
  %v773 = vadd.f32 %v103, %v772
  %v774 = vpop.f32.mrb[0].mxu0
  %v775 = vpop.f32.mrb[0].mxu0
  %v776 = vadd.f32 %v103, %v775
  %v777 = vpop.f32.mrb[0].mxu0
  %778 = vmatprep.mubr.bf16.mxu0 %v524
  %779 = vmatmul.mubr.bf16.gmra.mrb[0].mxu0 %v345
  %v780 = vpop.f32.mrb[0].mxu0
  %v781 = vadd.f32 %v103, %v780
  %v782 = vpop.f32.mrb[0].mxu0
  %v783 = vpop.f32.mrb[0].mxu0
  %v784 = vadd.f32 %v103, %v783
  %v785 = vpop.f32.mrb[0].mxu0
  %786 = vmatprep.mubr.bf16.mxu0 %v527
  %787 = vmatmul.mubr.bf16.gmra.mrb[0].mxu0 %v347
  %v788 = vpop.f32.mrb[0].mxu0
  %v789 = vadd.f32 %v103, %v788
  %v790 = vpop.f32.mrb[0].mxu0
  %v791 = vpop.f32.mrb[0].mxu0
  %v792 = vadd.f32 %v103, %v791
  %v793 = vpop.f32.mrb[0].mxu0
  %794 = vmatprep.mubr.bf16.mxu0 %v530
  %795 = vmatmul.mubr.bf16.gmra.mrb[0].mxu0 %v349
  %v796 = vpop.f32.mrb[0].mxu0
  %v797 = vadd.f32 %v103, %v796
  %v798 = vpop.f32.mrb[0].mxu0
  %v799 = vpop.f32.mrb[0].mxu0
  %v800 = vadd.f32 %v103, %v799
  %v801 = vpop.f32.mrb[0].mxu0
  %802 = vmatprep.mubr.bf16.mxu0 %v533
  %803 = vmatmul.mubr.bf16.gmra.mrb[0].mxu0 %v351
  %v804 = vpop.f32.mrb[0].mxu0
  %v805 = vadd.f32 %v103, %v804
  %v806 = vpop.f32.mrb[0].mxu0
  %v807 = vpop.f32.mrb[0].mxu0
  %v808 = vadd.f32 %v103, %v807
  %v809 = vpop.f32.mrb[0].mxu0
  %810 = vmatprep.mubr.bf16.mxu0 %v536
  %811 = vmatmul.mubr.bf16.gmra.mrb[0].mxu0 %v353
  %v812 = vpop.f32.mrb[0].mxu0
  %v813 = vadd.f32 %v103, %v812
  %v814 = vpop.f32.mrb[0].mxu0
  %v815 = vpop.f32.mrb[0].mxu0
  %v816 = vadd.f32 %v103, %v815
  %v817 = vpop.f32.mrb[0].mxu0
  %818 = vmatprep.mubr.bf16.mxu0 %v539
  %819 = vmatmul.mubr.bf16.gmra.mrb[0].mxu0 %v355
  %v820 = vpop.f32.mrb[0].mxu0
  %v821 = vadd.f32 %v103, %v820
  %v822 = vpop.f32.mrb[0].mxu0
  %v823 = vpop.f32.mrb[0].mxu0
  %v824 = vadd.f32 %v103, %v823
  %v825 = vpop.f32.mrb[0].mxu0
  %826 = vmatprep.mubr.bf16.mxu0 %v542
  %827 = vmatmul.mubr.bf16.gmra.mrb[0].mxu0 %v357
  %v828 = vpop.f32.mrb[0].mxu0
  %v829 = vadd.f32 %v103, %v828
  %v830 = vpop.f32.mrb[0].mxu0
  %v831 = vpop.f32.mrb[0].mxu0
  %v832 = vadd.f32 %v103, %v831
  %v833 = vpop.f32.mrb[0].mxu0
  %834 = vmatprep.mubr.bf16.mxu0 %v545
  %835 = vmatmul.mubr.bf16.gmra.mrb[0].mxu0 %v359
  %v836 = vpop.f32.mrb[0].mxu0
  %v837 = vadd.f32 %v103, %v836
  %v838 = vpop.f32.mrb[0].mxu0
  %v839 = vpop.f32.mrb[0].mxu0
  %v840 = vadd.f32 %v103, %v839
  %v841 = vpop.f32.mrb[0].mxu0
  %842 = vdwg.mxu0
  %843 = vst [vmem:[%s3] sm:$0xff] %v589
  %844 = vst [vmem:[%s3 + $0x8] sm:$0xff] %v592
  %845 = vst [vmem:[%s3 + $0x10] sm:$0xff] %v597
  %846 = vst [vmem:[%s3 + $0x18] sm:$0xff] %v600
  %847 = vst [vmem:[%s3 + $0x20] sm:$0xff] %v605
  %848 = vst [vmem:[%s3 + $0x28] sm:$0xff] %v608
  %849 = vst [vmem:[%s3 + $0x30] sm:$0xff] %v613
  %850 = vst [vmem:[%s3 + $0x38] sm:$0xff] %v616
  %851 = vst [vmem:[%s3 + $0x40] sm:$0xff] %v621
  %852 = vst [vmem:[%s3 + $0x48] sm:$0xff] %v624
  %853 = vst [vmem:[%s3 + $0x50] sm:$0xff] %v629
  %854 = vst [vmem:[%s3 + $0x58] sm:$0xff] %v632
  %855 = vst [vmem:[%s3 + $0x60] sm:$0xff] %v637
  %856 = vst [vmem:[%s3 + $0x68] sm:$0xff] %v640
  %857 = vst [vmem:[%s3 + $0x70] sm:$0xff] %v645
  %858 = vst [vmem:[%s3 + $0x78] sm:$0xff] %v648
  %859 = vst [vmem:[%s3 + $0x80] sm:$0xff] %v653
  %860 = vst [vmem:[%s3 + $0x88] sm:$0xff] %v656
  %861 = vst [vmem:[%s3 + $0x90] sm:$0xff] %v661
  %862 = vst [vmem:[%s3 + $0x98] sm:$0xff] %v664
  %863 = vst [vmem:[%s3 + $0xa0] sm:$0xff] %v669
  %864 = vst [vmem:[%s3 + $0xa8] sm:$0xff] %v672
  %865 = vst [vmem:[%s3 + $0xb0] sm:$0xff] %v677
  %866 = vst [vmem:[%s3 + $0xb8] sm:$0xff] %v680
  %867 = vst [vmem:[%s3 + $0xc0] sm:$0xff] %v685
  %868 = vst [vmem:[%s3 + $0xc8] sm:$0xff] %v688
  %869 = vst [vmem:[%s3 + $0xd0] sm:$0xff] %v693
  %870 = vst [vmem:[%s3 + $0xd8] sm:$0xff] %v696
  %871 = vst [vmem:[%s3 + $0xe0] sm:$0xff] %v701
  %872 = vst [vmem:[%s3 + $0xe8] sm:$0xff] %v704
  %873 = vst [vmem:[%s3 + $0xf0] sm:$0xff] %v709
  %874 = vst [vmem:[%s3 + $0xf8] sm:$0xff] %v712
  %875 = vst [vmem:[%s3 + $0x100] sm:$0xff] %v717
  %876 = vst [vmem:[%s3 + $0x108] sm:$0xff] %v720
  %877 = vst [vmem:[%s3 + $0x110] sm:$0xff] %v725
  %878 = vst [vmem:[%s3 + $0x118] sm:$0xff] %v728
  %879 = vst [vmem:[%s3 + $0x120] sm:$0xff] %v733
  %880 = vst [vmem:[%s3 + $0x128] sm:$0xff] %v736
  %881 = vst [vmem:[%s3 + $0x130] sm:$0xff] %v741
  %882 = vst [vmem:[%s3 + $0x138] sm:$0xff] %v744
  %883 = vst [vmem:[%s3 + $0x140] sm:$0xff] %v749
  %884 = vst [vmem:[%s3 + $0x148] sm:$0xff] %v752
  %885 = vst [vmem:[%s3 + $0x150] sm:$0xff] %v757
  %886 = vst [vmem:[%s3 + $0x158] sm:$0xff] %v760
  %887 = vst [vmem:[%s3 + $0x160] sm:$0xff] %v765
  %888 = vst [vmem:[%s3 + $0x168] sm:$0xff] %v768
  %889 = vst [vmem:[%s3 + $0x170] sm:$0xff] %v773
  %890 = vst [vmem:[%s3 + $0x178] sm:$0xff] %v776
  %891 = vst [vmem:[%s3 + $0x180] sm:$0xff] %v781
  %892 = vst [vmem:[%s3 + $0x188] sm:$0xff] %v784
  %893 = vst [vmem:[%s3 + $0x190] sm:$0xff] %v789
  %894 = vst [vmem:[%s3 + $0x198] sm:$0xff] %v792
  %895 = vst [vmem:[%s3 + $0x1a0] sm:$0xff] %v797
  %896 = vst [vmem:[%s3 + $0x1a8] sm:$0xff] %v800
  %897 = vst [vmem:[%s3 + $0x1b0] sm:$0xff] %v805
  %898 = vst [vmem:[%s3 + $0x1b8] sm:$0xff] %v808
  %899 = vst [vmem:[%s3 + $0x1c0] sm:$0xff] %v813
  %900 = vst [vmem:[%s3 + $0x1c8] sm:$0xff] %v816
  %901 = vst [vmem:[%s3 + $0x1d0] sm:$0xff] %v821
  %902 = vst [vmem:[%s3 + $0x1d8] sm:$0xff] %v824
  %903 = vst [vmem:[%s3 + $0x1e0] sm:$0xff] %v829
  %904 = vst [vmem:[%s3 + $0x1e8] sm:$0xff] %v832
  %905 = vst [vmem:[%s3 + $0x1f0] sm:$0xff] %v837
  %906 = vst [vmem:[%s3 + $0x1f8] sm:$0xff] %v840
  // Predicated region
  $region14: #{resnet_generator_forward.19} parent=0 // pred_check
    _
  $region15: #{resnet_generator_forward.19} parent=0 // pred_check_branch
    %908 = sbr.rel (0) target = $region17
  $region16: #{resnet_generator_forward.19} parent=0 // pred_region
    _
  $region17: #{resnet_generator_forward.19} parent=0 // pred_fallthru
    _
  // Predicated region
  $region18: #{resnet_generator_forward.19} parent=0 // pred_check
    _
  $region19: #{resnet_generator_forward.19} parent=0 // pred_check_branch
    %910 = sbr.rel (0) target = $region21
  $region20: #{resnet_generator_forward.19} parent=0 // pred_region
    _
  $region21: #{resnet_generator_forward.19} parent=0 // pred_fallthru
    _

// kernel: resnet_generator_forward.21
$region0: #{resnet_generator_forward.21}
  #allocation0 [shape = 'u32[]', space=smem, size = 0x4, offset = 0x4, fixed_abs, tag = 'smem constant byte address 0x4 - core index']
  #allocation1 [shape = 'u32[144,128]{1,0:T(1,128)}', space=vmem, size = 0x12000, scoped, tag = 'internal scratch']
  %s0 = inlined_call_operand.vmem [shape: bf16[128,72], index: 0, kind: input, shape index: {}]
  %s1 = inlined_call_operand.vmem [shape: bf16[72,128], index: 1, kind: input, shape index: {}]
  %s2 = inlined_call_operand.vmem [shape: f32[1,128], index: 2, kind: input, shape index: {}]
  %s3 = inlined_call_operand.vmem [shape: f32[128,128], index: 3, kind: output, shape index: {}]
  %s4 = sld [smem:[#allocation0]]
  $region22: #{resnet_generator_forward.21} parent=0
    _
  %s6 = ssub.s32 1, %s4
  %s7 = scalar_select 0, %s6, %s4
  // Predicated region
  $region2: #{resnet_generator_forward.21} parent=0 // pred_check
    _
  $region3: #{resnet_generator_forward.21} parent=0 // pred_check_branch
    %9 = sbr.rel (0) target = $region5
  $region4: #{resnet_generator_forward.21} parent=0 // pred_region
    _
  $region5: #{resnet_generator_forward.21} parent=0 // pred_fallthru
    _
  // Predicated region
  $region6: #{resnet_generator_forward.21} parent=0 // pred_check
    _
  $region7: #{resnet_generator_forward.21} parent=0 // pred_check_branch
    %11 = sbr.rel (0) target = $region9
  $region8: #{resnet_generator_forward.21} parent=0 // pred_region
    _
  $region9: #{resnet_generator_forward.21} parent=0 // pred_fallthru
    _
  // Predicated region
  $region10: #{resnet_generator_forward.21} parent=0 // pred_check
    _
  $region11: #{resnet_generator_forward.21} parent=0 // pred_check_branch
    %13 = sbr.rel (0) target = $region13
  $region12: #{resnet_generator_forward.21} parent=0 // pred_region
    _
  $region13: #{resnet_generator_forward.21} parent=0 // pred_fallthru
    _
  %v15 = vld [vmem:[%s0] sm:$0xf]
  %v16 = vld [vmem:[%s0 + $0x4] sm:$0xf]
  %v17 = vld [vmem:[%s0 + $0x8] sm:$0xf]
  %v18 = vld [vmem:[%s0 + $0xc] sm:$0xf]
  %v19 = vld [vmem:[%s0 + $0x10] sm:$0xf]
  %v20 = vld [vmem:[%s0 + $0x14] sm:$0xf]
  %v21 = vld [vmem:[%s0 + $0x18] sm:$0xf]
  %v22 = vld [vmem:[%s0 + $0x1c] sm:$0xf]
  %v23 = vld [vmem:[%s0 + $0x20] sm:$0xf]
  %v24 = vld [vmem:[%s0 + $0x24] sm:$0xf]
  %v25 = vld [vmem:[%s0 + $0x28] sm:$0xf]
  %v26 = vld [vmem:[%s0 + $0x2c] sm:$0xf]
  %v27 = vld [vmem:[%s0 + $0x30] sm:$0xf]
  %v28 = vld [vmem:[%s0 + $0x34] sm:$0xf]
  %v29 = vld [vmem:[%s0 + $0x38] sm:$0xf]
  %v30 = vld [vmem:[%s0 + $0x3c] sm:$0xf]
  %v31 = vld [vmem:[%s1] sm:$0xf]
  %v32 = vld [vmem:[%s1 + $0x4] sm:$0xf]
  %v33 = vld [vmem:[%s1 + $0x8] sm:$0xf]
  %v34 = vld [vmem:[%s1 + $0xc] sm:$0xf]
  %v35 = vld [vmem:[%s1 + $0x10] sm:$0xf]
  %v36 = vld [vmem:[%s1 + $0x14] sm:$0xf]
  %v37 = vld [vmem:[%s1 + $0x18] sm:$0xf]
  %v38 = vld [vmem:[%s1 + $0x1c] sm:$0xf]
  %v39 = vld [vmem:[%s1 + $0x20] sm:$0xf]
  %v40 = vld [vmem:[%s2] sm:$0x1]
  %v42 = vlaneseq
  %v43 = vshrl.u32 %v42, 7
  %v44 = vsub.s32 0, %v43
  %v45 = vrot.slane %v40, %v44
  %v63 = vunpack.c.l.b16 %v15
  %v64 = vunpack.c.l.b16 %v16
  %v65 = vunpack.c.l.b16 %v17
  %v66 = vunpack.c.l.b16 %v18
  %v67 = vunpack.c.l.b16 %v19
  %v68 = vunpack.c.l.b16 %v20
  %v69 = vunpack.c.l.b16 %v21
  %v70 = vunpack.c.l.b16 %v22
  %v71 = vunpack.c.l.b16 %v23
  %v72 = vunpack.c.l.b16 %v24
  %v73 = vunpack.c.l.b16 %v25
  %v74 = vunpack.c.l.b16 %v26
  %v75 = vunpack.c.l.b16 %v27
  %v76 = vunpack.c.l.b16 %v28
  %v77 = vunpack.c.l.b16 %v29
  %v78 = vunpack.c.l.b16 %v30
  %v79 = vpack.c.b16 %v64, %v63
  %v80 = vpack.c.b16 %v66, %v65
  %v81 = vpack.c.b16 %v68, %v67
  %v82 = vpack.c.b16 %v70, %v69
  %v83 = vpack.c.b16 %v72, %v71
  %v84 = vpack.c.b16 %v74, %v73
  %v85 = vpack.c.b16 %v76, %v75
  %v86 = vpack.c.b16 %v78, %v77
  %v96 = vunpack.c.l.b16 %v31
  %v97 = vunpack.c.l.b16 %v32
  %v98 = vunpack.c.l.b16 %v33
  %v99 = vunpack.c.l.b16 %v34
  %v100 = vunpack.c.l.b16 %v35
  %v101 = vunpack.c.l.b16 %v36
  %v102 = vunpack.c.l.b16 %v37
  %v103 = vunpack.c.l.b16 %v38
  %v104 = vunpack.c.l.b16 %v39
  %v105 = vpack.c.b16 %v97, %v96
  %v106 = vpack.c.b16 %v99, %v98
  %v107 = vpack.c.b16 %v101, %v100
  %v108 = vpack.c.b16 %v103, %v102
  %v109 = vpack.c.b16 %v104, %v104
  %vm114 = vcmask 588800
  %v116 = vsel %vm114, %v79, 0
  %v119 = vsel %vm114, %v80, 0
  %v122 = vsel %vm114, %v81, 0
  %v125 = vsel %vm114, %v82, 0
  %v128 = vsel %vm114, %v83, 0
  %v131 = vsel %vm114, %v84, 0
  %v134 = vsel %vm114, %v85, 0
  %v137 = vsel %vm114, %v86, 0
  %vm139 = vcmask 1043456
  %v141 = vsel %vm139, %v109, 0
  %143 = vmatprep.subr.bf16.mxu0 0
  %144 = vmatpush1.bf16.msra.mxu0 %v105
  %145 = vmatprep.subr.bf16.mxu0 0
  %146 = vmatpush1.bf16.msra.mxu0 %v106
  %147 = vmatprep.subr.bf16.mxu0 0
  %148 = vmatpush1.bf16.msra.mxu0 %v107
  %149 = vmatprep.subr.bf16.mxu0 0
  %150 = vmatpush1.bf16.msra.mxu0 %v108
  %151 = vmatprep.subr.bf16.mxu0 0
  %152 = vmatpush1.bf16.msra.mxu0 %v141
  %153 = vmatprep.subr.bf16.mxu0 0
  %154 = vmatpush1.bf16.msra.mxu0 0
  %155 = vmatprep.subr.bf16.mxu0 0
  %156 = vmatpush1.bf16.msra.mxu0 0
  %157 = vmatprep.subr.bf16.mxu0 0
  %158 = vmatpush1.bf16.msra.mxu0 0
  %159 = vmatprep.subr.bf16.mxu0 0
  %160 = vmatpush1.bf16.msra.mxu0 0
  %161 = vmatprep.subr.bf16.mxu0 0
  %162 = vmatpush1.bf16.msra.mxu0 0
  %163 = vmatprep.subr.bf16.mxu0 0
  %164 = vmatpush1.bf16.msra.mxu0 0
  %165 = vmatprep.subr.bf16.mxu0 0
  %166 = vmatpush1.bf16.msra.mxu0 0
  %167 = vmatprep.subr.bf16.mxu0 0
  %168 = vmatpush1.bf16.msra.mxu0 0
  %169 = vmatprep.subr.bf16.mxu0 0
  %170 = vmatpush1.bf16.msra.mxu0 0
  %171 = vmatprep.subr.bf16.mxu0 0
  %172 = vmatpush1.bf16.msra.mxu0 0
  %173 = vmatprep.subr.bf16.mxu0 0
  %174 = vmatpush1.bf16.msra.mxu0 0
  %175 = vmatprep.mubr.bf16.mxu0 0
  %176 = vmatmul.mubr.bf16.gmra.mrb[0].mxu0 %v116
  %v177 = vpop.f32.mrb[0].mxu0
  %v178 = vadd.f32 %v45, %v177
  %v179 = vpop.f32.mrb[0].mxu0
  %v180 = vpop.f32.mrb[0].mxu0
  %v181 = vadd.f32 %v45, %v180
  %v182 = vpop.f32.mrb[0].mxu0
  %183 = vmatprep.mubr.bf16.mxu0 0
  %184 = vmatmul.mubr.bf16.gmra.mrb[0].mxu0 %v119
  %v185 = vpop.f32.mrb[0].mxu0
  %v186 = vadd.f32 %v45, %v185
  %v187 = vpop.f32.mrb[0].mxu0
  %v188 = vpop.f32.mrb[0].mxu0
  %v189 = vadd.f32 %v45, %v188
  %v190 = vpop.f32.mrb[0].mxu0
  %191 = vmatprep.mubr.bf16.mxu0 0
  %192 = vmatmul.mubr.bf16.gmra.mrb[0].mxu0 %v122
  %v193 = vpop.f32.mrb[0].mxu0
  %v194 = vadd.f32 %v45, %v193
  %v195 = vpop.f32.mrb[0].mxu0
  %v196 = vpop.f32.mrb[0].mxu0
  %v197 = vadd.f32 %v45, %v196
  %v198 = vpop.f32.mrb[0].mxu0
  %199 = vmatprep.mubr.bf16.mxu0 0
  %200 = vmatmul.mubr.bf16.gmra.mrb[0].mxu0 %v125
  %v201 = vpop.f32.mrb[0].mxu0
  %v202 = vadd.f32 %v45, %v201
  %v203 = vpop.f32.mrb[0].mxu0
  %v204 = vpop.f32.mrb[0].mxu0
  %v205 = vadd.f32 %v45, %v204
  %v206 = vpop.f32.mrb[0].mxu0
  %207 = vmatprep.mubr.bf16.mxu0 0
  %208 = vmatmul.mubr.bf16.gmra.mrb[0].mxu0 %v128
  %v209 = vpop.f32.mrb[0].mxu0
  %v210 = vadd.f32 %v45, %v209
  %v211 = vpop.f32.mrb[0].mxu0
  %v212 = vpop.f32.mrb[0].mxu0
  %v213 = vadd.f32 %v45, %v212
  %v214 = vpop.f32.mrb[0].mxu0
  %215 = vmatprep.mubr.bf16.mxu0 0
  %216 = vmatmul.mubr.bf16.gmra.mrb[0].mxu0 %v131
  %v217 = vpop.f32.mrb[0].mxu0
  %v218 = vadd.f32 %v45, %v217
  %v219 = vpop.f32.mrb[0].mxu0
  %v220 = vpop.f32.mrb[0].mxu0
  %v221 = vadd.f32 %v45, %v220
  %v222 = vpop.f32.mrb[0].mxu0
  %223 = vmatprep.mubr.bf16.mxu0 0
  %224 = vmatmul.mubr.bf16.gmra.mrb[0].mxu0 %v134
  %v225 = vpop.f32.mrb[0].mxu0
  %v226 = vadd.f32 %v45, %v225
  %v227 = vpop.f32.mrb[0].mxu0
  %v228 = vpop.f32.mrb[0].mxu0
  %v229 = vadd.f32 %v45, %v228
  %v230 = vpop.f32.mrb[0].mxu0
  %231 = vmatprep.mubr.bf16.mxu0 0
  %232 = vmatmul.mubr.bf16.gmra.mrb[0].mxu0 %v137
  %v233 = vpop.f32.mrb[0].mxu0
  %v234 = vadd.f32 %v45, %v233
  %v235 = vpop.f32.mrb[0].mxu0
  %v236 = vpop.f32.mrb[0].mxu0
  %v237 = vadd.f32 %v45, %v236
  %v238 = vpop.f32.mrb[0].mxu0
  %239 = vdwg.mxu0
  %240 = vst [vmem:[%s3] sm:$0xff] %v178
  %241 = vst [vmem:[%s3 + $0x8] sm:$0xff] %v181
  %242 = vst [vmem:[%s3 + $0x10] sm:$0xff] %v186
  %243 = vst [vmem:[%s3 + $0x18] sm:$0xff] %v189
  %244 = vst [vmem:[%s3 + $0x20] sm:$0xff] %v194
  %245 = vst [vmem:[%s3 + $0x28] sm:$0xff] %v197
  %246 = vst [vmem:[%s3 + $0x30] sm:$0xff] %v202
  %247 = vst [vmem:[%s3 + $0x38] sm:$0xff] %v205
  %248 = vst [vmem:[%s3 + $0x40] sm:$0xff] %v210
  %249 = vst [vmem:[%s3 + $0x48] sm:$0xff] %v213
  %250 = vst [vmem:[%s3 + $0x50] sm:$0xff] %v218
  %251 = vst [vmem:[%s3 + $0x58] sm:$0xff] %v221
  %252 = vst [vmem:[%s3 + $0x60] sm:$0xff] %v226
  %253 = vst [vmem:[%s3 + $0x68] sm:$0xff] %v229
  %254 = vst [vmem:[%s3 + $0x70] sm:$0xff] %v234
  %255 = vst [vmem:[%s3 + $0x78] sm:$0xff] %v237
  // Predicated region
  $region14: #{resnet_generator_forward.21} parent=0 // pred_check
    _
  $region15: #{resnet_generator_forward.21} parent=0 // pred_check_branch
    %257 = sbr.rel (0) target = $region17
  $region16: #{resnet_generator_forward.21} parent=0 // pred_region
    _
  $region17: #{resnet_generator_forward.21} parent=0 // pred_fallthru
    _
  // Predicated region
  $region18: #{resnet_generator_forward.21} parent=0 // pred_check
    _
  $region19: #{resnet_generator_forward.21} parent=0 // pred_check_branch
    %259 = sbr.rel (0) target = $region21
  $region20: #{resnet_generator_forward.21} parent=0 // pred_region
    _
  $region21: #{resnet_generator_forward.21} parent=0 // pred_fallthru
    _

// kernel: resnet_generator_forward.22
$region0: #{resnet_generator_forward.22}
  #allocation0 [shape = 'u32[]', space=smem, size = 0x4, offset = 0x4, fixed_abs, tag = 'smem constant byte address 0x4 - core index']
  #allocation1 [shape = 'u32[144,128]{1,0:T(1,128)}', space=vmem, size = 0x12000, scoped, tag = 'internal scratch']
  %s0 = inlined_call_operand.vmem [shape: f32[32,64], index: 0, kind: input, shape index: {}]
  %s1 = inlined_call_operand.vmem [shape: f32[32,64], index: 1, kind: output, shape index: {}]
  %s2 = sld [smem:[#allocation0]]
  $region14: #{resnet_generator_forward.22} parent=0
    _
  %s4 = ssub.s32 1, %s2
  %s5 = scalar_select 0, %s4, %s2
  // Predicated region
  $region2: #{resnet_generator_forward.22} parent=0 // pred_check
    _
  $region3: #{resnet_generator_forward.22} parent=0 // pred_check_branch
    %7 = sbr.rel (0) target = $region5
  $region4: #{resnet_generator_forward.22} parent=0 // pred_region
    _
  $region5: #{resnet_generator_forward.22} parent=0 // pred_fallthru
    _
  %v8 = vld [vmem:[%s0] sm:$0xff]
  %v9 = vld [vmem:[%s0 + $0x8] sm:$0xff]
  %v10 = vld [vmem:[%s0 + $0x10] sm:$0xff]
  %v11 = vld [vmem:[%s0 + $0x18] sm:$0xff]
  %vm12 = vcmask 523264
  %v13 = vsel %vm12, %v8, 0.0
  %14 = vadd.xlane.f32.xlu0 %v13
  %v15 = vpop.xlane.xlu0 %14
  %v16 = vsel %vm12, %v9, 0.0
  %17 = vadd.xlane.f32.xlu0 %v16
  %v18 = vpop.xlane.xlu0 %17
  %v19 = vsel %vm12, %v10, 0.0
  %20 = vadd.xlane.f32.xlu0 %v19
  %v21 = vpop.xlane.xlu0 %20
  %v22 = vsel %vm12, %v11, 0.0
  %23 = vadd.xlane.f32.xlu0 %v22
  %v24 = vpop.xlane.xlu0 %23
  %v25 = vmul.f32 %v8, %v8
  %v26 = vmul.f32 %v9, %v9
  %v27 = vmul.f32 %v10, %v10
  %v28 = vmul.f32 %v11, %v11
  %v29 = vsel %vm12, %v25, 0.0
  %30 = vadd.xlane.f32.xlu0 %v29
  %v31 = vpop.xlane.xlu0 %30
  %v32 = vsel %vm12, %v26, 0.0
  %33 = vadd.xlane.f32.xlu0 %v32
  %v34 = vpop.xlane.xlu0 %33
  %v35 = vsel %vm12, %v27, 0.0
  %36 = vadd.xlane.f32.xlu0 %v35
  %v37 = vpop.xlane.xlu0 %36
  %v38 = vsel %vm12, %v28, 0.0
  %39 = vadd.xlane.f32.xlu0 %v38
  %v40 = vpop.xlane.xlu0 %39
  %v41 = vmul.f32 %v15, 0.015625
  %v42 = vmul.f32 %v18, 0.015625
  %v43 = vmul.f32 %v21, 0.015625
  %v44 = vmul.f32 %v24, 0.015625
  %v45 = vmul.f32 %v31, 0.015625
  %v46 = vmul.f32 %v34, 0.015625
  %v47 = vmul.f32 %v37, 0.015625
  %v48 = vmul.f32 %v40, 0.015625
  %v49 = vmul.f32 %v41, %v41
  %v50 = vmul.f32 %v42, %v42
  %v51 = vmul.f32 %v43, %v43
  %v52 = vmul.f32 %v44, %v44
  %v53 = vsub.f32 %v45, %v49
  %v54 = vsub.f32 %v46, %v50
  %v55 = vsub.f32 %v47, %v51
  %v56 = vsub.f32 %v48, %v52
  %v57 = vmax.f32 %v53, 0.0
  %v58 = vmax.f32 %v54, 0.0
  %v59 = vmax.f32 %v55, 0.0
  %v60 = vmax.f32 %v56, 0.0
  %v61 = vsub.f32 %v8, %v41
  %v62 = vsub.f32 %v9, %v42
  %v63 = vsub.f32 %v10, %v43
  %v64 = vsub.f32 %v11, %v44
  %v65 = vadd.f32 %v57, 1e-05
  %v66 = vadd.f32 %v58, 1e-05
  %v67 = vadd.f32 %v59, 1e-05
  %v68 = vadd.f32 %v60, 1e-05
  %v69 = vrsqrt.pop %v65
  %v70 = vrsqrt.pop %v66
  %v71 = vrsqrt.pop %v67
  %v72 = vrsqrt.pop %v68
  %v73 = vmul.f32 %v61, %v69
  %v74 = vmul.f32 %v62, %v70
  %v75 = vmul.f32 %v63, %v71
  %v76 = vmul.f32 %v64, %v72
  %v77 = vmax.f32 %v73, 0.0
  %v78 = vmax.f32 %v74, 0.0
  %v79 = vmax.f32 %v75, 0.0
  %v80 = vmax.f32 %v76, 0.0
  %81 = vst.msk [vmem:[%s1] sm:$0xff] %vm12, %v77
  %82 = vst.msk [vmem:[%s1 + $0x8] sm:$0xff] %vm12, %v78
  %83 = vst.msk [vmem:[%s1 + $0x10] sm:$0xff] %vm12, %v79
  %84 = vst.msk [vmem:[%s1 + $0x18] sm:$0xff] %vm12, %v80
  // Predicated region
  $region6: #{resnet_generator_forward.22} parent=0 // pred_check
    _
  $region7: #{resnet_generator_forward.22} parent=0 // pred_check_branch
    %86 = sbr.rel (0) target = $region9
  $region8: #{resnet_generator_forward.22} parent=0 // pred_region
    _
  $region9: #{resnet_generator_forward.22} parent=0 // pred_fallthru
    _
  // Predicated region
  $region10: #{resnet_generator_forward.22} parent=0 // pred_check
    _
  $region11: #{resnet_generator_forward.22} parent=0 // pred_check_branch
    %88 = sbr.rel (0) target = $region13
  $region12: #{resnet_generator_forward.22} parent=0 // pred_region
    _
  $region13: #{resnet_generator_forward.22} parent=0 // pred_fallthru
    _

// kernel: resnet_generator_forward.24
$region0: #{resnet_generator_forward.24}
  #allocation0 [shape = 'u32[]', space=smem, size = 0x4, offset = 0x4, fixed_abs, tag = 'smem constant byte address 0x4 - core index']
  #allocation1 [shape = 'u32[144,128]{1,0:T(1,128)}', space=vmem, size = 0x12000, scoped, tag = 'internal scratch']
  %s0 = inlined_call_operand.vmem [shape: f32[64,16], index: 0, kind: input, shape index: {}]
  %s1 = inlined_call_operand.vmem [shape: f32[64,16], index: 1, kind: output, shape index: {}]
  %s2 = sld [smem:[#allocation0]]
  $region14: #{resnet_generator_forward.24} parent=0
    _
  %s4 = ssub.s32 1, %s2
  %s5 = scalar_select 0, %s4, %s2
  // Predicated region
  $region2: #{resnet_generator_forward.24} parent=0 // pred_check
    _
  $region3: #{resnet_generator_forward.24} parent=0 // pred_check_branch
    %7 = sbr.rel (0) target = $region5
  $region4: #{resnet_generator_forward.24} parent=0 // pred_region
    _
  $region5: #{resnet_generator_forward.24} parent=0 // pred_fallthru
    _
  %v8 = vld [vmem:[%s0] sm:$0xff]
  %v9 = vld [vmem:[%s0 + $0x8] sm:$0xff]
  %v10 = vld [vmem:[%s0 + $0x10] sm:$0xff]
  %v11 = vld [vmem:[%s0 + $0x18] sm:$0xff]
  %v12 = vld [vmem:[%s0 + $0x20] sm:$0xff]
  %v13 = vld [vmem:[%s0 + $0x28] sm:$0xff]
  %v14 = vld [vmem:[%s0 + $0x30] sm:$0xff]
  %v15 = vld [vmem:[%s0 + $0x38] sm:$0xff]
  %vm16 = vcmask 130048
  %v17 = vsel %vm16, %v8, 0.0
  %18 = vadd.xlane.f32.xlu0 %v17
  %v19 = vpop.xlane.xlu0 %18
  %v20 = vsel %vm16, %v9, 0.0
  %21 = vadd.xlane.f32.xlu0 %v20
  %v22 = vpop.xlane.xlu0 %21
  %v23 = vsel %vm16, %v10, 0.0
  %24 = vadd.xlane.f32.xlu0 %v23
  %v25 = vpop.xlane.xlu0 %24
  %v26 = vsel %vm16, %v11, 0.0
  %27 = vadd.xlane.f32.xlu0 %v26
  %v28 = vpop.xlane.xlu0 %27
  %v29 = vsel %vm16, %v12, 0.0
  %30 = vadd.xlane.f32.xlu0 %v29
  %v31 = vpop.xlane.xlu0 %30
  %v32 = vsel %vm16, %v13, 0.0
  %33 = vadd.xlane.f32.xlu0 %v32
  %v34 = vpop.xlane.xlu0 %33
  %v35 = vsel %vm16, %v14, 0.0
  %36 = vadd.xlane.f32.xlu0 %v35
  %v37 = vpop.xlane.xlu0 %36
  %v38 = vsel %vm16, %v15, 0.0
  %39 = vadd.xlane.f32.xlu0 %v38
  %v40 = vpop.xlane.xlu0 %39
  %v41 = vmul.f32 %v8, %v8
  %v42 = vmul.f32 %v9, %v9
  %v43 = vmul.f32 %v10, %v10
  %v44 = vmul.f32 %v11, %v11
  %v45 = vmul.f32 %v12, %v12
  %v46 = vmul.f32 %v13, %v13
  %v47 = vmul.f32 %v14, %v14
  %v48 = vmul.f32 %v15, %v15
  %v49 = vsel %vm16, %v41, 0.0
  %50 = vadd.xlane.f32.xlu0 %v49
  %v51 = vpop.xlane.xlu0 %50
  %v52 = vsel %vm16, %v42, 0.0
  %53 = vadd.xlane.f32.xlu0 %v52
  %v54 = vpop.xlane.xlu0 %53
  %v55 = vsel %vm16, %v43, 0.0
  %56 = vadd.xlane.f32.xlu0 %v55
  %v57 = vpop.xlane.xlu0 %56
  %v58 = vsel %vm16, %v44, 0.0
  %59 = vadd.xlane.f32.xlu0 %v58
  %v60 = vpop.xlane.xlu0 %59
  %v61 = vsel %vm16, %v45, 0.0
  %62 = vadd.xlane.f32.xlu0 %v61
  %v63 = vpop.xlane.xlu0 %62
  %v64 = vsel %vm16, %v46, 0.0
  %65 = vadd.xlane.f32.xlu0 %v64
  %v66 = vpop.xlane.xlu0 %65
  %v67 = vsel %vm16, %v47, 0.0
  %68 = vadd.xlane.f32.xlu0 %v67
  %v69 = vpop.xlane.xlu0 %68
  %v70 = vsel %vm16, %v48, 0.0
  %71 = vadd.xlane.f32.xlu0 %v70
  %v72 = vpop.xlane.xlu0 %71
  %v73 = vmul.f32 %v19, 0.0625
  %v74 = vmul.f32 %v22, 0.0625
  %v75 = vmul.f32 %v25, 0.0625
  %v76 = vmul.f32 %v28, 0.0625
  %v77 = vmul.f32 %v31, 0.0625
  %v78 = vmul.f32 %v34, 0.0625
  %v79 = vmul.f32 %v37, 0.0625
  %v80 = vmul.f32 %v40, 0.0625
  %v81 = vmul.f32 %v51, 0.0625
  %v82 = vmul.f32 %v54, 0.0625
  %v83 = vmul.f32 %v57, 0.0625
  %v84 = vmul.f32 %v60, 0.0625
  %v85 = vmul.f32 %v63, 0.0625
  %v86 = vmul.f32 %v66, 0.0625
  %v87 = vmul.f32 %v69, 0.0625
  %v88 = vmul.f32 %v72, 0.0625
  %v89 = vmul.f32 %v73, %v73
  %v90 = vmul.f32 %v74, %v74
  %v91 = vmul.f32 %v75, %v75
  %v92 = vmul.f32 %v76, %v76
  %v93 = vmul.f32 %v77, %v77
  %v94 = vmul.f32 %v78, %v78
  %v95 = vmul.f32 %v79, %v79
  %v96 = vmul.f32 %v80, %v80
  %v97 = vsub.f32 %v81, %v89
  %v98 = vsub.f32 %v82, %v90
  %v99 = vsub.f32 %v83, %v91
  %v100 = vsub.f32 %v84, %v92
  %v101 = vsub.f32 %v85, %v93
  %v102 = vsub.f32 %v86, %v94
  %v103 = vsub.f32 %v87, %v95
  %v104 = vsub.f32 %v88, %v96
  %v105 = vmax.f32 %v97, 0.0
  %v106 = vmax.f32 %v98, 0.0
  %v107 = vmax.f32 %v99, 0.0
  %v108 = vmax.f32 %v100, 0.0
  %v109 = vmax.f32 %v101, 0.0
  %v110 = vmax.f32 %v102, 0.0
  %v111 = vmax.f32 %v103, 0.0
  %v112 = vmax.f32 %v104, 0.0
  %v113 = vsub.f32 %v8, %v73
  %v114 = vsub.f32 %v9, %v74
  %v115 = vsub.f32 %v10, %v75
  %v116 = vsub.f32 %v11, %v76
  %v117 = vsub.f32 %v12, %v77
  %v118 = vsub.f32 %v13, %v78
  %v119 = vsub.f32 %v14, %v79
  %v120 = vsub.f32 %v15, %v80
  %v121 = vadd.f32 %v105, 1e-05
  %v122 = vadd.f32 %v106, 1e-05
  %v123 = vadd.f32 %v107, 1e-05
  %v124 = vadd.f32 %v108, 1e-05
  %v125 = vadd.f32 %v109, 1e-05
  %v126 = vadd.f32 %v110, 1e-05
  %v127 = vadd.f32 %v111, 1e-05
  %v128 = vadd.f32 %v112, 1e-05
  %v129 = vrsqrt.pop %v121
  %v130 = vrsqrt.pop %v122
  %v131 = vrsqrt.pop %v123
  %v132 = vrsqrt.pop %v124
  %v133 = vrsqrt.pop %v125
  %v134 = vrsqrt.pop %v126
  %v135 = vrsqrt.pop %v127
  %v136 = vrsqrt.pop %v128
  %v137 = vmul.f32 %v113, %v129
  %v138 = vmul.f32 %v114, %v130
  %v139 = vmul.f32 %v115, %v131
  %v140 = vmul.f32 %v116, %v132
  %v141 = vmul.f32 %v117, %v133
  %v142 = vmul.f32 %v118, %v134
  %v143 = vmul.f32 %v119, %v135
  %v144 = vmul.f32 %v120, %v136
  %v145 = vmax.f32 %v137, 0.0
  %v146 = vmax.f32 %v138, 0.0
  %v147 = vmax.f32 %v139, 0.0
  %v148 = vmax.f32 %v140, 0.0
  %v149 = vmax.f32 %v141, 0.0
  %v150 = vmax.f32 %v142, 0.0
  %v151 = vmax.f32 %v143, 0.0
  %v152 = vmax.f32 %v144, 0.0
  %153 = vst.msk [vmem:[%s1] sm:$0xff] %vm16, %v145
  %154 = vst.msk [vmem:[%s1 + $0x8] sm:$0xff] %vm16, %v146
  %155 = vst.msk [vmem:[%s1 + $0x10] sm:$0xff] %vm16, %v147
  %156 = vst.msk [vmem:[%s1 + $0x18] sm:$0xff] %vm16, %v148
  %157 = vst.msk [vmem:[%s1 + $0x20] sm:$0xff] %vm16, %v149
  %158 = vst.msk [vmem:[%s1 + $0x28] sm:$0xff] %vm16, %v150
  %159 = vst.msk [vmem:[%s1 + $0x30] sm:$0xff] %vm16, %v151
  %160 = vst.msk [vmem:[%s1 + $0x38] sm:$0xff] %vm16, %v152
  // Predicated region
  $region6: #{resnet_generator_forward.24} parent=0 // pred_check
    _
  $region7: #{resnet_generator_forward.24} parent=0 // pred_check_branch
    %162 = sbr.rel (0) target = $region9
  $region8: #{resnet_generator_forward.24} parent=0 // pred_region
    _
  $region9: #{resnet_generator_forward.24} parent=0 // pred_fallthru
    _
  // Predicated region
  $region10: #{resnet_generator_forward.24} parent=0 // pred_check
    _
  $region11: #{resnet_generator_forward.24} parent=0 // pred_check_branch
    %164 = sbr.rel (0) target = $region13
  $region12: #{resnet_generator_forward.24} parent=0 // pred_region
    _
  $region13: #{resnet_generator_forward.24} parent=0 // pred_fallthru
    _

// kernel: resnet_generator_forward.23
$region0: #{resnet_generator_forward.23}
  #allocation0 [shape = 'u32[]', space=smem, size = 0x4, offset = 0x4, fixed_abs, tag = 'smem constant byte address 0x4 - core index']
  #allocation1 [shape = 'u32[144,128]{1,0:T(1,128)}', space=vmem, size = 0x12000, scoped, tag = 'internal scratch']
  %s0 = inlined_call_operand.vmem [shape: bf16[32,144], index: 0, kind: input, shape index: {}]
  %s1 = inlined_call_operand.vmem [shape: bf16[144,128], index: 1, kind: input, shape index: {}]
  %s2 = inlined_call_operand.vmem [shape: f32[1,128], index: 2, kind: input, shape index: {}]
  %s3 = inlined_call_operand.vmem [shape: f32[32,128], index: 3, kind: output, shape index: {}]
  %s4 = sld [smem:[#allocation0]]
  $region22: #{resnet_generator_forward.23} parent=0
    _
  %s6 = ssub.s32 1, %s4
  %s7 = scalar_select 0, %s6, %s4
  // Predicated region
  $region2: #{resnet_generator_forward.23} parent=0 // pred_check
    _
  $region3: #{resnet_generator_forward.23} parent=0 // pred_check_branch
    %9 = sbr.rel (0) target = $region5
  $region4: #{resnet_generator_forward.23} parent=0 // pred_region
    _
  $region5: #{resnet_generator_forward.23} parent=0 // pred_fallthru
    _
  // Predicated region
  $region6: #{resnet_generator_forward.23} parent=0 // pred_check
    _
  $region7: #{resnet_generator_forward.23} parent=0 // pred_check_branch
    %11 = sbr.rel (0) target = $region9
  $region8: #{resnet_generator_forward.23} parent=0 // pred_region
    _
  $region9: #{resnet_generator_forward.23} parent=0 // pred_fallthru
    _
  // Predicated region
  $region10: #{resnet_generator_forward.23} parent=0 // pred_check
    _
  $region11: #{resnet_generator_forward.23} parent=0 // pred_check_branch
    %13 = sbr.rel (0) target = $region13
  $region12: #{resnet_generator_forward.23} parent=0 // pred_region
    _
  $region13: #{resnet_generator_forward.23} parent=0 // pred_fallthru
    _
  %v15 = vld [vmem:[%s0] sm:$0xff]
  %v16 = vld [vmem:[%s0 + $0x8] sm:$0xff]
  %v17 = vld [vmem:[%s0 + $0x10] sm:$0xff]
  %v18 = vld [vmem:[%s0 + $0x18] sm:$0xff]
  %v19 = vld [vmem:[%s1] sm:$0xf]
  %v20 = vld [vmem:[%s1 + $0x4] sm:$0xf]
  %v21 = vld [vmem:[%s1 + $0x8] sm:$0xf]
  %v22 = vld [vmem:[%s1 + $0xc] sm:$0xf]
  %v23 = vld [vmem:[%s1 + $0x10] sm:$0xf]
  %v24 = vld [vmem:[%s1 + $0x14] sm:$0xf]
  %v25 = vld [vmem:[%s1 + $0x18] sm:$0xf]
  %v26 = vld [vmem:[%s1 + $0x1c] sm:$0xf]
  %v27 = vld [vmem:[%s1 + $0x20] sm:$0xf]
  %v28 = vld [vmem:[%s1 + $0x24] sm:$0xf]
  %v29 = vld [vmem:[%s1 + $0x28] sm:$0xf]
  %v30 = vld [vmem:[%s1 + $0x2c] sm:$0xf]
  %v31 = vld [vmem:[%s1 + $0x30] sm:$0xf]
  %v32 = vld [vmem:[%s1 + $0x34] sm:$0xf]
  %v33 = vld [vmem:[%s1 + $0x38] sm:$0xf]
  %v34 = vld [vmem:[%s1 + $0x3c] sm:$0xf]
  %v35 = vld [vmem:[%s1 + $0x40] sm:$0xf]
  %v36 = vld [vmem:[%s1 + $0x44] sm:$0xf]
  %v37 = vld [vmem:[%s2] sm:$0x1]
  %v39 = vlaneseq
  %v40 = vshrl.u32 %v39, 7
  %v41 = vsub.s32 0, %v40
  %v42 = vrot.slane %v37, %v41
  %v48 = vunpack.c.l.b16 %v15
  %v49 = vunpack.c.h.b16 %v15
  %v50 = vunpack.c.l.b16 %v16
  %v51 = vunpack.c.h.b16 %v16
  %v52 = vunpack.c.l.b16 %v17
  %v53 = vunpack.c.h.b16 %v17
  %v54 = vunpack.c.l.b16 %v18
  %v55 = vunpack.c.h.b16 %v18
  %v56 = vpack.c.b16 %v50, %v48
  %v57 = vpack.c.b16 %v51, %v49
  %v58 = vpack.c.b16 %v54, %v52
  %v59 = vpack.c.b16 %v55, %v53
  %v80 = vunpack.c.l.b16 %v19
  %v81 = vunpack.c.l.b16 %v20
  %v82 = vunpack.c.l.b16 %v21
  %v83 = vunpack.c.l.b16 %v22
  %v84 = vunpack.c.l.b16 %v23
  %v85 = vunpack.c.l.b16 %v24
  %v86 = vunpack.c.l.b16 %v25
  %v87 = vunpack.c.l.b16 %v26
  %v88 = vunpack.c.l.b16 %v27
  %v89 = vunpack.c.l.b16 %v28
  %v90 = vunpack.c.l.b16 %v29
  %v91 = vunpack.c.l.b16 %v30
  %v92 = vunpack.c.l.b16 %v31
  %v93 = vunpack.c.l.b16 %v32
  %v94 = vunpack.c.l.b16 %v33
  %v95 = vunpack.c.l.b16 %v34
  %v96 = vunpack.c.l.b16 %v35
  %v97 = vunpack.c.l.b16 %v36
  %v98 = vpack.c.b16 %v81, %v80
  %v99 = vpack.c.b16 %v83, %v82
  %v100 = vpack.c.b16 %v85, %v84
  %v101 = vpack.c.b16 %v87, %v86
  %v102 = vpack.c.b16 %v89, %v88
  %v103 = vpack.c.b16 %v91, %v90
  %v104 = vpack.c.b16 %v93, %v92
  %v105 = vpack.c.b16 %v95, %v94
  %v106 = vpack.c.b16 %v97, %v96
  %vm116 = vcmask 130048
  %v118 = vsel %vm116, %v57, 0
  %v121 = vsel %vm116, %v59, 0
  %123 = vmatprep.subr.bf16.mxu0 0
  %124 = vmatpush1.bf16.msra.mxu0 %v98
  %125 = vmatprep.subr.bf16.mxu0 0
  %126 = vmatpush1.bf16.msra.mxu0 %v99
  %127 = vmatprep.subr.bf16.mxu0 0
  %128 = vmatpush1.bf16.msra.mxu0 %v100
  %129 = vmatprep.subr.bf16.mxu0 0
  %130 = vmatpush1.bf16.msra.mxu0 %v101
  %131 = vmatprep.subr.bf16.mxu0 0
  %132 = vmatpush1.bf16.msra.mxu0 %v102
  %133 = vmatprep.subr.bf16.mxu0 0
  %134 = vmatpush1.bf16.msra.mxu0 %v103
  %135 = vmatprep.subr.bf16.mxu0 0
  %136 = vmatpush1.bf16.msra.mxu0 %v104
  %137 = vmatprep.subr.bf16.mxu0 0
  %138 = vmatpush1.bf16.msra.mxu0 %v105
  %139 = vmatprep.subr.bf16.mxu0 0
  %140 = vmatpush1.bf16.msra.mxu0 %v106
  %141 = vmatprep.subr.bf16.mxu0 0
  %142 = vmatpush1.bf16.msra.mxu0 0
  %143 = vmatprep.subr.bf16.mxu0 0
  %144 = vmatpush1.bf16.msra.mxu0 0
  %145 = vmatprep.subr.bf16.mxu0 0
  %146 = vmatpush1.bf16.msra.mxu0 0
  %147 = vmatprep.subr.bf16.mxu0 0
  %148 = vmatpush1.bf16.msra.mxu0 0
  %149 = vmatprep.subr.bf16.mxu0 0
  %150 = vmatpush1.bf16.msra.mxu0 0
  %151 = vmatprep.subr.bf16.mxu0 0
  %152 = vmatpush1.bf16.msra.mxu0 0
  %153 = vmatprep.subr.bf16.mxu0 0
  %154 = vmatpush1.bf16.msra.mxu0 0
  %155 = vmatprep.mubr.bf16.mxu0 %v118
  %156 = vmatmul.mubr.bf16.gmra.mrb[0].mxu0 %v56
  %v157 = vpop.f32.mrb[0].mxu0
  %v158 = vadd.f32 %v42, %v157
  %v159 = vpop.f32.mrb[0].mxu0
  %v160 = vpop.f32.mrb[0].mxu0
  %v161 = vadd.f32 %v42, %v160
  %v162 = vpop.f32.mrb[0].mxu0
  %163 = vmatprep.mubr.bf16.mxu0 %v121
  %164 = vmatmul.mubr.bf16.gmra.mrb[0].mxu0 %v58
  %v165 = vpop.f32.mrb[0].mxu0
  %v166 = vadd.f32 %v42, %v165
  %v167 = vpop.f32.mrb[0].mxu0
  %v168 = vpop.f32.mrb[0].mxu0
  %v169 = vadd.f32 %v42, %v168
  %v170 = vpop.f32.mrb[0].mxu0
  %171 = vdwg.mxu0
  %172 = vst [vmem:[%s3] sm:$0xff] %v158
  %173 = vst [vmem:[%s3 + $0x8] sm:$0xff] %v161
  %174 = vst [vmem:[%s3 + $0x10] sm:$0xff] %v166
  %175 = vst [vmem:[%s3 + $0x18] sm:$0xff] %v169
  // Predicated region
  $region14: #{resnet_generator_forward.23} parent=0 // pred_check
    _
  $region15: #{resnet_generator_forward.23} parent=0 // pred_check_branch
    %177 = sbr.rel (0) target = $region17
  $region16: #{resnet_generator_forward.23} parent=0 // pred_region
    _
  $region17: #{resnet_generator_forward.23} parent=0 // pred_fallthru
    _
  // Predicated region
  $region18: #{resnet_generator_forward.23} parent=0 // pred_check
    _
  $region19: #{resnet_generator_forward.23} parent=0 // pred_check_branch
    %179 = sbr.rel (0) target = $region21
  $region20: #{resnet_generator_forward.23} parent=0 // pred_region
    _
  $region21: #{resnet_generator_forward.23} parent=0 // pred_fallthru
    _

// kernel: resnet_generator_forward.25
$region0: #{resnet_generator_forward.25}
  #allocation0 [shape = 'u32[]', space=smem, size = 0x4, offset = 0x4, fixed_abs, tag = 'smem constant byte address 0x4 - core index']
  #allocation1 [shape = 'u32[144,128]{1,0:T(1,128)}', space=vmem, size = 0x12000, scoped, tag = 'internal scratch']
  %s0 = inlined_call_operand.vmem [shape: bf16[32,288], index: 0, kind: input, shape index: {}]
  %s1 = inlined_call_operand.vmem [shape: bf16[288,128], index: 1, kind: input, shape index: {}]
  %s2 = inlined_call_operand.vmem [shape: f32[1,128], index: 2, kind: input, shape index: {}]
  %s3 = inlined_call_operand.vmem [shape: f32[32,128], index: 3, kind: output, shape index: {}]
  %s4 = sld [smem:[#allocation0]]
  $region22: #{resnet_generator_forward.25} parent=0
    _
  %s6 = ssub.s32 1, %s4
  %s7 = scalar_select 0, %s6, %s4
  // Predicated region
  $region2: #{resnet_generator_forward.25} parent=0 // pred_check
    _
  $region3: #{resnet_generator_forward.25} parent=0 // pred_check_branch
    %9 = sbr.rel (0) target = $region5
  $region4: #{resnet_generator_forward.25} parent=0 // pred_region
    _
  $region5: #{resnet_generator_forward.25} parent=0 // pred_fallthru
    _
  // Predicated region
  $region6: #{resnet_generator_forward.25} parent=0 // pred_check
    _
  $region7: #{resnet_generator_forward.25} parent=0 // pred_check_branch
    %11 = sbr.rel (0) target = $region9
  $region8: #{resnet_generator_forward.25} parent=0 // pred_region
    _
  $region9: #{resnet_generator_forward.25} parent=0 // pred_fallthru
    _
  // Predicated region
  $region10: #{resnet_generator_forward.25} parent=0 // pred_check
    _
  $region11: #{resnet_generator_forward.25} parent=0 // pred_check_branch
    %13 = sbr.rel (0) target = $region13
  $region12: #{resnet_generator_forward.25} parent=0 // pred_region
    _
  $region13: #{resnet_generator_forward.25} parent=0 // pred_fallthru
    _
  %v15 = vld [vmem:[%s0] sm:$0xff]
  %v16 = vld [vmem:[%s0 + $0x8] sm:$0xf]
  %v17 = vld [vmem:[%s0 + $0xc] sm:$0xff]
  %v18 = vld [vmem:[%s0 + $0x14] sm:$0xf]
  %v19 = vld [vmem:[%s0 + $0x18] sm:$0xff]
  %v20 = vld [vmem:[%s0 + $0x20] sm:$0xf]
  %v21 = vld [vmem:[%s0 + $0x24] sm:$0xff]
  %v22 = vld [vmem:[%s0 + $0x2c] sm:$0xf]
  %v23 = vld [vmem:[%s1] sm:$0xf]
  %v24 = vld [vmem:[%s1 + $0x4] sm:$0xf]
  %v25 = vld [vmem:[%s1 + $0x8] sm:$0xf]
  %v26 = vld [vmem:[%s1 + $0xc] sm:$0xf]
  %v27 = vld [vmem:[%s1 + $0x10] sm:$0xf]
  %v28 = vld [vmem:[%s1 + $0x14] sm:$0xf]
  %v29 = vld [vmem:[%s1 + $0x18] sm:$0xf]
  %v30 = vld [vmem:[%s1 + $0x1c] sm:$0xf]
  %v31 = vld [vmem:[%s1 + $0x20] sm:$0xf]
  %v32 = vld [vmem:[%s1 + $0x24] sm:$0xf]
  %v33 = vld [vmem:[%s1 + $0x28] sm:$0xf]
  %v34 = vld [vmem:[%s1 + $0x2c] sm:$0xf]
  %v35 = vld [vmem:[%s1 + $0x30] sm:$0xf]
  %v36 = vld [vmem:[%s1 + $0x34] sm:$0xf]
  %v37 = vld [vmem:[%s1 + $0x38] sm:$0xf]
  %v38 = vld [vmem:[%s1 + $0x3c] sm:$0xf]
  %v39 = vld [vmem:[%s1 + $0x40] sm:$0xf]
  %v40 = vld [vmem:[%s1 + $0x44] sm:$0xf]
  %v41 = vld [vmem:[%s1 + $0x48] sm:$0xf]
  %v42 = vld [vmem:[%s1 + $0x4c] sm:$0xf]
  %v43 = vld [vmem:[%s1 + $0x50] sm:$0xf]
  %v44 = vld [vmem:[%s1 + $0x54] sm:$0xf]
  %v45 = vld [vmem:[%s1 + $0x58] sm:$0xf]
  %v46 = vld [vmem:[%s1 + $0x5c] sm:$0xf]
  %v47 = vld [vmem:[%s1 + $0x60] sm:$0xf]
  %v48 = vld [vmem:[%s1 + $0x64] sm:$0xf]
  %v49 = vld [vmem:[%s1 + $0x68] sm:$0xf]
  %v50 = vld [vmem:[%s1 + $0x6c] sm:$0xf]
  %v51 = vld [vmem:[%s1 + $0x70] sm:$0xf]
  %v52 = vld [vmem:[%s1 + $0x74] sm:$0xf]
  %v53 = vld [vmem:[%s1 + $0x78] sm:$0xf]
  %v54 = vld [vmem:[%s1 + $0x7c] sm:$0xf]
  %v55 = vld [vmem:[%s1 + $0x80] sm:$0xf]
  %v56 = vld [vmem:[%s1 + $0x84] sm:$0xf]
  %v57 = vld [vmem:[%s1 + $0x88] sm:$0xf]
  %v58 = vld [vmem:[%s1 + $0x8c] sm:$0xf]
  %v59 = vld [vmem:[%s2] sm:$0x1]
  %v61 = vlaneseq
  %v62 = vshrl.u32 %v61, 7
  %v63 = vsub.s32 0, %v62
  %v64 = vrot.slane %v59, %v63
  %v74 = vunpack.c.l.b16 %v15
  %v75 = vunpack.c.h.b16 %v15
  %v76 = vunpack.c.l.b16 %v16
  %v77 = vunpack.c.l.b16 %v17
  %v78 = vunpack.c.h.b16 %v17
  %v79 = vunpack.c.l.b16 %v18
  %v80 = vunpack.c.l.b16 %v19
  %v81 = vunpack.c.h.b16 %v19
  %v82 = vunpack.c.l.b16 %v20
  %v83 = vunpack.c.l.b16 %v21
  %v84 = vunpack.c.h.b16 %v21
  %v85 = vunpack.c.l.b16 %v22
  %v86 = vpack.c.b16 %v77, %v74
  %v87 = vpack.c.b16 %v78, %v75
  %v88 = vpack.c.b16 %v79, %v76
  %v89 = vpack.c.b16 %v83, %v80
  %v90 = vpack.c.b16 %v84, %v81
  %v91 = vpack.c.b16 %v85, %v82
  %v132 = vunpack.c.l.b16 %v23
  %v133 = vunpack.c.l.b16 %v24
  %v134 = vunpack.c.l.b16 %v25
  %v135 = vunpack.c.l.b16 %v26
  %v136 = vunpack.c.l.b16 %v27
  %v137 = vunpack.c.l.b16 %v28
  %v138 = vunpack.c.l.b16 %v29
  %v139 = vunpack.c.l.b16 %v30
  %v140 = vunpack.c.l.b16 %v31
  %v141 = vunpack.c.l.b16 %v32
  %v142 = vunpack.c.l.b16 %v33
  %v143 = vunpack.c.l.b16 %v34
  %v144 = vunpack.c.l.b16 %v35
  %v145 = vunpack.c.l.b16 %v36
  %v146 = vunpack.c.l.b16 %v37
  %v147 = vunpack.c.l.b16 %v38
  %v148 = vunpack.c.l.b16 %v39
  %v149 = vunpack.c.l.b16 %v40
  %v150 = vunpack.c.l.b16 %v41
  %v151 = vunpack.c.l.b16 %v42
  %v152 = vunpack.c.l.b16 %v43
  %v153 = vunpack.c.l.b16 %v44
  %v154 = vunpack.c.l.b16 %v45
  %v155 = vunpack.c.l.b16 %v46
  %v156 = vunpack.c.l.b16 %v47
  %v157 = vunpack.c.l.b16 %v48
  %v158 = vunpack.c.l.b16 %v49
  %v159 = vunpack.c.l.b16 %v50
  %v160 = vunpack.c.l.b16 %v51
  %v161 = vunpack.c.l.b16 %v52
  %v162 = vunpack.c.l.b16 %v53
  %v163 = vunpack.c.l.b16 %v54
  %v164 = vunpack.c.l.b16 %v55
  %v165 = vunpack.c.l.b16 %v56
  %v166 = vunpack.c.l.b16 %v57
  %v167 = vunpack.c.l.b16 %v58
  %v168 = vpack.c.b16 %v133, %v132
  %v169 = vpack.c.b16 %v135, %v134
  %v170 = vpack.c.b16 %v137, %v136
  %v171 = vpack.c.b16 %v139, %v138
  %v172 = vpack.c.b16 %v141, %v140
  %v173 = vpack.c.b16 %v143, %v142
  %v174 = vpack.c.b16 %v145, %v144
  %v175 = vpack.c.b16 %v147, %v146
  %v176 = vpack.c.b16 %v149, %v148
  %v177 = vpack.c.b16 %v151, %v150
  %v178 = vpack.c.b16 %v153, %v152
  %v179 = vpack.c.b16 %v155, %v154
  %v180 = vpack.c.b16 %v157, %v156
  %v181 = vpack.c.b16 %v159, %v158
  %v182 = vpack.c.b16 %v161, %v160
  %v183 = vpack.c.b16 %v163, %v162
  %v184 = vpack.c.b16 %v165, %v164
  %v185 = vpack.c.b16 %v167, %v166
  %vm204 = vcmask 261120
  %v206 = vsel %vm204, %v88, 0
  %v209 = vsel %vm204, %v91, 0
  %211 = vmatprep.subr.bf16.mxu0 0
  %212 = vmatpush1.bf16.msra.mxu0 %v168
  %213 = vmatprep.subr.bf16.mxu0 0
  %214 = vmatpush1.bf16.msra.mxu0 %v169
  %215 = vmatprep.subr.bf16.mxu0 0
  %216 = vmatpush1.bf16.msra.mxu0 %v170
  %217 = vmatprep.subr.bf16.mxu0 0
  %218 = vmatpush1.bf16.msra.mxu0 %v171
  %219 = vmatprep.subr.bf16.mxu0 0
  %220 = vmatpush1.bf16.msra.mxu0 %v172
  %221 = vmatprep.subr.bf16.mxu0 0
  %222 = vmatpush1.bf16.msra.mxu0 %v173
  %223 = vmatprep.subr.bf16.mxu0 0
  %224 = vmatpush1.bf16.msra.mxu0 %v174
  %225 = vmatprep.subr.bf16.mxu0 0
  %226 = vmatpush1.bf16.msra.mxu0 %v175
  %227 = vmatprep.subr.bf16.mxu0 0
  %228 = vmatpush1.bf16.msra.mxu0 %v176
  %229 = vmatprep.subr.bf16.mxu0 0
  %230 = vmatpush1.bf16.msra.mxu0 %v177
  %231 = vmatprep.subr.bf16.mxu0 0
  %232 = vmatpush1.bf16.msra.mxu0 %v178
  %233 = vmatprep.subr.bf16.mxu0 0
  %234 = vmatpush1.bf16.msra.mxu0 %v179
  %235 = vmatprep.subr.bf16.mxu0 0
  %236 = vmatpush1.bf16.msra.mxu0 %v180
  %237 = vmatprep.subr.bf16.mxu0 0
  %238 = vmatpush1.bf16.msra.mxu0 %v181
  %239 = vmatprep.subr.bf16.mxu0 0
  %240 = vmatpush1.bf16.msra.mxu0 %v182
  %241 = vmatprep.subr.bf16.mxu0 0
  %242 = vmatpush1.bf16.msra.mxu0 %v183
  %243 = vmatprep.mubr.bf16.mxu0 %v87
  %244 = vmatmul.mubr.bf16.gmra.mrb[0].mxu0 %v86
  %v245 = vpop.f32.mrb[0].mxu0
  %v246 = vadd.f32 %v64, %v245
  %v247 = vpop.f32.mrb[0].mxu0
  %v248 = vpop.f32.mrb[0].mxu0
  %v249 = vadd.f32 %v64, %v248
  %v250 = vpop.f32.mrb[0].mxu0
  %251 = vmatprep.mubr.bf16.mxu0 %v90
  %252 = vmatmul.mubr.bf16.gmra.mrb[0].mxu0 %v89
  %v253 = vpop.f32.mrb[0].mxu0
  %v254 = vadd.f32 %v64, %v253
  %v255 = vpop.f32.mrb[0].mxu0
  %v256 = vpop.f32.mrb[0].mxu0
  %v257 = vadd.f32 %v64, %v256
  %v258 = vpop.f32.mrb[0].mxu0
  %259 = vdwg.mxu0
  %260 = vmatprep.subr.bf16.mxu0 0
  %261 = vmatpush1.bf16.msra.mxu0 %v184
  %262 = vmatprep.subr.bf16.mxu0 0
  %263 = vmatpush1.bf16.msra.mxu0 %v185
  %264 = vmatprep.subr.bf16.mxu0 0
  %265 = vmatpush1.bf16.msra.mxu0 0
  %266 = vmatprep.subr.bf16.mxu0 0
  %267 = vmatpush1.bf16.msra.mxu0 0
  %268 = vmatprep.subr.bf16.mxu0 0
  %269 = vmatpush1.bf16.msra.mxu0 0
  %270 = vmatprep.subr.bf16.mxu0 0
  %271 = vmatpush1.bf16.msra.mxu0 0
  %272 = vmatprep.subr.bf16.mxu0 0
  %273 = vmatpush1.bf16.msra.mxu0 0
  %274 = vmatprep.subr.bf16.mxu0 0
  %275 = vmatpush1.bf16.msra.mxu0 0
  %276 = vmatprep.subr.bf16.mxu0 0
  %277 = vmatpush1.bf16.msra.mxu0 0
  %278 = vmatprep.subr.bf16.mxu0 0
  %279 = vmatpush1.bf16.msra.mxu0 0
  %280 = vmatprep.subr.bf16.mxu0 0
  %281 = vmatpush1.bf16.msra.mxu0 0
  %282 = vmatprep.subr.bf16.mxu0 0
  %283 = vmatpush1.bf16.msra.mxu0 0
  %284 = vmatprep.subr.bf16.mxu0 0
  %285 = vmatpush1.bf16.msra.mxu0 0
  %286 = vmatprep.subr.bf16.mxu0 0
  %287 = vmatpush1.bf16.msra.mxu0 0
  %288 = vmatprep.subr.bf16.mxu0 0
  %289 = vmatpush1.bf16.msra.mxu0 0
  %290 = vmatprep.subr.bf16.mxu0 0
  %291 = vmatpush1.bf16.msra.mxu0 0
  %292 = vmatprep.mubr.bf16.mxu0 0
  %293 = vmatmul.mubr.bf16.gmra.mrb[0].mxu0 %v206
  %v294 = vpop.f32.mrb[0].mxu0
  %v295 = vadd.f32 %v246, %v294
  %v296 = vpop.f32.mrb[0].mxu0
  %v297 = vpop.f32.mrb[0].mxu0
  %v298 = vadd.f32 %v249, %v297
  %v299 = vpop.f32.mrb[0].mxu0
  %300 = vmatprep.mubr.bf16.mxu0 0
  %301 = vmatmul.mubr.bf16.gmra.mrb[0].mxu0 %v209
  %v302 = vpop.f32.mrb[0].mxu0
  %v303 = vadd.f32 %v254, %v302
  %v304 = vpop.f32.mrb[0].mxu0
  %v305 = vpop.f32.mrb[0].mxu0
  %v306 = vadd.f32 %v257, %v305
  %v307 = vpop.f32.mrb[0].mxu0
  %308 = vdwg.mxu0
  %309 = vst [vmem:[%s3] sm:$0xff] %v295
  %310 = vst [vmem:[%s3 + $0x8] sm:$0xff] %v298
  %311 = vst [vmem:[%s3 + $0x10] sm:$0xff] %v303
  %312 = vst [vmem:[%s3 + $0x18] sm:$0xff] %v306
  // Predicated region
  $region14: #{resnet_generator_forward.25} parent=0 // pred_check
    _
  $region15: #{resnet_generator_forward.25} parent=0 // pred_check_branch
    %314 = sbr.rel (0) target = $region17
  $region16: #{resnet_generator_forward.25} parent=0 // pred_region
    _
  $region17: #{resnet_generator_forward.25} parent=0 // pred_fallthru
    _
  // Predicated region
  $region18: #{resnet_generator_forward.25} parent=0 // pred_check
    _
  $region19: #{resnet_generator_forward.25} parent=0 // pred_check_branch
    %316 = sbr.rel (0) target = $region21
  $region20: #{resnet_generator_forward.25} parent=0 // pred_region
    _
  $region21: #{resnet_generator_forward.25} parent=0 // pred_fallthru
    _

// kernel: resnet_generator_forward.28
$region0: #{resnet_generator_forward.28}
  #allocation0 [shape = 'u32[]', space=smem, size = 0x4, offset = 0x4, fixed_abs, tag = 'smem constant byte address 0x4 - core index']
  #allocation1 [shape = 'u32[144,128]{1,0:T(1,128)}', space=vmem, size = 0x12000, scoped, tag = 'internal scratch']
  %s0 = inlined_call_operand.vmem [shape: f32[64,16], index: 0, kind: input, shape index: {}]
  %s1 = inlined_call_operand.vmem [shape: f32[64,16], index: 1, kind: input, shape index: {}]
  %s2 = inlined_call_operand.vmem [shape: f32[64,16], index: 2, kind: output, shape index: {}]
  %s3 = sld [smem:[#allocation0]]
  $region18: #{resnet_generator_forward.28} parent=0
    _
  %s5 = ssub.s32 1, %s3
  %s6 = scalar_select 0, %s5, %s3
  // Predicated region
  $region2: #{resnet_generator_forward.28} parent=0 // pred_check
    _
  $region3: #{resnet_generator_forward.28} parent=0 // pred_check_branch
    %8 = sbr.rel (0) target = $region5
  $region4: #{resnet_generator_forward.28} parent=0 // pred_region
    _
  $region5: #{resnet_generator_forward.28} parent=0 // pred_fallthru
    _
  // Predicated region
  $region6: #{resnet_generator_forward.28} parent=0 // pred_check
    _
  $region7: #{resnet_generator_forward.28} parent=0 // pred_check_branch
    %10 = sbr.rel (0) target = $region9
  $region8: #{resnet_generator_forward.28} parent=0 // pred_region
    _
  $region9: #{resnet_generator_forward.28} parent=0 // pred_fallthru
    _
  %v11 = vld [vmem:[%s0] sm:$0xff]
  %v12 = vld [vmem:[%s0 + $0x8] sm:$0xff]
  %v13 = vld [vmem:[%s0 + $0x10] sm:$0xff]
  %v14 = vld [vmem:[%s0 + $0x18] sm:$0xff]
  %v15 = vld [vmem:[%s0 + $0x20] sm:$0xff]
  %v16 = vld [vmem:[%s0 + $0x28] sm:$0xff]
  %v17 = vld [vmem:[%s0 + $0x30] sm:$0xff]
  %v18 = vld [vmem:[%s0 + $0x38] sm:$0xff]
  %vm19 = vcmask 130048
  %v20 = vsel %vm19, %v11, 0.0
  %21 = vadd.xlane.f32.xlu0 %v20
  %v22 = vpop.xlane.xlu0 %21
  %v23 = vsel %vm19, %v12, 0.0
  %24 = vadd.xlane.f32.xlu0 %v23
  %v25 = vpop.xlane.xlu0 %24
  %v26 = vsel %vm19, %v13, 0.0
  %27 = vadd.xlane.f32.xlu0 %v26
  %v28 = vpop.xlane.xlu0 %27
  %v29 = vsel %vm19, %v14, 0.0
  %30 = vadd.xlane.f32.xlu0 %v29
  %v31 = vpop.xlane.xlu0 %30
  %v32 = vsel %vm19, %v15, 0.0
  %33 = vadd.xlane.f32.xlu0 %v32
  %v34 = vpop.xlane.xlu0 %33
  %v35 = vsel %vm19, %v16, 0.0
  %36 = vadd.xlane.f32.xlu0 %v35
  %v37 = vpop.xlane.xlu0 %36
  %v38 = vsel %vm19, %v17, 0.0
  %39 = vadd.xlane.f32.xlu0 %v38
  %v40 = vpop.xlane.xlu0 %39
  %v41 = vsel %vm19, %v18, 0.0
  %42 = vadd.xlane.f32.xlu0 %v41
  %v43 = vpop.xlane.xlu0 %42
  %v44 = vmul.f32 %v11, %v11
  %v45 = vmul.f32 %v12, %v12
  %v46 = vmul.f32 %v13, %v13
  %v47 = vmul.f32 %v14, %v14
  %v48 = vmul.f32 %v15, %v15
  %v49 = vmul.f32 %v16, %v16
  %v50 = vmul.f32 %v17, %v17
  %v51 = vmul.f32 %v18, %v18
  %v52 = vsel %vm19, %v44, 0.0
  %53 = vadd.xlane.f32.xlu0 %v52
  %v54 = vpop.xlane.xlu0 %53
  %v55 = vsel %vm19, %v45, 0.0
  %56 = vadd.xlane.f32.xlu0 %v55
  %v57 = vpop.xlane.xlu0 %56
  %v58 = vsel %vm19, %v46, 0.0
  %59 = vadd.xlane.f32.xlu0 %v58
  %v60 = vpop.xlane.xlu0 %59
  %v61 = vsel %vm19, %v47, 0.0
  %62 = vadd.xlane.f32.xlu0 %v61
  %v63 = vpop.xlane.xlu0 %62
  %v64 = vsel %vm19, %v48, 0.0
  %65 = vadd.xlane.f32.xlu0 %v64
  %v66 = vpop.xlane.xlu0 %65
  %v67 = vsel %vm19, %v49, 0.0
  %68 = vadd.xlane.f32.xlu0 %v67
  %v69 = vpop.xlane.xlu0 %68
  %v70 = vsel %vm19, %v50, 0.0
  %71 = vadd.xlane.f32.xlu0 %v70
  %v72 = vpop.xlane.xlu0 %71
  %v73 = vsel %vm19, %v51, 0.0
  %74 = vadd.xlane.f32.xlu0 %v73
  %v75 = vpop.xlane.xlu0 %74
  %v76 = vmul.f32 %v22, 0.0625
  %v77 = vmul.f32 %v25, 0.0625
  %v78 = vmul.f32 %v28, 0.0625
  %v79 = vmul.f32 %v31, 0.0625
  %v80 = vmul.f32 %v34, 0.0625
  %v81 = vmul.f32 %v37, 0.0625
  %v82 = vmul.f32 %v40, 0.0625
  %v83 = vmul.f32 %v43, 0.0625
  %v84 = vmul.f32 %v54, 0.0625
  %v85 = vmul.f32 %v57, 0.0625
  %v86 = vmul.f32 %v60, 0.0625
  %v87 = vmul.f32 %v63, 0.0625
  %v88 = vmul.f32 %v66, 0.0625
  %v89 = vmul.f32 %v69, 0.0625
  %v90 = vmul.f32 %v72, 0.0625
  %v91 = vmul.f32 %v75, 0.0625
  %v92 = vmul.f32 %v76, %v76
  %v93 = vmul.f32 %v77, %v77
  %v94 = vmul.f32 %v78, %v78
  %v95 = vmul.f32 %v79, %v79
  %v96 = vmul.f32 %v80, %v80
  %v97 = vmul.f32 %v81, %v81
  %v98 = vmul.f32 %v82, %v82
  %v99 = vmul.f32 %v83, %v83
  %v100 = vsub.f32 %v84, %v92
  %v101 = vsub.f32 %v85, %v93
  %v102 = vsub.f32 %v86, %v94
  %v103 = vsub.f32 %v87, %v95
  %v104 = vsub.f32 %v88, %v96
  %v105 = vsub.f32 %v89, %v97
  %v106 = vsub.f32 %v90, %v98
  %v107 = vsub.f32 %v91, %v99
  %v108 = vmax.f32 %v100, 0.0
  %v109 = vmax.f32 %v101, 0.0
  %v110 = vmax.f32 %v102, 0.0
  %v111 = vmax.f32 %v103, 0.0
  %v112 = vmax.f32 %v104, 0.0
  %v113 = vmax.f32 %v105, 0.0
  %v114 = vmax.f32 %v106, 0.0
  %v115 = vmax.f32 %v107, 0.0
  %v116 = vsub.f32 %v11, %v76
  %v117 = vsub.f32 %v12, %v77
  %v118 = vsub.f32 %v13, %v78
  %v119 = vsub.f32 %v14, %v79
  %v120 = vsub.f32 %v15, %v80
  %v121 = vsub.f32 %v16, %v81
  %v122 = vsub.f32 %v17, %v82
  %v123 = vsub.f32 %v18, %v83
  %v124 = vadd.f32 %v108, 1e-05
  %v125 = vadd.f32 %v109, 1e-05
  %v126 = vadd.f32 %v110, 1e-05
  %v127 = vadd.f32 %v111, 1e-05
  %v128 = vadd.f32 %v112, 1e-05
  %v129 = vadd.f32 %v113, 1e-05
  %v130 = vadd.f32 %v114, 1e-05
  %v131 = vadd.f32 %v115, 1e-05
  %v132 = vrsqrt.pop %v124
  %v133 = vrsqrt.pop %v125
  %v134 = vrsqrt.pop %v126
  %v135 = vrsqrt.pop %v127
  %v136 = vrsqrt.pop %v128
  %v137 = vrsqrt.pop %v129
  %v138 = vrsqrt.pop %v130
  %v139 = vrsqrt.pop %v131
  %v140 = vmul.f32 %v116, %v132
  %v141 = vmul.f32 %v117, %v133
  %v142 = vmul.f32 %v118, %v134
  %v143 = vmul.f32 %v119, %v135
  %v144 = vmul.f32 %v120, %v136
  %v145 = vmul.f32 %v121, %v137
  %v146 = vmul.f32 %v122, %v138
  %v147 = vmul.f32 %v123, %v139
  %v148 = vld [vmem:[%s1] sm:$0xff]
  %v149 = vld [vmem:[%s1 + $0x8] sm:$0xff]
  %v150 = vld [vmem:[%s1 + $0x10] sm:$0xff]
  %v151 = vld [vmem:[%s1 + $0x18] sm:$0xff]
  %v152 = vld [vmem:[%s1 + $0x20] sm:$0xff]
  %v153 = vld [vmem:[%s1 + $0x28] sm:$0xff]
  %v154 = vld [vmem:[%s1 + $0x30] sm:$0xff]
  %v155 = vld [vmem:[%s1 + $0x38] sm:$0xff]
  %v156 = vadd.f32 %v148, %v140
  %v157 = vadd.f32 %v149, %v141
  %v158 = vadd.f32 %v150, %v142
  %v159 = vadd.f32 %v151, %v143
  %v160 = vadd.f32 %v152, %v144
  %v161 = vadd.f32 %v153, %v145
  %v162 = vadd.f32 %v154, %v146
  %v163 = vadd.f32 %v155, %v147
  %164 = vst.msk [vmem:[%s2] sm:$0xff] %vm19, %v156
  %165 = vst.msk [vmem:[%s2 + $0x8] sm:$0xff] %vm19, %v157
  %166 = vst.msk [vmem:[%s2 + $0x10] sm:$0xff] %vm19, %v158
  %167 = vst.msk [vmem:[%s2 + $0x18] sm:$0xff] %vm19, %v159
  %168 = vst.msk [vmem:[%s2 + $0x20] sm:$0xff] %vm19, %v160
  %169 = vst.msk [vmem:[%s2 + $0x28] sm:$0xff] %vm19, %v161
  %170 = vst.msk [vmem:[%s2 + $0x30] sm:$0xff] %vm19, %v162
  %171 = vst.msk [vmem:[%s2 + $0x38] sm:$0xff] %vm19, %v163
  // Predicated region
  $region10: #{resnet_generator_forward.28} parent=0 // pred_check
    _
  $region11: #{resnet_generator_forward.28} parent=0 // pred_check_branch
    %173 = sbr.rel (0) target = $region13
  $region12: #{resnet_generator_forward.28} parent=0 // pred_region
    _
  $region13: #{resnet_generator_forward.28} parent=0 // pred_fallthru
    _
  // Predicated region
  $region14: #{resnet_generator_forward.28} parent=0 // pred_check
    _
  $region15: #{resnet_generator_forward.28} parent=0 // pred_check_branch
    %175 = sbr.rel (0) target = $region17
  $region16: #{resnet_generator_forward.28} parent=0 // pred_region
    _
  $region17: #{resnet_generator_forward.28} parent=0 // pred_fallthru
    _

// kernel: tile.13
$region0: #{tile.13}
  #allocation0 [shape = 's32[1]{0}', space=sflag, size = 0x4, scoped, tag = 'scoped memory for tile.13']
  %s0 = inlined_call_operand.vmem [shape: f32[16], index: 0, kind: input, shape index: {}]
  %s1 = inlined_call_operand.vmem [shape: f32[4,16], index: 1, kind: output, shape index: {}]
  // Predicated region
  $region2: #{tile.13} parent=0 // pred_check
    _
  $region3: #{tile.13} parent=0 // pred_check_branch
    %3 = sbr.rel (0) target = $region5
  $region4: #{tile.13} parent=0 // pred_region
    _
  $region5: #{tile.13} parent=0 // pred_fallthru
    _
  %v4 = vld [vmem:[%s0] ss:$0 sm:$0xff]
  %5 = vst [vmem:[%s1] sm:$0xf] %v4

// kernel: tile.14
$region0: #{tile.14}
  %s0 = inlined_call_operand.vmem [shape: f32[4,16], index: 0, kind: input, shape index: {}]
  %s1 = inlined_call_operand.vmem [shape: f32[1,64], index: 1, kind: output, shape index: {}]
  $region1: #{tile.14} parent=0
    #allocation0 [shape = 'u8[4096]{0}', space=vmem, size = 0x1000, scoped, tag = 'scoped mem for output reshape']
    #allocation1 [shape = 'u8[4096]{0}', space=vmem, size = 0x1000, scoped, tag = 'scoped mem for input reshape']
    %s3 = sshllo.u32 0, 4
    %v4 = vld [vmem:[%s0] sm:%s3]
    %5 = vst [vmem:[#allocation1] sm:%s3] %v4
    %v6 = vld [vmem:[#allocation1] sm:$0x1]
    %vm7 = vcmask 130048
    %8 = vst.msk [vmem:[#allocation0] sm:$0x1] %vm7, %v6
    %s9 = scalar_lea.vmem [#allocation1], 3
    %v10 = vld [vmem:[%s9] sm:$0x1]
    %11 = vrot.lane.b32.xlu0 %v10, 48
    %v12 = vpop.permute.xlu0 %11
    %vm13 = vcmask 523648
    %14 = vst.msk [vmem:[#allocation0] sm:$0x1] %vm13, %v12
    %s15 = scalar_lea.vmem [#allocation1], 2
    %v16 = vld [vmem:[%s15] sm:$0x1]
    %17 = vrot.lane.b32.xlu0 %v16, 32
    %v18 = vpop.permute.xlu0 %17
    %vm19 = vcmask 392448
    %20 = vst.msk [vmem:[#allocation0] sm:$0x1] %vm19, %v18
    %s21 = scalar_lea.vmem [#allocation1], 1
    %v22 = vld [vmem:[%s21] sm:$0x1]
    %23 = vrot.lane.b32.xlu0 %v22, 16
    %v24 = vpop.permute.xlu0 %23
    %vm25 = vcmask 261248
    %26 = vst.msk [vmem:[#allocation0] sm:$0x1] %vm25, %v24
    %s28 = sshllo.u32 0, 1
    %v30 = vld [vmem:[#allocation0] sm:%s28]
    %s31 = sshllo.u32 0, 1
    %32 = vst [vmem:[%s1] sm:%s31] %v30

// kernel: resnet_generator_forward.33
$region0: #{resnet_generator_forward.33}
  #allocation0 [shape = 'u32[]', space=smem, size = 0x4, offset = 0x4, fixed_abs, tag = 'smem constant byte address 0x4 - core index']
  #allocation1 [shape = 'u32[144,128]{1,0:T(1,128)}', space=vmem, size = 0x12000, scoped, tag = 'internal scratch']
  %s0 = inlined_call_operand.vmem [shape: bf16[32,128], index: 0, kind: input, shape index: {}]
  %s1 = inlined_call_operand.vmem [shape: bf16[128,128], index: 1, kind: input, shape index: {}]
  %s2 = inlined_call_operand.vmem [shape: f32[1,128], index: 2, kind: input, shape index: {}]
  %s3 = inlined_call_operand.vmem [shape: f32[32,128], index: 3, kind: output, shape index: {}]
  %s4 = sld [smem:[#allocation0]]
  $region22: #{resnet_generator_forward.33} parent=0
    _
  %s6 = ssub.s32 1, %s4
  %s7 = scalar_select 0, %s6, %s4
  // Predicated region
  $region2: #{resnet_generator_forward.33} parent=0 // pred_check
    _
  $region3: #{resnet_generator_forward.33} parent=0 // pred_check_branch
    %9 = sbr.rel (0) target = $region5
  $region4: #{resnet_generator_forward.33} parent=0 // pred_region
    _
  $region5: #{resnet_generator_forward.33} parent=0 // pred_fallthru
    _
  // Predicated region
  $region6: #{resnet_generator_forward.33} parent=0 // pred_check
    _
  $region7: #{resnet_generator_forward.33} parent=0 // pred_check_branch
    %11 = sbr.rel (0) target = $region9
  $region8: #{resnet_generator_forward.33} parent=0 // pred_region
    _
  $region9: #{resnet_generator_forward.33} parent=0 // pred_fallthru
    _
  // Predicated region
  $region10: #{resnet_generator_forward.33} parent=0 // pred_check
    _
  $region11: #{resnet_generator_forward.33} parent=0 // pred_check_branch
    %13 = sbr.rel (0) target = $region13
  $region12: #{resnet_generator_forward.33} parent=0 // pred_region
    _
  $region13: #{resnet_generator_forward.33} parent=0 // pred_fallthru
    _
  %v15 = vld [vmem:[%s0] sm:$0xf]
  %v16 = vld [vmem:[%s0 + $0x4] sm:$0xf]
  %v17 = vld [vmem:[%s0 + $0x8] sm:$0xf]
  %v18 = vld [vmem:[%s0 + $0xc] sm:$0xf]
  %v19 = vld [vmem:[%s1] sm:$0xf]
  %v20 = vld [vmem:[%s1 + $0x4] sm:$0xf]
  %v21 = vld [vmem:[%s1 + $0x8] sm:$0xf]
  %v22 = vld [vmem:[%s1 + $0xc] sm:$0xf]
  %v23 = vld [vmem:[%s1 + $0x10] sm:$0xf]
  %v24 = vld [vmem:[%s1 + $0x14] sm:$0xf]
  %v25 = vld [vmem:[%s1 + $0x18] sm:$0xf]
  %v26 = vld [vmem:[%s1 + $0x1c] sm:$0xf]
  %v27 = vld [vmem:[%s1 + $0x20] sm:$0xf]
  %v28 = vld [vmem:[%s1 + $0x24] sm:$0xf]
  %v29 = vld [vmem:[%s1 + $0x28] sm:$0xf]
  %v30 = vld [vmem:[%s1 + $0x2c] sm:$0xf]
  %v31 = vld [vmem:[%s1 + $0x30] sm:$0xf]
  %v32 = vld [vmem:[%s1 + $0x34] sm:$0xf]
  %v33 = vld [vmem:[%s1 + $0x38] sm:$0xf]
  %v34 = vld [vmem:[%s1 + $0x3c] sm:$0xf]
  %v35 = vld [vmem:[%s2] sm:$0x1]
  %v37 = vlaneseq
  %v38 = vshrl.u32 %v37, 7
  %v39 = vsub.s32 0, %v38
  %v40 = vrot.slane %v35, %v39
  %v46 = vunpack.c.l.b16 %v15
  %v47 = vunpack.c.l.b16 %v16
  %v48 = vunpack.c.l.b16 %v17
  %v49 = vunpack.c.l.b16 %v18
  %v50 = vpack.c.b16 %v47, %v46
  %v51 = vpack.c.b16 %v49, %v48
  %v70 = vunpack.c.l.b16 %v19
  %v71 = vunpack.c.l.b16 %v20
  %v72 = vunpack.c.l.b16 %v21
  %v73 = vunpack.c.l.b16 %v22
  %v74 = vunpack.c.l.b16 %v23
  %v75 = vunpack.c.l.b16 %v24
  %v76 = vunpack.c.l.b16 %v25
  %v77 = vunpack.c.l.b16 %v26
  %v78 = vunpack.c.l.b16 %v27
  %v79 = vunpack.c.l.b16 %v28
  %v80 = vunpack.c.l.b16 %v29
  %v81 = vunpack.c.l.b16 %v30
  %v82 = vunpack.c.l.b16 %v31
  %v83 = vunpack.c.l.b16 %v32
  %v84 = vunpack.c.l.b16 %v33
  %v85 = vunpack.c.l.b16 %v34
  %v86 = vpack.c.b16 %v71, %v70
  %v87 = vpack.c.b16 %v73, %v72
  %v88 = vpack.c.b16 %v75, %v74
  %v89 = vpack.c.b16 %v77, %v76
  %v90 = vpack.c.b16 %v79, %v78
  %v91 = vpack.c.b16 %v81, %v80
  %v92 = vpack.c.b16 %v83, %v82
  %v93 = vpack.c.b16 %v85, %v84
  %102 = vmatprep.subr.bf16.mxu0 0
  %103 = vmatpush1.bf16.msra.mxu0 %v86
  %104 = vmatprep.subr.bf16.mxu0 0
  %105 = vmatpush1.bf16.msra.mxu0 %v87
  %106 = vmatprep.subr.bf16.mxu0 0
  %107 = vmatpush1.bf16.msra.mxu0 %v88
  %108 = vmatprep.subr.bf16.mxu0 0
  %109 = vmatpush1.bf16.msra.mxu0 %v89
  %110 = vmatprep.subr.bf16.mxu0 0
  %111 = vmatpush1.bf16.msra.mxu0 %v90
  %112 = vmatprep.subr.bf16.mxu0 0
  %113 = vmatpush1.bf16.msra.mxu0 %v91
  %114 = vmatprep.subr.bf16.mxu0 0
  %115 = vmatpush1.bf16.msra.mxu0 %v92
  %116 = vmatprep.subr.bf16.mxu0 0
  %117 = vmatpush1.bf16.msra.mxu0 %v93
  %118 = vmatprep.subr.bf16.mxu0 0
  %119 = vmatpush1.bf16.msra.mxu0 0
  %120 = vmatprep.subr.bf16.mxu0 0
  %121 = vmatpush1.bf16.msra.mxu0 0
  %122 = vmatprep.subr.bf16.mxu0 0
  %123 = vmatpush1.bf16.msra.mxu0 0
  %124 = vmatprep.subr.bf16.mxu0 0
  %125 = vmatpush1.bf16.msra.mxu0 0
  %126 = vmatprep.subr.bf16.mxu0 0
  %127 = vmatpush1.bf16.msra.mxu0 0
  %128 = vmatprep.subr.bf16.mxu0 0
  %129 = vmatpush1.bf16.msra.mxu0 0
  %130 = vmatprep.subr.bf16.mxu0 0
  %131 = vmatpush1.bf16.msra.mxu0 0
  %132 = vmatprep.subr.bf16.mxu0 0
  %133 = vmatpush1.bf16.msra.mxu0 0
  %134 = vmatprep.mubr.bf16.mxu0 0
  %135 = vmatmul.mubr.bf16.gmra.mrb[0].mxu0 %v50
  %v136 = vpop.f32.mrb[0].mxu0
  %v137 = vadd.f32 %v40, %v136
  %v138 = vpop.f32.mrb[0].mxu0
  %v139 = vpop.f32.mrb[0].mxu0
  %v140 = vadd.f32 %v40, %v139
  %v141 = vpop.f32.mrb[0].mxu0
  %142 = vmatprep.mubr.bf16.mxu0 0
  %143 = vmatmul.mubr.bf16.gmra.mrb[0].mxu0 %v51
  %v144 = vpop.f32.mrb[0].mxu0
  %v145 = vadd.f32 %v40, %v144
  %v146 = vpop.f32.mrb[0].mxu0
  %v147 = vpop.f32.mrb[0].mxu0
  %v148 = vadd.f32 %v40, %v147
  %v149 = vpop.f32.mrb[0].mxu0
  %150 = vdwg.mxu0
  %151 = vst [vmem:[%s3] sm:$0xff] %v137
  %152 = vst [vmem:[%s3 + $0x8] sm:$0xff] %v140
  %153 = vst [vmem:[%s3 + $0x10] sm:$0xff] %v145
  %154 = vst [vmem:[%s3 + $0x18] sm:$0xff] %v148
  // Predicated region
  $region14: #{resnet_generator_forward.33} parent=0 // pred_check
    _
  $region15: #{resnet_generator_forward.33} parent=0 // pred_check_branch
    %156 = sbr.rel (0) target = $region17
  $region16: #{resnet_generator_forward.33} parent=0 // pred_region
    _
  $region17: #{resnet_generator_forward.33} parent=0 // pred_fallthru
    _
  // Predicated region
  $region18: #{resnet_generator_forward.33} parent=0 // pred_check
    _
  $region19: #{resnet_generator_forward.33} parent=0 // pred_check_branch
    %158 = sbr.rel (0) target = $region21
  $region20: #{resnet_generator_forward.33} parent=0 // pred_region
    _
  $region21: #{resnet_generator_forward.33} parent=0 // pred_fallthru
    _

// kernel: tile.18
$region0: #{tile.18}
  #allocation0 [shape = 's32[1]{0}', space=sflag, size = 0x4, scoped, tag = 'scoped memory for tile.18']
  %s0 = inlined_call_operand.vmem [shape: f32[8], index: 0, kind: input, shape index: {}]
  %s1 = inlined_call_operand.vmem [shape: f32[4,8], index: 1, kind: output, shape index: {}]
  // Predicated region
  $region2: #{tile.18} parent=0 // pred_check
    _
  $region3: #{tile.18} parent=0 // pred_check_branch
    %3 = sbr.rel (0) target = $region5
  $region4: #{tile.18} parent=0 // pred_region
    _
  $region5: #{tile.18} parent=0 // pred_fallthru
    _
  %v4 = vld [vmem:[%s0] ss:$0 sm:$0xff]
  %5 = vst [vmem:[%s1] sm:$0xf] %v4

// kernel: tile.19
$region0: #{tile.19}
  %s0 = inlined_call_operand.vmem [shape: f32[4,8], index: 0, kind: input, shape index: {}]
  %s1 = inlined_call_operand.vmem [shape: f32[1,32], index: 1, kind: output, shape index: {}]
  $region1: #{tile.19} parent=0
    #allocation0 [shape = 'u8[4096]{0}', space=vmem, size = 0x1000, scoped, tag = 'scoped mem for output reshape']
    #allocation1 [shape = 'u8[4096]{0}', space=vmem, size = 0x1000, scoped, tag = 'scoped mem for input reshape']
    %s3 = sshllo.u32 0, 4
    %v4 = vld [vmem:[%s0] sm:%s3]
    %5 = vst [vmem:[#allocation1] sm:%s3] %v4
    %v6 = vld [vmem:[#allocation1] sm:$0x1]
    %vm7 = vcmask 64512
    %8 = vst.msk [vmem:[#allocation0] sm:$0x1] %vm7, %v6
    %s9 = scalar_lea.vmem [#allocation1], 3
    %v10 = vld [vmem:[%s9] sm:$0x1]
    %11 = vrot.lane.b32.xlu0 %v10, 24
    %v12 = vpop.permute.xlu0 %11
    %vm13 = vcmask 261312
    %14 = vst.msk [vmem:[#allocation0] sm:$0x1] %vm13, %v12
    %s15 = scalar_lea.vmem [#allocation1], 2
    %v16 = vld [vmem:[%s15] sm:$0x1]
    %17 = vrot.lane.b32.xlu0 %v16, 16
    %v18 = vpop.permute.xlu0 %17
    %vm19 = vcmask 195712
    %20 = vst.msk [vmem:[#allocation0] sm:$0x1] %vm19, %v18
    %s21 = scalar_lea.vmem [#allocation1], 1
    %v22 = vld [vmem:[%s21] sm:$0x1]
    %23 = vrot.lane.b32.xlu0 %v22, 8
    %v24 = vpop.permute.xlu0 %23
    %vm25 = vcmask 130112
    %26 = vst.msk [vmem:[#allocation0] sm:$0x1] %vm25, %v24
    %s28 = sshllo.u32 0, 1
    %v30 = vld [vmem:[#allocation0] sm:%s28]
    %s31 = sshllo.u32 0, 1
    %32 = vst [vmem:[%s1] sm:%s31] %v30

// kernel: resnet_generator_forward.35
$region0: #{resnet_generator_forward.35}
  #allocation0 [shape = 'u32[]', space=smem, size = 0x4, offset = 0x4, fixed_abs, tag = 'smem constant byte address 0x4 - core index']
  #allocation1 [shape = 'u32[144,128]{1,0:T(1,128)}', space=vmem, size = 0x12000, scoped, tag = 'internal scratch']
  %s0 = inlined_call_operand.vmem [shape: bf16[128,64], index: 0, kind: input, shape index: {}]
  %s1 = inlined_call_operand.vmem [shape: bf16[64,128], index: 1, kind: input, shape index: {}]
  %s2 = inlined_call_operand.vmem [shape: f32[1,128], index: 2, kind: input, shape index: {}]
  %s3 = inlined_call_operand.vmem [shape: f32[128,128], index: 3, kind: output, shape index: {}]
  %s4 = sld [smem:[#allocation0]]
  $region22: #{resnet_generator_forward.35} parent=0
    _
  %s6 = ssub.s32 1, %s4
  %s7 = scalar_select 0, %s6, %s4
  // Predicated region
  $region2: #{resnet_generator_forward.35} parent=0 // pred_check
    _
  $region3: #{resnet_generator_forward.35} parent=0 // pred_check_branch
    %9 = sbr.rel (0) target = $region5
  $region4: #{resnet_generator_forward.35} parent=0 // pred_region
    _
  $region5: #{resnet_generator_forward.35} parent=0 // pred_fallthru
    _
  // Predicated region
  $region6: #{resnet_generator_forward.35} parent=0 // pred_check
    _
  $region7: #{resnet_generator_forward.35} parent=0 // pred_check_branch
    %11 = sbr.rel (0) target = $region9
  $region8: #{resnet_generator_forward.35} parent=0 // pred_region
    _
  $region9: #{resnet_generator_forward.35} parent=0 // pred_fallthru
    _
  // Predicated region
  $region10: #{resnet_generator_forward.35} parent=0 // pred_check
    _
  $region11: #{resnet_generator_forward.35} parent=0 // pred_check_branch
    %13 = sbr.rel (0) target = $region13
  $region12: #{resnet_generator_forward.35} parent=0 // pred_region
    _
  $region13: #{resnet_generator_forward.35} parent=0 // pred_fallthru
    _
  %v15 = vld [vmem:[%s0] sm:$0xf]
  %v16 = vld [vmem:[%s0 + $0x4] sm:$0xf]
  %v17 = vld [vmem:[%s0 + $0x8] sm:$0xf]
  %v18 = vld [vmem:[%s0 + $0xc] sm:$0xf]
  %v19 = vld [vmem:[%s0 + $0x10] sm:$0xf]
  %v20 = vld [vmem:[%s0 + $0x14] sm:$0xf]
  %v21 = vld [vmem:[%s0 + $0x18] sm:$0xf]
  %v22 = vld [vmem:[%s0 + $0x1c] sm:$0xf]
  %v23 = vld [vmem:[%s0 + $0x20] sm:$0xf]
  %v24 = vld [vmem:[%s0 + $0x24] sm:$0xf]
  %v25 = vld [vmem:[%s0 + $0x28] sm:$0xf]
  %v26 = vld [vmem:[%s0 + $0x2c] sm:$0xf]
  %v27 = vld [vmem:[%s0 + $0x30] sm:$0xf]
  %v28 = vld [vmem:[%s0 + $0x34] sm:$0xf]
  %v29 = vld [vmem:[%s0 + $0x38] sm:$0xf]
  %v30 = vld [vmem:[%s0 + $0x3c] sm:$0xf]
  %v31 = vld [vmem:[%s1] sm:$0xf]
  %v32 = vld [vmem:[%s1 + $0x4] sm:$0xf]
  %v33 = vld [vmem:[%s1 + $0x8] sm:$0xf]
  %v34 = vld [vmem:[%s1 + $0xc] sm:$0xf]
  %v35 = vld [vmem:[%s1 + $0x10] sm:$0xf]
  %v36 = vld [vmem:[%s1 + $0x14] sm:$0xf]
  %v37 = vld [vmem:[%s1 + $0x18] sm:$0xf]
  %v38 = vld [vmem:[%s1 + $0x1c] sm:$0xf]
  %v39 = vld [vmem:[%s2] sm:$0x1]
  %v41 = vlaneseq
  %v42 = vshrl.u32 %v41, 7
  %v43 = vsub.s32 0, %v42
  %v44 = vrot.slane %v39, %v43
  %v62 = vunpack.c.l.b16 %v15
  %v63 = vunpack.c.l.b16 %v16
  %v64 = vunpack.c.l.b16 %v17
  %v65 = vunpack.c.l.b16 %v18
  %v66 = vunpack.c.l.b16 %v19
  %v67 = vunpack.c.l.b16 %v20
  %v68 = vunpack.c.l.b16 %v21
  %v69 = vunpack.c.l.b16 %v22
  %v70 = vunpack.c.l.b16 %v23
  %v71 = vunpack.c.l.b16 %v24
  %v72 = vunpack.c.l.b16 %v25
  %v73 = vunpack.c.l.b16 %v26
  %v74 = vunpack.c.l.b16 %v27
  %v75 = vunpack.c.l.b16 %v28
  %v76 = vunpack.c.l.b16 %v29
  %v77 = vunpack.c.l.b16 %v30
  %v78 = vpack.c.b16 %v63, %v62
  %v79 = vpack.c.b16 %v65, %v64
  %v80 = vpack.c.b16 %v67, %v66
  %v81 = vpack.c.b16 %v69, %v68
  %v82 = vpack.c.b16 %v71, %v70
  %v83 = vpack.c.b16 %v73, %v72
  %v84 = vpack.c.b16 %v75, %v74
  %v85 = vpack.c.b16 %v77, %v76
  %v94 = vunpack.c.l.b16 %v31
  %v95 = vunpack.c.l.b16 %v32
  %v96 = vunpack.c.l.b16 %v33
  %v97 = vunpack.c.l.b16 %v34
  %v98 = vunpack.c.l.b16 %v35
  %v99 = vunpack.c.l.b16 %v36
  %v100 = vunpack.c.l.b16 %v37
  %v101 = vunpack.c.l.b16 %v38
  %v102 = vpack.c.b16 %v95, %v94
  %v103 = vpack.c.b16 %v97, %v96
  %v104 = vpack.c.b16 %v99, %v98
  %v105 = vpack.c.b16 %v101, %v100
  %vm110 = vcmask 523264
  %v112 = vsel %vm110, %v78, 0
  %v115 = vsel %vm110, %v79, 0
  %v118 = vsel %vm110, %v80, 0
  %v121 = vsel %vm110, %v81, 0
  %v124 = vsel %vm110, %v82, 0
  %v127 = vsel %vm110, %v83, 0
  %v130 = vsel %vm110, %v84, 0
  %v133 = vsel %vm110, %v85, 0
  %135 = vmatprep.subr.bf16.mxu0 0
  %136 = vmatpush1.bf16.msra.mxu0 %v102
  %137 = vmatprep.subr.bf16.mxu0 0
  %138 = vmatpush1.bf16.msra.mxu0 %v103
  %139 = vmatprep.subr.bf16.mxu0 0
  %140 = vmatpush1.bf16.msra.mxu0 %v104
  %141 = vmatprep.subr.bf16.mxu0 0
  %142 = vmatpush1.bf16.msra.mxu0 %v105
  %143 = vmatprep.subr.bf16.mxu0 0
  %144 = vmatpush1.bf16.msra.mxu0 0
  %145 = vmatprep.subr.bf16.mxu0 0
  %146 = vmatpush1.bf16.msra.mxu0 0
  %147 = vmatprep.subr.bf16.mxu0 0
  %148 = vmatpush1.bf16.msra.mxu0 0
  %149 = vmatprep.subr.bf16.mxu0 0
  %150 = vmatpush1.bf16.msra.mxu0 0
  %151 = vmatprep.subr.bf16.mxu0 0
  %152 = vmatpush1.bf16.msra.mxu0 0
  %153 = vmatprep.subr.bf16.mxu0 0
  %154 = vmatpush1.bf16.msra.mxu0 0
  %155 = vmatprep.subr.bf16.mxu0 0
  %156 = vmatpush1.bf16.msra.mxu0 0
  %157 = vmatprep.subr.bf16.mxu0 0
  %158 = vmatpush1.bf16.msra.mxu0 0
  %159 = vmatprep.subr.bf16.mxu0 0
  %160 = vmatpush1.bf16.msra.mxu0 0
  %161 = vmatprep.subr.bf16.mxu0 0
  %162 = vmatpush1.bf16.msra.mxu0 0
  %163 = vmatprep.subr.bf16.mxu0 0
  %164 = vmatpush1.bf16.msra.mxu0 0
  %165 = vmatprep.subr.bf16.mxu0 0
  %166 = vmatpush1.bf16.msra.mxu0 0
  %167 = vmatprep.mubr.bf16.mxu0 0
  %168 = vmatmul.mubr.bf16.gmra.mrb[0].mxu0 %v112
  %v169 = vpop.f32.mrb[0].mxu0
  %v170 = vadd.f32 %v44, %v169
  %v171 = vpop.f32.mrb[0].mxu0
  %v172 = vpop.f32.mrb[0].mxu0
  %v173 = vadd.f32 %v44, %v172
  %v174 = vpop.f32.mrb[0].mxu0
  %175 = vmatprep.mubr.bf16.mxu0 0
  %176 = vmatmul.mubr.bf16.gmra.mrb[0].mxu0 %v115
  %v177 = vpop.f32.mrb[0].mxu0
  %v178 = vadd.f32 %v44, %v177
  %v179 = vpop.f32.mrb[0].mxu0
  %v180 = vpop.f32.mrb[0].mxu0
  %v181 = vadd.f32 %v44, %v180
  %v182 = vpop.f32.mrb[0].mxu0
  %183 = vmatprep.mubr.bf16.mxu0 0
  %184 = vmatmul.mubr.bf16.gmra.mrb[0].mxu0 %v118
  %v185 = vpop.f32.mrb[0].mxu0
  %v186 = vadd.f32 %v44, %v185
  %v187 = vpop.f32.mrb[0].mxu0
  %v188 = vpop.f32.mrb[0].mxu0
  %v189 = vadd.f32 %v44, %v188
  %v190 = vpop.f32.mrb[0].mxu0
  %191 = vmatprep.mubr.bf16.mxu0 0
  %192 = vmatmul.mubr.bf16.gmra.mrb[0].mxu0 %v121
  %v193 = vpop.f32.mrb[0].mxu0
  %v194 = vadd.f32 %v44, %v193
  %v195 = vpop.f32.mrb[0].mxu0
  %v196 = vpop.f32.mrb[0].mxu0
  %v197 = vadd.f32 %v44, %v196
  %v198 = vpop.f32.mrb[0].mxu0
  %199 = vmatprep.mubr.bf16.mxu0 0
  %200 = vmatmul.mubr.bf16.gmra.mrb[0].mxu0 %v124
  %v201 = vpop.f32.mrb[0].mxu0
  %v202 = vadd.f32 %v44, %v201
  %v203 = vpop.f32.mrb[0].mxu0
  %v204 = vpop.f32.mrb[0].mxu0
  %v205 = vadd.f32 %v44, %v204
  %v206 = vpop.f32.mrb[0].mxu0
  %207 = vmatprep.mubr.bf16.mxu0 0
  %208 = vmatmul.mubr.bf16.gmra.mrb[0].mxu0 %v127
  %v209 = vpop.f32.mrb[0].mxu0
  %v210 = vadd.f32 %v44, %v209
  %v211 = vpop.f32.mrb[0].mxu0
  %v212 = vpop.f32.mrb[0].mxu0
  %v213 = vadd.f32 %v44, %v212
  %v214 = vpop.f32.mrb[0].mxu0
  %215 = vmatprep.mubr.bf16.mxu0 0
  %216 = vmatmul.mubr.bf16.gmra.mrb[0].mxu0 %v130
  %v217 = vpop.f32.mrb[0].mxu0
  %v218 = vadd.f32 %v44, %v217
  %v219 = vpop.f32.mrb[0].mxu0
  %v220 = vpop.f32.mrb[0].mxu0
  %v221 = vadd.f32 %v44, %v220
  %v222 = vpop.f32.mrb[0].mxu0
  %223 = vmatprep.mubr.bf16.mxu0 0
  %224 = vmatmul.mubr.bf16.gmra.mrb[0].mxu0 %v133
  %v225 = vpop.f32.mrb[0].mxu0
  %v226 = vadd.f32 %v44, %v225
  %v227 = vpop.f32.mrb[0].mxu0
  %v228 = vpop.f32.mrb[0].mxu0
  %v229 = vadd.f32 %v44, %v228
  %v230 = vpop.f32.mrb[0].mxu0
  %231 = vdwg.mxu0
  %232 = vst [vmem:[%s3] sm:$0xff] %v170
  %233 = vst [vmem:[%s3 + $0x8] sm:$0xff] %v173
  %234 = vst [vmem:[%s3 + $0x10] sm:$0xff] %v178
  %235 = vst [vmem:[%s3 + $0x18] sm:$0xff] %v181
  %236 = vst [vmem:[%s3 + $0x20] sm:$0xff] %v186
  %237 = vst [vmem:[%s3 + $0x28] sm:$0xff] %v189
  %238 = vst [vmem:[%s3 + $0x30] sm:$0xff] %v194
  %239 = vst [vmem:[%s3 + $0x38] sm:$0xff] %v197
  %240 = vst [vmem:[%s3 + $0x40] sm:$0xff] %v202
  %241 = vst [vmem:[%s3 + $0x48] sm:$0xff] %v205
  %242 = vst [vmem:[%s3 + $0x50] sm:$0xff] %v210
  %243 = vst [vmem:[%s3 + $0x58] sm:$0xff] %v213
  %244 = vst [vmem:[%s3 + $0x60] sm:$0xff] %v218
  %245 = vst [vmem:[%s3 + $0x68] sm:$0xff] %v221
  %246 = vst [vmem:[%s3 + $0x70] sm:$0xff] %v226
  %247 = vst [vmem:[%s3 + $0x78] sm:$0xff] %v229
  // Predicated region
  $region14: #{resnet_generator_forward.35} parent=0 // pred_check
    _
  $region15: #{resnet_generator_forward.35} parent=0 // pred_check_branch
    %249 = sbr.rel (0) target = $region17
  $region16: #{resnet_generator_forward.35} parent=0 // pred_region
    _
  $region17: #{resnet_generator_forward.35} parent=0 // pred_fallthru
    _
  // Predicated region
  $region18: #{resnet_generator_forward.35} parent=0 // pred_check
    _
  $region19: #{resnet_generator_forward.35} parent=0 // pred_check_branch
    %251 = sbr.rel (0) target = $region21
  $region20: #{resnet_generator_forward.35} parent=0 // pred_region
    _
  $region21: #{resnet_generator_forward.35} parent=0 // pred_fallthru
    _

// kernel: resnet_generator_forward.37
$region0: #{resnet_generator_forward.37}
  #allocation0 [shape = 'u32[]', space=smem, size = 0x4, offset = 0x4, fixed_abs, tag = 'smem constant byte address 0x4 - core index']
  #allocation1 [shape = 'u32[144,128]{1,0:T(1,128)}', space=vmem, size = 0x12000, scoped, tag = 'internal scratch']
  %s0 = inlined_call_operand.vmem [shape: bf16[512,392], index: 0, kind: input, shape index: {}]
  %s1 = inlined_call_operand.vmem [shape: bf16[392,128], index: 1, kind: input, shape index: {}]
  %s2 = inlined_call_operand.vmem [shape: f32[1,128], index: 2, kind: input, shape index: {}]
  %s3 = inlined_call_operand.vmem [shape: f32[512,128], index: 3, kind: output, shape index: {}]
  %s4 = sld [smem:[#allocation0]]
  $region22: #{resnet_generator_forward.37} parent=0
    _
  %s6 = ssub.s32 1, %s4
  %s7 = scalar_select 0, %s6, %s4
  // Predicated region
  $region2: #{resnet_generator_forward.37} parent=0 // pred_check
    _
  $region3: #{resnet_generator_forward.37} parent=0 // pred_check_branch
    %9 = sbr.rel (0) target = $region5
  $region4: #{resnet_generator_forward.37} parent=0 // pred_region
    _
  $region5: #{resnet_generator_forward.37} parent=0 // pred_fallthru
    _
  // Predicated region
  $region6: #{resnet_generator_forward.37} parent=0 // pred_check
    _
  $region7: #{resnet_generator_forward.37} parent=0 // pred_check_branch
    %11 = sbr.rel (0) target = $region9
  $region8: #{resnet_generator_forward.37} parent=0 // pred_region
    _
  $region9: #{resnet_generator_forward.37} parent=0 // pred_fallthru
    _
  // Predicated region
  $region10: #{resnet_generator_forward.37} parent=0 // pred_check
    _
  $region11: #{resnet_generator_forward.37} parent=0 // pred_check_branch
    %13 = sbr.rel (0) target = $region13
  $region12: #{resnet_generator_forward.37} parent=0 // pred_region
    _
  $region13: #{resnet_generator_forward.37} parent=0 // pred_fallthru
    _
  %v15 = vld [vmem:[%s0] sm:$0xff]
  %v16 = vld [vmem:[%s0 + $0x8] sm:$0xff]
  %v17 = vld [vmem:[%s0 + $0x10] sm:$0xff]
  %v18 = vld [vmem:[%s0 + $0x18] sm:$0xff]
  %v19 = vld [vmem:[%s0 + $0x20] sm:$0xff]
  %v20 = vld [vmem:[%s0 + $0x28] sm:$0xff]
  %v21 = vld [vmem:[%s0 + $0x30] sm:$0xff]
  %v22 = vld [vmem:[%s0 + $0x38] sm:$0xff]
  %v23 = vld [vmem:[%s0 + $0x40] sm:$0xff]
  %v24 = vld [vmem:[%s0 + $0x48] sm:$0xff]
  %v25 = vld [vmem:[%s0 + $0x50] sm:$0xff]
  %v26 = vld [vmem:[%s0 + $0x58] sm:$0xff]
  %v27 = vld [vmem:[%s0 + $0x60] sm:$0xff]
  %v28 = vld [vmem:[%s0 + $0x68] sm:$0xff]
  %v29 = vld [vmem:[%s0 + $0x70] sm:$0xff]
  %v30 = vld [vmem:[%s0 + $0x78] sm:$0xff]
  %v31 = vld [vmem:[%s0 + $0x80] sm:$0xff]
  %v32 = vld [vmem:[%s0 + $0x88] sm:$0xff]
  %v33 = vld [vmem:[%s0 + $0x90] sm:$0xff]
  %v34 = vld [vmem:[%s0 + $0x98] sm:$0xff]
  %v35 = vld [vmem:[%s0 + $0xa0] sm:$0xff]
  %v36 = vld [vmem:[%s0 + $0xa8] sm:$0xff]
  %v37 = vld [vmem:[%s0 + $0xb0] sm:$0xff]
  %v38 = vld [vmem:[%s0 + $0xb8] sm:$0xff]
  %v39 = vld [vmem:[%s0 + $0xc0] sm:$0xff]
  %v40 = vld [vmem:[%s0 + $0xc8] sm:$0xff]
  %v41 = vld [vmem:[%s0 + $0xd0] sm:$0xff]
  %v42 = vld [vmem:[%s0 + $0xd8] sm:$0xff]
  %v43 = vld [vmem:[%s0 + $0xe0] sm:$0xff]
  %v44 = vld [vmem:[%s0 + $0xe8] sm:$0xff]
  %v45 = vld [vmem:[%s0 + $0xf0] sm:$0xff]
  %v46 = vld [vmem:[%s0 + $0xf8] sm:$0xff]
  %v47 = vld [vmem:[%s0 + $0x100] sm:$0xff]
  %v48 = vld [vmem:[%s0 + $0x108] sm:$0xff]
  %v49 = vld [vmem:[%s0 + $0x110] sm:$0xff]
  %v50 = vld [vmem:[%s0 + $0x118] sm:$0xff]
  %v51 = vld [vmem:[%s0 + $0x120] sm:$0xff]
  %v52 = vld [vmem:[%s0 + $0x128] sm:$0xff]
  %v53 = vld [vmem:[%s0 + $0x130] sm:$0xff]
  %v54 = vld [vmem:[%s0 + $0x138] sm:$0xff]
  %v55 = vld [vmem:[%s0 + $0x140] sm:$0xff]
  %v56 = vld [vmem:[%s0 + $0x148] sm:$0xff]
  %v57 = vld [vmem:[%s0 + $0x150] sm:$0xff]
  %v58 = vld [vmem:[%s0 + $0x158] sm:$0xff]
  %v59 = vld [vmem:[%s0 + $0x160] sm:$0xff]
  %v60 = vld [vmem:[%s0 + $0x168] sm:$0xff]
  %v61 = vld [vmem:[%s0 + $0x170] sm:$0xff]
  %v62 = vld [vmem:[%s0 + $0x178] sm:$0xff]
  %v63 = vld [vmem:[%s0 + $0x180] sm:$0xff]
  %v64 = vld [vmem:[%s0 + $0x188] sm:$0xff]
  %v65 = vld [vmem:[%s0 + $0x190] sm:$0xff]
  %v66 = vld [vmem:[%s0 + $0x198] sm:$0xff]
  %v67 = vld [vmem:[%s0 + $0x1a0] sm:$0xff]
  %v68 = vld [vmem:[%s0 + $0x1a8] sm:$0xff]
  %v69 = vld [vmem:[%s0 + $0x1b0] sm:$0xff]
  %v70 = vld [vmem:[%s0 + $0x1b8] sm:$0xff]
  %v71 = vld [vmem:[%s0 + $0x1c0] sm:$0xff]
  %v72 = vld [vmem:[%s0 + $0x1c8] sm:$0xff]
  %v73 = vld [vmem:[%s0 + $0x1d0] sm:$0xff]
  %v74 = vld [vmem:[%s0 + $0x1d8] sm:$0xff]
  %v75 = vld [vmem:[%s0 + $0x1e0] sm:$0xff]
  %v76 = vld [vmem:[%s0 + $0x1e8] sm:$0xff]
  %v77 = vld [vmem:[%s0 + $0x1f0] sm:$0xff]
  %v78 = vld [vmem:[%s0 + $0x1f8] sm:$0xff]
  %v79 = vld [vmem:[%s0 + $0x200] sm:$0xff]
  %v80 = vld [vmem:[%s0 + $0x208] sm:$0xff]
  %v81 = vld [vmem:[%s0 + $0x210] sm:$0xff]
  %v82 = vld [vmem:[%s0 + $0x218] sm:$0xff]
  %v83 = vld [vmem:[%s0 + $0x220] sm:$0xff]
  %v84 = vld [vmem:[%s0 + $0x228] sm:$0xff]
  %v85 = vld [vmem:[%s0 + $0x230] sm:$0xff]
  %v86 = vld [vmem:[%s0 + $0x238] sm:$0xff]
  %v87 = vld [vmem:[%s0 + $0x240] sm:$0xff]
  %v88 = vld [vmem:[%s0 + $0x248] sm:$0xff]
  %v89 = vld [vmem:[%s0 + $0x250] sm:$0xff]
  %v90 = vld [vmem:[%s0 + $0x258] sm:$0xff]
  %v91 = vld [vmem:[%s0 + $0x260] sm:$0xff]
  %v92 = vld [vmem:[%s0 + $0x268] sm:$0xff]
  %v93 = vld [vmem:[%s0 + $0x270] sm:$0xff]
  %v94 = vld [vmem:[%s0 + $0x278] sm:$0xff]
  %v95 = vld [vmem:[%s0 + $0x280] sm:$0xff]
  %v96 = vld [vmem:[%s0 + $0x288] sm:$0xff]
  %v97 = vld [vmem:[%s0 + $0x290] sm:$0xff]
  %v98 = vld [vmem:[%s0 + $0x298] sm:$0xff]
  %v99 = vld [vmem:[%s0 + $0x2a0] sm:$0xff]
  %v100 = vld [vmem:[%s0 + $0x2a8] sm:$0xff]
  %v101 = vld [vmem:[%s0 + $0x2b0] sm:$0xff]
  %v102 = vld [vmem:[%s0 + $0x2b8] sm:$0xff]
  %v103 = vld [vmem:[%s0 + $0x2c0] sm:$0xff]
  %v104 = vld [vmem:[%s0 + $0x2c8] sm:$0xff]
  %v105 = vld [vmem:[%s0 + $0x2d0] sm:$0xff]
  %v106 = vld [vmem:[%s0 + $0x2d8] sm:$0xff]
  %v107 = vld [vmem:[%s0 + $0x2e0] sm:$0xff]
  %v108 = vld [vmem:[%s0 + $0x2e8] sm:$0xff]
  %v109 = vld [vmem:[%s0 + $0x2f0] sm:$0xff]
  %v110 = vld [vmem:[%s0 + $0x2f8] sm:$0xff]
  %v111 = vld [vmem:[%s0 + $0x300] sm:$0xff]
  %v112 = vld [vmem:[%s0 + $0x308] sm:$0xff]
  %v113 = vld [vmem:[%s0 + $0x310] sm:$0xff]
  %v114 = vld [vmem:[%s0 + $0x318] sm:$0xff]
  %v115 = vld [vmem:[%s0 + $0x320] sm:$0xff]
  %v116 = vld [vmem:[%s0 + $0x328] sm:$0xff]
  %v117 = vld [vmem:[%s0 + $0x330] sm:$0xff]
  %v118 = vld [vmem:[%s0 + $0x338] sm:$0xff]
  %v119 = vld [vmem:[%s0 + $0x340] sm:$0xff]
  %v120 = vld [vmem:[%s0 + $0x348] sm:$0xff]
  %v121 = vld [vmem:[%s0 + $0x350] sm:$0xff]
  %v122 = vld [vmem:[%s0 + $0x358] sm:$0xff]
  %v123 = vld [vmem:[%s0 + $0x360] sm:$0xff]
  %v124 = vld [vmem:[%s0 + $0x368] sm:$0xff]
  %v125 = vld [vmem:[%s0 + $0x370] sm:$0xff]
  %v126 = vld [vmem:[%s0 + $0x378] sm:$0xff]
  %v127 = vld [vmem:[%s0 + $0x380] sm:$0xff]
  %v128 = vld [vmem:[%s0 + $0x388] sm:$0xff]
  %v129 = vld [vmem:[%s0 + $0x390] sm:$0xff]
  %v130 = vld [vmem:[%s0 + $0x398] sm:$0xff]
  %v131 = vld [vmem:[%s0 + $0x3a0] sm:$0xff]
  %v132 = vld [vmem:[%s0 + $0x3a8] sm:$0xff]
  %v133 = vld [vmem:[%s0 + $0x3b0] sm:$0xff]
  %v134 = vld [vmem:[%s0 + $0x3b8] sm:$0xff]
  %v135 = vld [vmem:[%s0 + $0x3c0] sm:$0xff]
  %v136 = vld [vmem:[%s0 + $0x3c8] sm:$0xff]
  %v137 = vld [vmem:[%s0 + $0x3d0] sm:$0xff]
  %v138 = vld [vmem:[%s0 + $0x3d8] sm:$0xff]
  %v139 = vld [vmem:[%s0 + $0x3e0] sm:$0xff]
  %v140 = vld [vmem:[%s0 + $0x3e8] sm:$0xff]
  %v141 = vld [vmem:[%s0 + $0x3f0] sm:$0xff]
  %v142 = vld [vmem:[%s0 + $0x3f8] sm:$0xff]
  %v143 = vld [vmem:[%s1] sm:$0xf]
  %v144 = vld [vmem:[%s1 + $0x4] sm:$0xf]
  %v145 = vld [vmem:[%s1 + $0x8] sm:$0xf]
  %v146 = vld [vmem:[%s1 + $0xc] sm:$0xf]
  %v147 = vld [vmem:[%s1 + $0x10] sm:$0xf]
  %v148 = vld [vmem:[%s1 + $0x14] sm:$0xf]
  %v149 = vld [vmem:[%s1 + $0x18] sm:$0xf]
  %v150 = vld [vmem:[%s1 + $0x1c] sm:$0xf]
  %v151 = vld [vmem:[%s1 + $0x20] sm:$0xf]
  %v152 = vld [vmem:[%s1 + $0x24] sm:$0xf]
  %v153 = vld [vmem:[%s1 + $0x28] sm:$0xf]
  %v154 = vld [vmem:[%s1 + $0x2c] sm:$0xf]
  %v155 = vld [vmem:[%s1 + $0x30] sm:$0xf]
  %v156 = vld [vmem:[%s1 + $0x34] sm:$0xf]
  %v157 = vld [vmem:[%s1 + $0x38] sm:$0xf]
  %v158 = vld [vmem:[%s1 + $0x3c] sm:$0xf]
  %v159 = vld [vmem:[%s1 + $0x40] sm:$0xf]
  %v160 = vld [vmem:[%s1 + $0x44] sm:$0xf]
  %v161 = vld [vmem:[%s1 + $0x48] sm:$0xf]
  %v162 = vld [vmem:[%s1 + $0x4c] sm:$0xf]
  %v163 = vld [vmem:[%s1 + $0x50] sm:$0xf]
  %v164 = vld [vmem:[%s1 + $0x54] sm:$0xf]
  %v165 = vld [vmem:[%s1 + $0x58] sm:$0xf]
  %v166 = vld [vmem:[%s1 + $0x5c] sm:$0xf]
  %v167 = vld [vmem:[%s1 + $0x60] sm:$0xf]
  %v168 = vld [vmem:[%s1 + $0x64] sm:$0xf]
  %v169 = vld [vmem:[%s1 + $0x68] sm:$0xf]
  %v170 = vld [vmem:[%s1 + $0x6c] sm:$0xf]
  %v171 = vld [vmem:[%s1 + $0x70] sm:$0xf]
  %v172 = vld [vmem:[%s1 + $0x74] sm:$0xf]
  %v173 = vld [vmem:[%s1 + $0x78] sm:$0xf]
  %v174 = vld [vmem:[%s1 + $0x7c] sm:$0xf]
  %v175 = vld [vmem:[%s1 + $0x80] sm:$0xf]
  %v176 = vld [vmem:[%s1 + $0x84] sm:$0xf]
  %v177 = vld [vmem:[%s1 + $0x88] sm:$0xf]
  %v178 = vld [vmem:[%s1 + $0x8c] sm:$0xf]
  %v179 = vld [vmem:[%s1 + $0x90] sm:$0xf]
  %v180 = vld [vmem:[%s1 + $0x94] sm:$0xf]
  %v181 = vld [vmem:[%s1 + $0x98] sm:$0xf]
  %v182 = vld [vmem:[%s1 + $0x9c] sm:$0xf]
  %v183 = vld [vmem:[%s1 + $0xa0] sm:$0xf]
  %v184 = vld [vmem:[%s1 + $0xa4] sm:$0xf]
  %v185 = vld [vmem:[%s1 + $0xa8] sm:$0xf]
  %v186 = vld [vmem:[%s1 + $0xac] sm:$0xf]
  %v187 = vld [vmem:[%s1 + $0xb0] sm:$0xf]
  %v188 = vld [vmem:[%s1 + $0xb4] sm:$0xf]
  %v189 = vld [vmem:[%s1 + $0xb8] sm:$0xf]
  %v190 = vld [vmem:[%s1 + $0xbc] sm:$0xf]
  %v191 = vld [vmem:[%s1 + $0xc0] sm:$0xf]
  %v192 = vld [vmem:[%s2] sm:$0x1]
  %v194 = vlaneseq
  %v195 = vshrl.u32 %v194, 7
  %v196 = vsub.s32 0, %v195
  %v197 = vrot.slane %v192, %v196
  %v327 = vunpack.c.l.b16 %v15
  %v328 = vunpack.c.h.b16 %v15
  %v329 = vunpack.c.l.b16 %v16
  %v330 = vunpack.c.h.b16 %v16
  %v331 = vunpack.c.l.b16 %v17
  %v332 = vunpack.c.h.b16 %v17
  %v333 = vunpack.c.l.b16 %v18
  %v334 = vunpack.c.h.b16 %v18
  %v335 = vunpack.c.l.b16 %v19
  %v336 = vunpack.c.h.b16 %v19
  %v337 = vunpack.c.l.b16 %v20
  %v338 = vunpack.c.h.b16 %v20
  %v339 = vunpack.c.l.b16 %v21
  %v340 = vunpack.c.h.b16 %v21
  %v341 = vunpack.c.l.b16 %v22
  %v342 = vunpack.c.h.b16 %v22
  %v343 = vunpack.c.l.b16 %v23
  %v344 = vunpack.c.h.b16 %v23
  %v345 = vunpack.c.l.b16 %v24
  %v346 = vunpack.c.h.b16 %v24
  %v347 = vunpack.c.l.b16 %v25
  %v348 = vunpack.c.h.b16 %v25
  %v349 = vunpack.c.l.b16 %v26
  %v350 = vunpack.c.h.b16 %v26
  %v351 = vunpack.c.l.b16 %v27
  %v352 = vunpack.c.h.b16 %v27
  %v353 = vunpack.c.l.b16 %v28
  %v354 = vunpack.c.h.b16 %v28
  %v355 = vunpack.c.l.b16 %v29
  %v356 = vunpack.c.h.b16 %v29
  %v357 = vunpack.c.l.b16 %v30
  %v358 = vunpack.c.h.b16 %v30
  %v359 = vunpack.c.l.b16 %v31
  %v360 = vunpack.c.h.b16 %v31
  %v361 = vunpack.c.l.b16 %v32
  %v362 = vunpack.c.h.b16 %v32
  %v363 = vunpack.c.l.b16 %v33
  %v364 = vunpack.c.h.b16 %v33
  %v365 = vunpack.c.l.b16 %v34
  %v366 = vunpack.c.h.b16 %v34
  %v367 = vunpack.c.l.b16 %v35
  %v368 = vunpack.c.h.b16 %v35
  %v369 = vunpack.c.l.b16 %v36
  %v370 = vunpack.c.h.b16 %v36
  %v371 = vunpack.c.l.b16 %v37
  %v372 = vunpack.c.h.b16 %v37
  %v373 = vunpack.c.l.b16 %v38
  %v374 = vunpack.c.h.b16 %v38
  %v375 = vunpack.c.l.b16 %v39
  %v376 = vunpack.c.h.b16 %v39
  %v377 = vunpack.c.l.b16 %v40
  %v378 = vunpack.c.h.b16 %v40
  %v379 = vunpack.c.l.b16 %v41
  %v380 = vunpack.c.h.b16 %v41
  %v381 = vunpack.c.l.b16 %v42
  %v382 = vunpack.c.h.b16 %v42
  %v383 = vunpack.c.l.b16 %v43
  %v384 = vunpack.c.h.b16 %v43
  %v385 = vunpack.c.l.b16 %v44
  %v386 = vunpack.c.h.b16 %v44
  %v387 = vunpack.c.l.b16 %v45
  %v388 = vunpack.c.h.b16 %v45
  %v389 = vunpack.c.l.b16 %v46
  %v390 = vunpack.c.h.b16 %v46
  %v391 = vunpack.c.l.b16 %v47
  %v392 = vunpack.c.h.b16 %v47
  %v393 = vunpack.c.l.b16 %v48
  %v394 = vunpack.c.h.b16 %v48
  %v395 = vunpack.c.l.b16 %v49
  %v396 = vunpack.c.h.b16 %v49
  %v397 = vunpack.c.l.b16 %v50
  %v398 = vunpack.c.h.b16 %v50
  %v399 = vunpack.c.l.b16 %v51
  %v400 = vunpack.c.h.b16 %v51
  %v401 = vunpack.c.l.b16 %v52
  %v402 = vunpack.c.h.b16 %v52
  %v403 = vunpack.c.l.b16 %v53
  %v404 = vunpack.c.h.b16 %v53
  %v405 = vunpack.c.l.b16 %v54
  %v406 = vunpack.c.h.b16 %v54
  %v407 = vunpack.c.l.b16 %v55
  %v408 = vunpack.c.h.b16 %v55
  %v409 = vunpack.c.l.b16 %v56
  %v410 = vunpack.c.h.b16 %v56
  %v411 = vunpack.c.l.b16 %v57
  %v412 = vunpack.c.h.b16 %v57
  %v413 = vunpack.c.l.b16 %v58
  %v414 = vunpack.c.h.b16 %v58
  %v415 = vunpack.c.l.b16 %v59
  %v416 = vunpack.c.h.b16 %v59
  %v417 = vunpack.c.l.b16 %v60
  %v418 = vunpack.c.h.b16 %v60
  %v419 = vunpack.c.l.b16 %v61
  %v420 = vunpack.c.h.b16 %v61
  %v421 = vunpack.c.l.b16 %v62
  %v422 = vunpack.c.h.b16 %v62
  %v423 = vunpack.c.l.b16 %v63
  %v424 = vunpack.c.h.b16 %v63
  %v425 = vunpack.c.l.b16 %v64
  %v426 = vunpack.c.h.b16 %v64
  %v427 = vunpack.c.l.b16 %v65
  %v428 = vunpack.c.h.b16 %v65
  %v429 = vunpack.c.l.b16 %v66
  %v430 = vunpack.c.h.b16 %v66
  %v431 = vunpack.c.l.b16 %v67
  %v432 = vunpack.c.h.b16 %v67
  %v433 = vunpack.c.l.b16 %v68
  %v434 = vunpack.c.h.b16 %v68
  %v435 = vunpack.c.l.b16 %v69
  %v436 = vunpack.c.h.b16 %v69
  %v437 = vunpack.c.l.b16 %v70
  %v438 = vunpack.c.h.b16 %v70
  %v439 = vunpack.c.l.b16 %v71
  %v440 = vunpack.c.h.b16 %v71
  %v441 = vunpack.c.l.b16 %v72
  %v442 = vunpack.c.h.b16 %v72
  %v443 = vunpack.c.l.b16 %v73
  %v444 = vunpack.c.h.b16 %v73
  %v445 = vunpack.c.l.b16 %v74
  %v446 = vunpack.c.h.b16 %v74
  %v447 = vunpack.c.l.b16 %v75
  %v448 = vunpack.c.h.b16 %v75
  %v449 = vunpack.c.l.b16 %v76
  %v450 = vunpack.c.h.b16 %v76
  %v451 = vunpack.c.l.b16 %v77
  %v452 = vunpack.c.h.b16 %v77
  %v453 = vunpack.c.l.b16 %v78
  %v454 = vunpack.c.h.b16 %v78
  %v455 = vunpack.c.l.b16 %v79
  %v456 = vunpack.c.h.b16 %v79
  %v457 = vunpack.c.l.b16 %v80
  %v458 = vunpack.c.h.b16 %v80
  %v459 = vunpack.c.l.b16 %v81
  %v460 = vunpack.c.h.b16 %v81
  %v461 = vunpack.c.l.b16 %v82
  %v462 = vunpack.c.h.b16 %v82
  %v463 = vunpack.c.l.b16 %v83
  %v464 = vunpack.c.h.b16 %v83
  %v465 = vunpack.c.l.b16 %v84
  %v466 = vunpack.c.h.b16 %v84
  %v467 = vunpack.c.l.b16 %v85
  %v468 = vunpack.c.h.b16 %v85
  %v469 = vunpack.c.l.b16 %v86
  %v470 = vunpack.c.h.b16 %v86
  %v471 = vunpack.c.l.b16 %v87
  %v472 = vunpack.c.h.b16 %v87
  %v473 = vunpack.c.l.b16 %v88
  %v474 = vunpack.c.h.b16 %v88
  %v475 = vunpack.c.l.b16 %v89
  %v476 = vunpack.c.h.b16 %v89
  %v477 = vunpack.c.l.b16 %v90
  %v478 = vunpack.c.h.b16 %v90
  %v479 = vunpack.c.l.b16 %v91
  %v480 = vunpack.c.h.b16 %v91
  %v481 = vunpack.c.l.b16 %v92
  %v482 = vunpack.c.h.b16 %v92
  %v483 = vunpack.c.l.b16 %v93
  %v484 = vunpack.c.h.b16 %v93
  %v485 = vunpack.c.l.b16 %v94
  %v486 = vunpack.c.h.b16 %v94
  %v487 = vunpack.c.l.b16 %v95
  %v488 = vunpack.c.h.b16 %v95
  %v489 = vunpack.c.l.b16 %v96
  %v490 = vunpack.c.h.b16 %v96
  %v491 = vunpack.c.l.b16 %v97
  %v492 = vunpack.c.h.b16 %v97
  %v493 = vunpack.c.l.b16 %v98
  %v494 = vunpack.c.h.b16 %v98
  %v495 = vunpack.c.l.b16 %v99
  %v496 = vunpack.c.h.b16 %v99
  %v497 = vunpack.c.l.b16 %v100
  %v498 = vunpack.c.h.b16 %v100
  %v499 = vunpack.c.l.b16 %v101
  %v500 = vunpack.c.h.b16 %v101
  %v501 = vunpack.c.l.b16 %v102
  %v502 = vunpack.c.h.b16 %v102
  %v503 = vunpack.c.l.b16 %v103
  %v504 = vunpack.c.h.b16 %v103
  %v505 = vunpack.c.l.b16 %v104
  %v506 = vunpack.c.h.b16 %v104
  %v507 = vunpack.c.l.b16 %v105
  %v508 = vunpack.c.h.b16 %v105
  %v509 = vunpack.c.l.b16 %v106
  %v510 = vunpack.c.h.b16 %v106
  %v511 = vunpack.c.l.b16 %v107
  %v512 = vunpack.c.h.b16 %v107
  %v513 = vunpack.c.l.b16 %v108
  %v514 = vunpack.c.h.b16 %v108
  %v515 = vunpack.c.l.b16 %v109
  %v516 = vunpack.c.h.b16 %v109
  %v517 = vunpack.c.l.b16 %v110
  %v518 = vunpack.c.h.b16 %v110
  %v519 = vunpack.c.l.b16 %v111
  %v520 = vunpack.c.h.b16 %v111
  %v521 = vunpack.c.l.b16 %v112
  %v522 = vunpack.c.h.b16 %v112
  %v523 = vunpack.c.l.b16 %v113
  %v524 = vunpack.c.h.b16 %v113
  %v525 = vunpack.c.l.b16 %v114
  %v526 = vunpack.c.h.b16 %v114
  %v527 = vunpack.c.l.b16 %v115
  %v528 = vunpack.c.h.b16 %v115
  %v529 = vunpack.c.l.b16 %v116
  %v530 = vunpack.c.h.b16 %v116
  %v531 = vunpack.c.l.b16 %v117
  %v532 = vunpack.c.h.b16 %v117
  %v533 = vunpack.c.l.b16 %v118
  %v534 = vunpack.c.h.b16 %v118
  %v535 = vunpack.c.l.b16 %v119
  %v536 = vunpack.c.h.b16 %v119
  %v537 = vunpack.c.l.b16 %v120
  %v538 = vunpack.c.h.b16 %v120
  %v539 = vunpack.c.l.b16 %v121
  %v540 = vunpack.c.h.b16 %v121
  %v541 = vunpack.c.l.b16 %v122
  %v542 = vunpack.c.h.b16 %v122
  %v543 = vunpack.c.l.b16 %v123
  %v544 = vunpack.c.h.b16 %v123
  %v545 = vunpack.c.l.b16 %v124
  %v546 = vunpack.c.h.b16 %v124
  %v547 = vunpack.c.l.b16 %v125
  %v548 = vunpack.c.h.b16 %v125
  %v549 = vunpack.c.l.b16 %v126
  %v550 = vunpack.c.h.b16 %v126
  %v551 = vunpack.c.l.b16 %v127
  %v552 = vunpack.c.h.b16 %v127
  %v553 = vunpack.c.l.b16 %v128
  %v554 = vunpack.c.h.b16 %v128
  %v555 = vunpack.c.l.b16 %v129
  %v556 = vunpack.c.h.b16 %v129
  %v557 = vunpack.c.l.b16 %v130
  %v558 = vunpack.c.h.b16 %v130
  %v559 = vunpack.c.l.b16 %v131
  %v560 = vunpack.c.h.b16 %v131
  %v561 = vunpack.c.l.b16 %v132
  %v562 = vunpack.c.h.b16 %v132
  %v563 = vunpack.c.l.b16 %v133
  %v564 = vunpack.c.h.b16 %v133
  %v565 = vunpack.c.l.b16 %v134
  %v566 = vunpack.c.h.b16 %v134
  %v567 = vunpack.c.l.b16 %v135
  %v568 = vunpack.c.h.b16 %v135
  %v569 = vunpack.c.l.b16 %v136
  %v570 = vunpack.c.h.b16 %v136
  %v571 = vunpack.c.l.b16 %v137
  %v572 = vunpack.c.h.b16 %v137
  %v573 = vunpack.c.l.b16 %v138
  %v574 = vunpack.c.h.b16 %v138
  %v575 = vunpack.c.l.b16 %v139
  %v576 = vunpack.c.h.b16 %v139
  %v577 = vunpack.c.l.b16 %v140
  %v578 = vunpack.c.h.b16 %v140
  %v579 = vunpack.c.l.b16 %v141
  %v580 = vunpack.c.h.b16 %v141
  %v581 = vunpack.c.l.b16 %v142
  %v582 = vunpack.c.h.b16 %v142
  %v583 = vpack.c.b16 %v331, %v327
  %v584 = vpack.c.b16 %v332, %v328
  %v585 = vpack.c.b16 %v333, %v329
  %v586 = vpack.c.b16 %v334, %v330
  %v587 = vpack.c.b16 %v339, %v335
  %v588 = vpack.c.b16 %v340, %v336
  %v589 = vpack.c.b16 %v341, %v337
  %v590 = vpack.c.b16 %v342, %v338
  %v591 = vpack.c.b16 %v347, %v343
  %v592 = vpack.c.b16 %v348, %v344
  %v593 = vpack.c.b16 %v349, %v345
  %v594 = vpack.c.b16 %v350, %v346
  %v595 = vpack.c.b16 %v355, %v351
  %v596 = vpack.c.b16 %v356, %v352
  %v597 = vpack.c.b16 %v357, %v353
  %v598 = vpack.c.b16 %v358, %v354
  %v599 = vpack.c.b16 %v363, %v359
  %v600 = vpack.c.b16 %v364, %v360
  %v601 = vpack.c.b16 %v365, %v361
  %v602 = vpack.c.b16 %v366, %v362
  %v603 = vpack.c.b16 %v371, %v367
  %v604 = vpack.c.b16 %v372, %v368
  %v605 = vpack.c.b16 %v373, %v369
  %v606 = vpack.c.b16 %v374, %v370
  %v607 = vpack.c.b16 %v379, %v375
  %v608 = vpack.c.b16 %v380, %v376
  %v609 = vpack.c.b16 %v381, %v377
  %v610 = vpack.c.b16 %v382, %v378
  %v611 = vpack.c.b16 %v387, %v383
  %v612 = vpack.c.b16 %v388, %v384
  %v613 = vpack.c.b16 %v389, %v385
  %v614 = vpack.c.b16 %v390, %v386
  %v615 = vpack.c.b16 %v395, %v391
  %v616 = vpack.c.b16 %v396, %v392
  %v617 = vpack.c.b16 %v397, %v393
  %v618 = vpack.c.b16 %v398, %v394
  %v619 = vpack.c.b16 %v403, %v399
  %v620 = vpack.c.b16 %v404, %v400
  %v621 = vpack.c.b16 %v405, %v401
  %v622 = vpack.c.b16 %v406, %v402
  %v623 = vpack.c.b16 %v411, %v407
  %v624 = vpack.c.b16 %v412, %v408
  %v625 = vpack.c.b16 %v413, %v409
  %v626 = vpack.c.b16 %v414, %v410
  %v627 = vpack.c.b16 %v419, %v415
  %v628 = vpack.c.b16 %v420, %v416
  %v629 = vpack.c.b16 %v421, %v417
  %v630 = vpack.c.b16 %v422, %v418
  %v631 = vpack.c.b16 %v427, %v423
  %v632 = vpack.c.b16 %v428, %v424
  %v633 = vpack.c.b16 %v429, %v425
  %v634 = vpack.c.b16 %v430, %v426
  %v635 = vpack.c.b16 %v435, %v431
  %v636 = vpack.c.b16 %v436, %v432
  %v637 = vpack.c.b16 %v437, %v433
  %v638 = vpack.c.b16 %v438, %v434
  %v639 = vpack.c.b16 %v443, %v439
  %v640 = vpack.c.b16 %v444, %v440
  %v641 = vpack.c.b16 %v445, %v441
  %v642 = vpack.c.b16 %v446, %v442
  %v643 = vpack.c.b16 %v451, %v447
  %v644 = vpack.c.b16 %v452, %v448
  %v645 = vpack.c.b16 %v453, %v449
  %v646 = vpack.c.b16 %v454, %v450
  %v647 = vpack.c.b16 %v459, %v455
  %v648 = vpack.c.b16 %v460, %v456
  %v649 = vpack.c.b16 %v461, %v457
  %v650 = vpack.c.b16 %v462, %v458
  %v651 = vpack.c.b16 %v467, %v463
  %v652 = vpack.c.b16 %v468, %v464
  %v653 = vpack.c.b16 %v469, %v465
  %v654 = vpack.c.b16 %v470, %v466
  %v655 = vpack.c.b16 %v475, %v471
  %v656 = vpack.c.b16 %v476, %v472
  %v657 = vpack.c.b16 %v477, %v473
  %v658 = vpack.c.b16 %v478, %v474
  %v659 = vpack.c.b16 %v483, %v479
  %v660 = vpack.c.b16 %v484, %v480
  %v661 = vpack.c.b16 %v485, %v481
  %v662 = vpack.c.b16 %v486, %v482
  %v663 = vpack.c.b16 %v491, %v487
  %v664 = vpack.c.b16 %v492, %v488
  %v665 = vpack.c.b16 %v493, %v489
  %v666 = vpack.c.b16 %v494, %v490
  %v667 = vpack.c.b16 %v499, %v495
  %v668 = vpack.c.b16 %v500, %v496
  %v669 = vpack.c.b16 %v501, %v497
  %v670 = vpack.c.b16 %v502, %v498
  %v671 = vpack.c.b16 %v507, %v503
  %v672 = vpack.c.b16 %v508, %v504
  %v673 = vpack.c.b16 %v509, %v505
  %v674 = vpack.c.b16 %v510, %v506
  %v675 = vpack.c.b16 %v515, %v511
  %v676 = vpack.c.b16 %v516, %v512
  %v677 = vpack.c.b16 %v517, %v513
  %v678 = vpack.c.b16 %v518, %v514
  %v679 = vpack.c.b16 %v523, %v519
  %v680 = vpack.c.b16 %v524, %v520
  %v681 = vpack.c.b16 %v525, %v521
  %v682 = vpack.c.b16 %v526, %v522
  %v683 = vpack.c.b16 %v531, %v527
  %v684 = vpack.c.b16 %v532, %v528
  %v685 = vpack.c.b16 %v533, %v529
  %v686 = vpack.c.b16 %v534, %v530
  %v687 = vpack.c.b16 %v539, %v535
  %v688 = vpack.c.b16 %v540, %v536
  %v689 = vpack.c.b16 %v541, %v537
  %v690 = vpack.c.b16 %v542, %v538
  %v691 = vpack.c.b16 %v547, %v543
  %v692 = vpack.c.b16 %v548, %v544
  %v693 = vpack.c.b16 %v549, %v545
  %v694 = vpack.c.b16 %v550, %v546
  %v695 = vpack.c.b16 %v555, %v551
  %v696 = vpack.c.b16 %v556, %v552
  %v697 = vpack.c.b16 %v557, %v553
  %v698 = vpack.c.b16 %v558, %v554
  %v699 = vpack.c.b16 %v563, %v559
  %v700 = vpack.c.b16 %v564, %v560
  %v701 = vpack.c.b16 %v565, %v561
  %v702 = vpack.c.b16 %v566, %v562
  %v703 = vpack.c.b16 %v571, %v567
  %v704 = vpack.c.b16 %v572, %v568
  %v705 = vpack.c.b16 %v573, %v569
  %v706 = vpack.c.b16 %v574, %v570
  %v707 = vpack.c.b16 %v579, %v575
  %v708 = vpack.c.b16 %v580, %v576
  %v709 = vpack.c.b16 %v581, %v577
  %v710 = vpack.c.b16 %v582, %v578
  %v856 = vunpack.c.l.b16 %v143
  %v857 = vunpack.c.l.b16 %v144
  %v858 = vunpack.c.l.b16 %v145
  %v859 = vunpack.c.l.b16 %v146
  %v860 = vunpack.c.l.b16 %v147
  %v861 = vunpack.c.l.b16 %v148
  %v862 = vunpack.c.l.b16 %v149
  %v863 = vunpack.c.l.b16 %v150
  %v864 = vunpack.c.l.b16 %v151
  %v865 = vunpack.c.l.b16 %v152
  %v866 = vunpack.c.l.b16 %v153
  %v867 = vunpack.c.l.b16 %v154
  %v868 = vunpack.c.l.b16 %v155
  %v869 = vunpack.c.l.b16 %v156
  %v870 = vunpack.c.l.b16 %v157
  %v871 = vunpack.c.l.b16 %v158
  %v872 = vunpack.c.l.b16 %v159
  %v873 = vunpack.c.l.b16 %v160
  %v874 = vunpack.c.l.b16 %v161
  %v875 = vunpack.c.l.b16 %v162
  %v876 = vunpack.c.l.b16 %v163
  %v877 = vunpack.c.l.b16 %v164
  %v878 = vunpack.c.l.b16 %v165
  %v879 = vunpack.c.l.b16 %v166
  %v880 = vunpack.c.l.b16 %v167
  %v881 = vunpack.c.l.b16 %v168
  %v882 = vunpack.c.l.b16 %v169
  %v883 = vunpack.c.l.b16 %v170
  %v884 = vunpack.c.l.b16 %v171
  %v885 = vunpack.c.l.b16 %v172
  %v886 = vunpack.c.l.b16 %v173
  %v887 = vunpack.c.l.b16 %v174
  %v888 = vunpack.c.l.b16 %v175
  %v889 = vunpack.c.l.b16 %v176
  %v890 = vunpack.c.l.b16 %v177
  %v891 = vunpack.c.l.b16 %v178
  %v892 = vunpack.c.l.b16 %v179
  %v893 = vunpack.c.l.b16 %v180
  %v894 = vunpack.c.l.b16 %v181
  %v895 = vunpack.c.l.b16 %v182
  %v896 = vunpack.c.l.b16 %v183
  %v897 = vunpack.c.l.b16 %v184
  %v898 = vunpack.c.l.b16 %v185
  %v899 = vunpack.c.l.b16 %v186
  %v900 = vunpack.c.l.b16 %v187
  %v901 = vunpack.c.l.b16 %v188
  %v902 = vunpack.c.l.b16 %v189
  %v903 = vunpack.c.l.b16 %v190
  %v904 = vunpack.c.l.b16 %v191
  %v905 = vpack.c.b16 %v857, %v856
  %v906 = vpack.c.b16 %v859, %v858
  %v907 = vpack.c.b16 %v861, %v860
  %v908 = vpack.c.b16 %v863, %v862
  %v909 = vpack.c.b16 %v865, %v864
  %v910 = vpack.c.b16 %v867, %v866
  %v911 = vpack.c.b16 %v869, %v868
  %v912 = vpack.c.b16 %v871, %v870
  %v913 = vpack.c.b16 %v873, %v872
  %v914 = vpack.c.b16 %v875, %v874
  %v915 = vpack.c.b16 %v877, %v876
  %v916 = vpack.c.b16 %v879, %v878
  %v917 = vpack.c.b16 %v881, %v880
  %v918 = vpack.c.b16 %v883, %v882
  %v919 = vpack.c.b16 %v885, %v884
  %v920 = vpack.c.b16 %v887, %v886
  %v921 = vpack.c.b16 %v889, %v888
  %v922 = vpack.c.b16 %v891, %v890
  %v923 = vpack.c.b16 %v893, %v892
  %v924 = vpack.c.b16 %v895, %v894
  %v925 = vpack.c.b16 %v897, %v896
  %v926 = vpack.c.b16 %v899, %v898
  %v927 = vpack.c.b16 %v901, %v900
  %v928 = vpack.c.b16 %v903, %v902
  %v929 = vpack.c.b16 %v904, %v904
  %vm954 = vcmask 64512
  %v956 = vsel %vm954, %v586, 0
  %v959 = vsel %vm954, %v590, 0
  %v962 = vsel %vm954, %v594, 0
  %v965 = vsel %vm954, %v598, 0
  %v968 = vsel %vm954, %v602, 0
  %v971 = vsel %vm954, %v606, 0
  %v974 = vsel %vm954, %v610, 0
  %v977 = vsel %vm954, %v614, 0
  %v980 = vsel %vm954, %v618, 0
  %v983 = vsel %vm954, %v622, 0
  %v986 = vsel %vm954, %v626, 0
  %v989 = vsel %vm954, %v630, 0
  %v992 = vsel %vm954, %v634, 0
  %v995 = vsel %vm954, %v638, 0
  %v998 = vsel %vm954, %v642, 0
  %v1001 = vsel %vm954, %v646, 0
  %v1004 = vsel %vm954, %v650, 0
  %v1007 = vsel %vm954, %v654, 0
  %v1010 = vsel %vm954, %v658, 0
  %v1013 = vsel %vm954, %v662, 0
  %v1016 = vsel %vm954, %v666, 0
  %v1019 = vsel %vm954, %v670, 0
  %v1022 = vsel %vm954, %v674, 0
  %v1025 = vsel %vm954, %v678, 0
  %v1028 = vsel %vm954, %v682, 0
  %v1031 = vsel %vm954, %v686, 0
  %v1034 = vsel %vm954, %v690, 0
  %v1037 = vsel %vm954, %v694, 0
  %v1040 = vsel %vm954, %v698, 0
  %v1043 = vsel %vm954, %v702, 0
  %v1046 = vsel %vm954, %v706, 0
  %v1049 = vsel %vm954, %v710, 0
  %vm1051 = vcmask 1043456
  %v1053 = vsel %vm1051, %v929, 0
  %1055 = vmatprep.subr.bf16.mxu0 0
  %1056 = vmatpush1.bf16.msra.mxu0 %v905
  %1057 = vmatprep.subr.bf16.mxu0 0
  %1058 = vmatpush1.bf16.msra.mxu0 %v906
  %1059 = vmatprep.subr.bf16.mxu0 0
  %1060 = vmatpush1.bf16.msra.mxu0 %v907
  %1061 = vmatprep.subr.bf16.mxu0 0
  %1062 = vmatpush1.bf16.msra.mxu0 %v908
  %1063 = vmatprep.subr.bf16.mxu0 0
  %1064 = vmatpush1.bf16.msra.mxu0 %v909
  %1065 = vmatprep.subr.bf16.mxu0 0
  %1066 = vmatpush1.bf16.msra.mxu0 %v910
  %1067 = vmatprep.subr.bf16.mxu0 0
  %1068 = vmatpush1.bf16.msra.mxu0 %v911
  %1069 = vmatprep.subr.bf16.mxu0 0
  %1070 = vmatpush1.bf16.msra.mxu0 %v912
  %1071 = vmatprep.subr.bf16.mxu0 0
  %1072 = vmatpush1.bf16.msra.mxu0 %v913
  %1073 = vmatprep.subr.bf16.mxu0 0
  %1074 = vmatpush1.bf16.msra.mxu0 %v914
  %1075 = vmatprep.subr.bf16.mxu0 0
  %1076 = vmatpush1.bf16.msra.mxu0 %v915
  %1077 = vmatprep.subr.bf16.mxu0 0
  %1078 = vmatpush1.bf16.msra.mxu0 %v916
  %1079 = vmatprep.subr.bf16.mxu0 0
  %1080 = vmatpush1.bf16.msra.mxu0 %v917
  %1081 = vmatprep.subr.bf16.mxu0 0
  %1082 = vmatpush1.bf16.msra.mxu0 %v918
  %1083 = vmatprep.subr.bf16.mxu0 0
  %1084 = vmatpush1.bf16.msra.mxu0 %v919
  %1085 = vmatprep.subr.bf16.mxu0 0
  %1086 = vmatpush1.bf16.msra.mxu0 %v920
  %1087 = vmatprep.mubr.bf16.mxu0 %v584
  %1088 = vmatmul.mubr.bf16.gmra.mrb[0].mxu0 %v583
  %v1089 = vpop.f32.mrb[0].mxu0
  %v1090 = vadd.f32 %v197, %v1089
  %v1091 = vpop.f32.mrb[0].mxu0
  %v1092 = vpop.f32.mrb[0].mxu0
  %v1093 = vadd.f32 %v197, %v1092
  %v1094 = vpop.f32.mrb[0].mxu0
  %1095 = vmatprep.mubr.bf16.mxu0 %v588
  %1096 = vmatmul.mubr.bf16.gmra.mrb[0].mxu0 %v587
  %v1097 = vpop.f32.mrb[0].mxu0
  %v1098 = vadd.f32 %v197, %v1097
  %v1099 = vpop.f32.mrb[0].mxu0
  %v1100 = vpop.f32.mrb[0].mxu0
  %v1101 = vadd.f32 %v197, %v1100
  %v1102 = vpop.f32.mrb[0].mxu0
  %1103 = vmatprep.mubr.bf16.mxu0 %v592
  %1104 = vmatmul.mubr.bf16.gmra.mrb[0].mxu0 %v591
  %v1105 = vpop.f32.mrb[0].mxu0
  %v1106 = vadd.f32 %v197, %v1105
  %v1107 = vpop.f32.mrb[0].mxu0
  %v1108 = vpop.f32.mrb[0].mxu0
  %v1109 = vadd.f32 %v197, %v1108
  %v1110 = vpop.f32.mrb[0].mxu0
  %1111 = vmatprep.mubr.bf16.mxu0 %v596
  %1112 = vmatmul.mubr.bf16.gmra.mrb[0].mxu0 %v595
  %v1113 = vpop.f32.mrb[0].mxu0
  %v1114 = vadd.f32 %v197, %v1113
  %v1115 = vpop.f32.mrb[0].mxu0
  %v1116 = vpop.f32.mrb[0].mxu0
  %v1117 = vadd.f32 %v197, %v1116
  %v1118 = vpop.f32.mrb[0].mxu0
  %1119 = vmatprep.mubr.bf16.mxu0 %v600
  %1120 = vmatmul.mubr.bf16.gmra.mrb[0].mxu0 %v599
  %v1121 = vpop.f32.mrb[0].mxu0
  %v1122 = vadd.f32 %v197, %v1121
  %v1123 = vpop.f32.mrb[0].mxu0
  %v1124 = vpop.f32.mrb[0].mxu0
  %v1125 = vadd.f32 %v197, %v1124
  %v1126 = vpop.f32.mrb[0].mxu0
  %1127 = vmatprep.mubr.bf16.mxu0 %v604
  %1128 = vmatmul.mubr.bf16.gmra.mrb[0].mxu0 %v603
  %v1129 = vpop.f32.mrb[0].mxu0
  %v1130 = vadd.f32 %v197, %v1129
  %v1131 = vpop.f32.mrb[0].mxu0
  %v1132 = vpop.f32.mrb[0].mxu0
  %v1133 = vadd.f32 %v197, %v1132
  %v1134 = vpop.f32.mrb[0].mxu0
  %1135 = vmatprep.mubr.bf16.mxu0 %v608
  %1136 = vmatmul.mubr.bf16.gmra.mrb[0].mxu0 %v607
  %v1137 = vpop.f32.mrb[0].mxu0
  %v1138 = vadd.f32 %v197, %v1137
  %v1139 = vpop.f32.mrb[0].mxu0
  %v1140 = vpop.f32.mrb[0].mxu0
  %v1141 = vadd.f32 %v197, %v1140
  %v1142 = vpop.f32.mrb[0].mxu0
  %1143 = vmatprep.mubr.bf16.mxu0 %v612
  %1144 = vmatmul.mubr.bf16.gmra.mrb[0].mxu0 %v611
  %v1145 = vpop.f32.mrb[0].mxu0
  %v1146 = vadd.f32 %v197, %v1145
  %v1147 = vpop.f32.mrb[0].mxu0
  %v1148 = vpop.f32.mrb[0].mxu0
  %v1149 = vadd.f32 %v197, %v1148
  %v1150 = vpop.f32.mrb[0].mxu0
  %1151 = vmatprep.mubr.bf16.mxu0 %v616
  %1152 = vmatmul.mubr.bf16.gmra.mrb[0].mxu0 %v615
  %v1153 = vpop.f32.mrb[0].mxu0
  %v1154 = vadd.f32 %v197, %v1153
  %v1155 = vpop.f32.mrb[0].mxu0
  %v1156 = vpop.f32.mrb[0].mxu0
  %v1157 = vadd.f32 %v197, %v1156
  %v1158 = vpop.f32.mrb[0].mxu0
  %1159 = vmatprep.mubr.bf16.mxu0 %v620
  %1160 = vmatmul.mubr.bf16.gmra.mrb[0].mxu0 %v619
  %v1161 = vpop.f32.mrb[0].mxu0
  %v1162 = vadd.f32 %v197, %v1161
  %v1163 = vpop.f32.mrb[0].mxu0
  %v1164 = vpop.f32.mrb[0].mxu0
  %v1165 = vadd.f32 %v197, %v1164
  %v1166 = vpop.f32.mrb[0].mxu0
  %1167 = vmatprep.mubr.bf16.mxu0 %v624
  %1168 = vmatmul.mubr.bf16.gmra.mrb[0].mxu0 %v623
  %v1169 = vpop.f32.mrb[0].mxu0
  %v1170 = vadd.f32 %v197, %v1169
  %v1171 = vpop.f32.mrb[0].mxu0
  %v1172 = vpop.f32.mrb[0].mxu0
  %v1173 = vadd.f32 %v197, %v1172
  %v1174 = vpop.f32.mrb[0].mxu0
  %1175 = vmatprep.mubr.bf16.mxu0 %v628
  %1176 = vmatmul.mubr.bf16.gmra.mrb[0].mxu0 %v627
  %v1177 = vpop.f32.mrb[0].mxu0
  %v1178 = vadd.f32 %v197, %v1177
  %v1179 = vpop.f32.mrb[0].mxu0
  %v1180 = vpop.f32.mrb[0].mxu0
  %v1181 = vadd.f32 %v197, %v1180
  %v1182 = vpop.f32.mrb[0].mxu0
  %1183 = vmatprep.mubr.bf16.mxu0 %v632
  %1184 = vmatmul.mubr.bf16.gmra.mrb[0].mxu0 %v631
  %v1185 = vpop.f32.mrb[0].mxu0
  %v1186 = vadd.f32 %v197, %v1185
  %v1187 = vpop.f32.mrb[0].mxu0
  %v1188 = vpop.f32.mrb[0].mxu0
  %v1189 = vadd.f32 %v197, %v1188
  %v1190 = vpop.f32.mrb[0].mxu0
  %1191 = vmatprep.mubr.bf16.mxu0 %v636
  %1192 = vmatmul.mubr.bf16.gmra.mrb[0].mxu0 %v635
  %v1193 = vpop.f32.mrb[0].mxu0
  %v1194 = vadd.f32 %v197, %v1193
  %v1195 = vpop.f32.mrb[0].mxu0
  %v1196 = vpop.f32.mrb[0].mxu0
  %v1197 = vadd.f32 %v197, %v1196
  %v1198 = vpop.f32.mrb[0].mxu0
  %1199 = vmatprep.mubr.bf16.mxu0 %v640
  %1200 = vmatmul.mubr.bf16.gmra.mrb[0].mxu0 %v639
  %v1201 = vpop.f32.mrb[0].mxu0
  %v1202 = vadd.f32 %v197, %v1201
  %v1203 = vpop.f32.mrb[0].mxu0
  %v1204 = vpop.f32.mrb[0].mxu0
  %v1205 = vadd.f32 %v197, %v1204
  %v1206 = vpop.f32.mrb[0].mxu0
  %1207 = vmatprep.mubr.bf16.mxu0 %v644
  %1208 = vmatmul.mubr.bf16.gmra.mrb[0].mxu0 %v643
  %v1209 = vpop.f32.mrb[0].mxu0
  %v1210 = vadd.f32 %v197, %v1209
  %v1211 = vpop.f32.mrb[0].mxu0
  %v1212 = vpop.f32.mrb[0].mxu0
  %v1213 = vadd.f32 %v197, %v1212
  %v1214 = vpop.f32.mrb[0].mxu0
  %1215 = vmatprep.mubr.bf16.mxu0 %v648
  %1216 = vmatmul.mubr.bf16.gmra.mrb[0].mxu0 %v647
  %v1217 = vpop.f32.mrb[0].mxu0
  %v1218 = vadd.f32 %v197, %v1217
  %v1219 = vpop.f32.mrb[0].mxu0
  %v1220 = vpop.f32.mrb[0].mxu0
  %v1221 = vadd.f32 %v197, %v1220
  %v1222 = vpop.f32.mrb[0].mxu0
  %1223 = vmatprep.mubr.bf16.mxu0 %v652
  %1224 = vmatmul.mubr.bf16.gmra.mrb[0].mxu0 %v651
  %v1225 = vpop.f32.mrb[0].mxu0
  %v1226 = vadd.f32 %v197, %v1225
  %v1227 = vpop.f32.mrb[0].mxu0
  %v1228 = vpop.f32.mrb[0].mxu0
  %v1229 = vadd.f32 %v197, %v1228
  %v1230 = vpop.f32.mrb[0].mxu0
  %1231 = vmatprep.mubr.bf16.mxu0 %v656
  %1232 = vmatmul.mubr.bf16.gmra.mrb[0].mxu0 %v655
  %v1233 = vpop.f32.mrb[0].mxu0
  %v1234 = vadd.f32 %v197, %v1233
  %v1235 = vpop.f32.mrb[0].mxu0
  %v1236 = vpop.f32.mrb[0].mxu0
  %v1237 = vadd.f32 %v197, %v1236
  %v1238 = vpop.f32.mrb[0].mxu0
  %1239 = vmatprep.mubr.bf16.mxu0 %v660
  %1240 = vmatmul.mubr.bf16.gmra.mrb[0].mxu0 %v659
  %v1241 = vpop.f32.mrb[0].mxu0
  %v1242 = vadd.f32 %v197, %v1241
  %v1243 = vpop.f32.mrb[0].mxu0
  %v1244 = vpop.f32.mrb[0].mxu0
  %v1245 = vadd.f32 %v197, %v1244
  %v1246 = vpop.f32.mrb[0].mxu0
  %1247 = vmatprep.mubr.bf16.mxu0 %v664
  %1248 = vmatmul.mubr.bf16.gmra.mrb[0].mxu0 %v663
  %v1249 = vpop.f32.mrb[0].mxu0
  %v1250 = vadd.f32 %v197, %v1249
  %v1251 = vpop.f32.mrb[0].mxu0
  %v1252 = vpop.f32.mrb[0].mxu0
  %v1253 = vadd.f32 %v197, %v1252
  %v1254 = vpop.f32.mrb[0].mxu0
  %1255 = vmatprep.mubr.bf16.mxu0 %v668
  %1256 = vmatmul.mubr.bf16.gmra.mrb[0].mxu0 %v667
  %v1257 = vpop.f32.mrb[0].mxu0
  %v1258 = vadd.f32 %v197, %v1257
  %v1259 = vpop.f32.mrb[0].mxu0
  %v1260 = vpop.f32.mrb[0].mxu0
  %v1261 = vadd.f32 %v197, %v1260
  %v1262 = vpop.f32.mrb[0].mxu0
  %1263 = vmatprep.mubr.bf16.mxu0 %v672
  %1264 = vmatmul.mubr.bf16.gmra.mrb[0].mxu0 %v671
  %v1265 = vpop.f32.mrb[0].mxu0
  %v1266 = vadd.f32 %v197, %v1265
  %v1267 = vpop.f32.mrb[0].mxu0
  %v1268 = vpop.f32.mrb[0].mxu0
  %v1269 = vadd.f32 %v197, %v1268
  %v1270 = vpop.f32.mrb[0].mxu0
  %1271 = vmatprep.mubr.bf16.mxu0 %v676
  %1272 = vmatmul.mubr.bf16.gmra.mrb[0].mxu0 %v675
  %v1273 = vpop.f32.mrb[0].mxu0
  %v1274 = vadd.f32 %v197, %v1273
  %v1275 = vpop.f32.mrb[0].mxu0
  %v1276 = vpop.f32.mrb[0].mxu0
  %v1277 = vadd.f32 %v197, %v1276
  %v1278 = vpop.f32.mrb[0].mxu0
  %1279 = vmatprep.mubr.bf16.mxu0 %v680
  %1280 = vmatmul.mubr.bf16.gmra.mrb[0].mxu0 %v679
  %v1281 = vpop.f32.mrb[0].mxu0
  %v1282 = vadd.f32 %v197, %v1281
  %v1283 = vpop.f32.mrb[0].mxu0
  %v1284 = vpop.f32.mrb[0].mxu0
  %v1285 = vadd.f32 %v197, %v1284
  %v1286 = vpop.f32.mrb[0].mxu0
  %1287 = vmatprep.mubr.bf16.mxu0 %v684
  %1288 = vmatmul.mubr.bf16.gmra.mrb[0].mxu0 %v683
  %v1289 = vpop.f32.mrb[0].mxu0
  %v1290 = vadd.f32 %v197, %v1289
  %v1291 = vpop.f32.mrb[0].mxu0
  %v1292 = vpop.f32.mrb[0].mxu0
  %v1293 = vadd.f32 %v197, %v1292
  %v1294 = vpop.f32.mrb[0].mxu0
  %1295 = vmatprep.mubr.bf16.mxu0 %v688
  %1296 = vmatmul.mubr.bf16.gmra.mrb[0].mxu0 %v687
  %v1297 = vpop.f32.mrb[0].mxu0
  %v1298 = vadd.f32 %v197, %v1297
  %v1299 = vpop.f32.mrb[0].mxu0
  %v1300 = vpop.f32.mrb[0].mxu0
  %v1301 = vadd.f32 %v197, %v1300
  %v1302 = vpop.f32.mrb[0].mxu0
  %1303 = vmatprep.mubr.bf16.mxu0 %v692
  %1304 = vmatmul.mubr.bf16.gmra.mrb[0].mxu0 %v691
  %v1305 = vpop.f32.mrb[0].mxu0
  %v1306 = vadd.f32 %v197, %v1305
  %v1307 = vpop.f32.mrb[0].mxu0
  %v1308 = vpop.f32.mrb[0].mxu0
  %v1309 = vadd.f32 %v197, %v1308
  %v1310 = vpop.f32.mrb[0].mxu0
  %1311 = vmatprep.mubr.bf16.mxu0 %v696
  %1312 = vmatmul.mubr.bf16.gmra.mrb[0].mxu0 %v695
  %v1313 = vpop.f32.mrb[0].mxu0
  %v1314 = vadd.f32 %v197, %v1313
  %v1315 = vpop.f32.mrb[0].mxu0
  %v1316 = vpop.f32.mrb[0].mxu0
  %v1317 = vadd.f32 %v197, %v1316
  %v1318 = vpop.f32.mrb[0].mxu0
  %1319 = vmatprep.mubr.bf16.mxu0 %v700
  %1320 = vmatmul.mubr.bf16.gmra.mrb[0].mxu0 %v699
  %v1321 = vpop.f32.mrb[0].mxu0
  %v1322 = vadd.f32 %v197, %v1321
  %v1323 = vpop.f32.mrb[0].mxu0
  %v1324 = vpop.f32.mrb[0].mxu0
  %v1325 = vadd.f32 %v197, %v1324
  %v1326 = vpop.f32.mrb[0].mxu0
  %1327 = vmatprep.mubr.bf16.mxu0 %v704
  %1328 = vmatmul.mubr.bf16.gmra.mrb[0].mxu0 %v703
  %v1329 = vpop.f32.mrb[0].mxu0
  %v1330 = vadd.f32 %v197, %v1329
  %v1331 = vpop.f32.mrb[0].mxu0
  %v1332 = vpop.f32.mrb[0].mxu0
  %v1333 = vadd.f32 %v197, %v1332
  %v1334 = vpop.f32.mrb[0].mxu0
  %1335 = vmatprep.mubr.bf16.mxu0 %v708
  %1336 = vmatmul.mubr.bf16.gmra.mrb[0].mxu0 %v707
  %v1337 = vpop.f32.mrb[0].mxu0
  %v1338 = vadd.f32 %v197, %v1337
  %v1339 = vpop.f32.mrb[0].mxu0
  %v1340 = vpop.f32.mrb[0].mxu0
  %v1341 = vadd.f32 %v197, %v1340
  %v1342 = vpop.f32.mrb[0].mxu0
  %1343 = vdwg.mxu0
  %1344 = vmatprep.subr.bf16.mxu0 0
  %1345 = vmatpush1.bf16.msra.mxu0 %v921
  %1346 = vmatprep.subr.bf16.mxu0 0
  %1347 = vmatpush1.bf16.msra.mxu0 %v922
  %1348 = vmatprep.subr.bf16.mxu0 0
  %1349 = vmatpush1.bf16.msra.mxu0 %v923
  %1350 = vmatprep.subr.bf16.mxu0 0
  %1351 = vmatpush1.bf16.msra.mxu0 %v924
  %1352 = vmatprep.subr.bf16.mxu0 0
  %1353 = vmatpush1.bf16.msra.mxu0 %v925
  %1354 = vmatprep.subr.bf16.mxu0 0
  %1355 = vmatpush1.bf16.msra.mxu0 %v926
  %1356 = vmatprep.subr.bf16.mxu0 0
  %1357 = vmatpush1.bf16.msra.mxu0 %v927
  %1358 = vmatprep.subr.bf16.mxu0 0
  %1359 = vmatpush1.bf16.msra.mxu0 %v928
  %1360 = vmatprep.subr.bf16.mxu0 0
  %1361 = vmatpush1.bf16.msra.mxu0 %v1053
  %1362 = vmatprep.subr.bf16.mxu0 0
  %1363 = vmatpush1.bf16.msra.mxu0 0
  %1364 = vmatprep.subr.bf16.mxu0 0
  %1365 = vmatpush1.bf16.msra.mxu0 0
  %1366 = vmatprep.subr.bf16.mxu0 0
  %1367 = vmatpush1.bf16.msra.mxu0 0
  %1368 = vmatprep.subr.bf16.mxu0 0
  %1369 = vmatpush1.bf16.msra.mxu0 0
  %1370 = vmatprep.subr.bf16.mxu0 0
  %1371 = vmatpush1.bf16.msra.mxu0 0
  %1372 = vmatprep.subr.bf16.mxu0 0
  %1373 = vmatpush1.bf16.msra.mxu0 0
  %1374 = vmatprep.subr.bf16.mxu0 0
  %1375 = vmatpush1.bf16.msra.mxu0 0
  %1376 = vmatprep.mubr.bf16.mxu0 %v956
  %1377 = vmatmul.mubr.bf16.gmra.mrb[0].mxu0 %v585
  %v1378 = vpop.f32.mrb[0].mxu0
  %v1379 = vadd.f32 %v1090, %v1378
  %v1380 = vpop.f32.mrb[0].mxu0
  %v1381 = vpop.f32.mrb[0].mxu0
  %v1382 = vadd.f32 %v1093, %v1381
  %v1383 = vpop.f32.mrb[0].mxu0
  %1384 = vmatprep.mubr.bf16.mxu0 %v959
  %1385 = vmatmul.mubr.bf16.gmra.mrb[0].mxu0 %v589
  %v1386 = vpop.f32.mrb[0].mxu0
  %v1387 = vadd.f32 %v1098, %v1386
  %v1388 = vpop.f32.mrb[0].mxu0
  %v1389 = vpop.f32.mrb[0].mxu0
  %v1390 = vadd.f32 %v1101, %v1389
  %v1391 = vpop.f32.mrb[0].mxu0
  %1392 = vmatprep.mubr.bf16.mxu0 %v962
  %1393 = vmatmul.mubr.bf16.gmra.mrb[0].mxu0 %v593
  %v1394 = vpop.f32.mrb[0].mxu0
  %v1395 = vadd.f32 %v1106, %v1394
  %v1396 = vpop.f32.mrb[0].mxu0
  %v1397 = vpop.f32.mrb[0].mxu0
  %v1398 = vadd.f32 %v1109, %v1397
  %v1399 = vpop.f32.mrb[0].mxu0
  %1400 = vmatprep.mubr.bf16.mxu0 %v965
  %1401 = vmatmul.mubr.bf16.gmra.mrb[0].mxu0 %v597
  %v1402 = vpop.f32.mrb[0].mxu0
  %v1403 = vadd.f32 %v1114, %v1402
  %v1404 = vpop.f32.mrb[0].mxu0
  %v1405 = vpop.f32.mrb[0].mxu0
  %v1406 = vadd.f32 %v1117, %v1405
  %v1407 = vpop.f32.mrb[0].mxu0
  %1408 = vmatprep.mubr.bf16.mxu0 %v968
  %1409 = vmatmul.mubr.bf16.gmra.mrb[0].mxu0 %v601
  %v1410 = vpop.f32.mrb[0].mxu0
  %v1411 = vadd.f32 %v1122, %v1410
  %v1412 = vpop.f32.mrb[0].mxu0
  %v1413 = vpop.f32.mrb[0].mxu0
  %v1414 = vadd.f32 %v1125, %v1413
  %v1415 = vpop.f32.mrb[0].mxu0
  %1416 = vmatprep.mubr.bf16.mxu0 %v971
  %1417 = vmatmul.mubr.bf16.gmra.mrb[0].mxu0 %v605
  %v1418 = vpop.f32.mrb[0].mxu0
  %v1419 = vadd.f32 %v1130, %v1418
  %v1420 = vpop.f32.mrb[0].mxu0
  %v1421 = vpop.f32.mrb[0].mxu0
  %v1422 = vadd.f32 %v1133, %v1421
  %v1423 = vpop.f32.mrb[0].mxu0
  %1424 = vmatprep.mubr.bf16.mxu0 %v974
  %1425 = vmatmul.mubr.bf16.gmra.mrb[0].mxu0 %v609
  %v1426 = vpop.f32.mrb[0].mxu0
  %v1427 = vadd.f32 %v1138, %v1426
  %v1428 = vpop.f32.mrb[0].mxu0
  %v1429 = vpop.f32.mrb[0].mxu0
  %v1430 = vadd.f32 %v1141, %v1429
  %v1431 = vpop.f32.mrb[0].mxu0
  %1432 = vmatprep.mubr.bf16.mxu0 %v977
  %1433 = vmatmul.mubr.bf16.gmra.mrb[0].mxu0 %v613
  %v1434 = vpop.f32.mrb[0].mxu0
  %v1435 = vadd.f32 %v1146, %v1434
  %v1436 = vpop.f32.mrb[0].mxu0
  %v1437 = vpop.f32.mrb[0].mxu0
  %v1438 = vadd.f32 %v1149, %v1437
  %v1439 = vpop.f32.mrb[0].mxu0
  %1440 = vmatprep.mubr.bf16.mxu0 %v980
  %1441 = vmatmul.mubr.bf16.gmra.mrb[0].mxu0 %v617
  %v1442 = vpop.f32.mrb[0].mxu0
  %v1443 = vadd.f32 %v1154, %v1442
  %v1444 = vpop.f32.mrb[0].mxu0
  %v1445 = vpop.f32.mrb[0].mxu0
  %v1446 = vadd.f32 %v1157, %v1445
  %v1447 = vpop.f32.mrb[0].mxu0
  %1448 = vmatprep.mubr.bf16.mxu0 %v983
  %1449 = vmatmul.mubr.bf16.gmra.mrb[0].mxu0 %v621
  %v1450 = vpop.f32.mrb[0].mxu0
  %v1451 = vadd.f32 %v1162, %v1450
  %v1452 = vpop.f32.mrb[0].mxu0
  %v1453 = vpop.f32.mrb[0].mxu0
  %v1454 = vadd.f32 %v1165, %v1453
  %v1455 = vpop.f32.mrb[0].mxu0
  %1456 = vmatprep.mubr.bf16.mxu0 %v986
  %1457 = vmatmul.mubr.bf16.gmra.mrb[0].mxu0 %v625
  %v1458 = vpop.f32.mrb[0].mxu0
  %v1459 = vadd.f32 %v1170, %v1458
  %v1460 = vpop.f32.mrb[0].mxu0
  %v1461 = vpop.f32.mrb[0].mxu0
  %v1462 = vadd.f32 %v1173, %v1461
  %v1463 = vpop.f32.mrb[0].mxu0
  %1464 = vmatprep.mubr.bf16.mxu0 %v989
  %1465 = vmatmul.mubr.bf16.gmra.mrb[0].mxu0 %v629
  %v1466 = vpop.f32.mrb[0].mxu0
  %v1467 = vadd.f32 %v1178, %v1466
  %v1468 = vpop.f32.mrb[0].mxu0
  %v1469 = vpop.f32.mrb[0].mxu0
  %v1470 = vadd.f32 %v1181, %v1469
  %v1471 = vpop.f32.mrb[0].mxu0
  %1472 = vmatprep.mubr.bf16.mxu0 %v992
  %1473 = vmatmul.mubr.bf16.gmra.mrb[0].mxu0 %v633
  %v1474 = vpop.f32.mrb[0].mxu0
  %v1475 = vadd.f32 %v1186, %v1474
  %v1476 = vpop.f32.mrb[0].mxu0
  %v1477 = vpop.f32.mrb[0].mxu0
  %v1478 = vadd.f32 %v1189, %v1477
  %v1479 = vpop.f32.mrb[0].mxu0
  %1480 = vmatprep.mubr.bf16.mxu0 %v995
  %1481 = vmatmul.mubr.bf16.gmra.mrb[0].mxu0 %v637
  %v1482 = vpop.f32.mrb[0].mxu0
  %v1483 = vadd.f32 %v1194, %v1482
  %v1484 = vpop.f32.mrb[0].mxu0
  %v1485 = vpop.f32.mrb[0].mxu0
  %v1486 = vadd.f32 %v1197, %v1485
  %v1487 = vpop.f32.mrb[0].mxu0
  %1488 = vmatprep.mubr.bf16.mxu0 %v998
  %1489 = vmatmul.mubr.bf16.gmra.mrb[0].mxu0 %v641
  %v1490 = vpop.f32.mrb[0].mxu0
  %v1491 = vadd.f32 %v1202, %v1490
  %v1492 = vpop.f32.mrb[0].mxu0
  %v1493 = vpop.f32.mrb[0].mxu0
  %v1494 = vadd.f32 %v1205, %v1493
  %v1495 = vpop.f32.mrb[0].mxu0
  %1496 = vmatprep.mubr.bf16.mxu0 %v1001
  %1497 = vmatmul.mubr.bf16.gmra.mrb[0].mxu0 %v645
  %v1498 = vpop.f32.mrb[0].mxu0
  %v1499 = vadd.f32 %v1210, %v1498
  %v1500 = vpop.f32.mrb[0].mxu0
  %v1501 = vpop.f32.mrb[0].mxu0
  %v1502 = vadd.f32 %v1213, %v1501
  %v1503 = vpop.f32.mrb[0].mxu0
  %1504 = vmatprep.mubr.bf16.mxu0 %v1004
  %1505 = vmatmul.mubr.bf16.gmra.mrb[0].mxu0 %v649
  %v1506 = vpop.f32.mrb[0].mxu0
  %v1507 = vadd.f32 %v1218, %v1506
  %v1508 = vpop.f32.mrb[0].mxu0
  %v1509 = vpop.f32.mrb[0].mxu0
  %v1510 = vadd.f32 %v1221, %v1509
  %v1511 = vpop.f32.mrb[0].mxu0
  %1512 = vmatprep.mubr.bf16.mxu0 %v1007
  %1513 = vmatmul.mubr.bf16.gmra.mrb[0].mxu0 %v653
  %v1514 = vpop.f32.mrb[0].mxu0
  %v1515 = vadd.f32 %v1226, %v1514
  %v1516 = vpop.f32.mrb[0].mxu0
  %v1517 = vpop.f32.mrb[0].mxu0
  %v1518 = vadd.f32 %v1229, %v1517
  %v1519 = vpop.f32.mrb[0].mxu0
  %1520 = vmatprep.mubr.bf16.mxu0 %v1010
  %1521 = vmatmul.mubr.bf16.gmra.mrb[0].mxu0 %v657
  %v1522 = vpop.f32.mrb[0].mxu0
  %v1523 = vadd.f32 %v1234, %v1522
  %v1524 = vpop.f32.mrb[0].mxu0
  %v1525 = vpop.f32.mrb[0].mxu0
  %v1526 = vadd.f32 %v1237, %v1525
  %v1527 = vpop.f32.mrb[0].mxu0
  %1528 = vmatprep.mubr.bf16.mxu0 %v1013
  %1529 = vmatmul.mubr.bf16.gmra.mrb[0].mxu0 %v661
  %v1530 = vpop.f32.mrb[0].mxu0
  %v1531 = vadd.f32 %v1242, %v1530
  %v1532 = vpop.f32.mrb[0].mxu0
  %v1533 = vpop.f32.mrb[0].mxu0
  %v1534 = vadd.f32 %v1245, %v1533
  %v1535 = vpop.f32.mrb[0].mxu0
  %1536 = vmatprep.mubr.bf16.mxu0 %v1016
  %1537 = vmatmul.mubr.bf16.gmra.mrb[0].mxu0 %v665
  %v1538 = vpop.f32.mrb[0].mxu0
  %v1539 = vadd.f32 %v1250, %v1538
  %v1540 = vpop.f32.mrb[0].mxu0
  %v1541 = vpop.f32.mrb[0].mxu0
  %v1542 = vadd.f32 %v1253, %v1541
  %v1543 = vpop.f32.mrb[0].mxu0
  %1544 = vmatprep.mubr.bf16.mxu0 %v1019
  %1545 = vmatmul.mubr.bf16.gmra.mrb[0].mxu0 %v669
  %v1546 = vpop.f32.mrb[0].mxu0
  %v1547 = vadd.f32 %v1258, %v1546
  %v1548 = vpop.f32.mrb[0].mxu0
  %v1549 = vpop.f32.mrb[0].mxu0
  %v1550 = vadd.f32 %v1261, %v1549
  %v1551 = vpop.f32.mrb[0].mxu0
  %1552 = vmatprep.mubr.bf16.mxu0 %v1022
  %1553 = vmatmul.mubr.bf16.gmra.mrb[0].mxu0 %v673
  %v1554 = vpop.f32.mrb[0].mxu0
  %v1555 = vadd.f32 %v1266, %v1554
  %v1556 = vpop.f32.mrb[0].mxu0
  %v1557 = vpop.f32.mrb[0].mxu0
  %v1558 = vadd.f32 %v1269, %v1557
  %v1559 = vpop.f32.mrb[0].mxu0
  %1560 = vmatprep.mubr.bf16.mxu0 %v1025
  %1561 = vmatmul.mubr.bf16.gmra.mrb[0].mxu0 %v677
  %v1562 = vpop.f32.mrb[0].mxu0
  %v1563 = vadd.f32 %v1274, %v1562
  %v1564 = vpop.f32.mrb[0].mxu0
  %v1565 = vpop.f32.mrb[0].mxu0
  %v1566 = vadd.f32 %v1277, %v1565
  %v1567 = vpop.f32.mrb[0].mxu0
  %1568 = vmatprep.mubr.bf16.mxu0 %v1028
  %1569 = vmatmul.mubr.bf16.gmra.mrb[0].mxu0 %v681
  %v1570 = vpop.f32.mrb[0].mxu0
  %v1571 = vadd.f32 %v1282, %v1570
  %v1572 = vpop.f32.mrb[0].mxu0
  %v1573 = vpop.f32.mrb[0].mxu0
  %v1574 = vadd.f32 %v1285, %v1573
  %v1575 = vpop.f32.mrb[0].mxu0
  %1576 = vmatprep.mubr.bf16.mxu0 %v1031
  %1577 = vmatmul.mubr.bf16.gmra.mrb[0].mxu0 %v685
  %v1578 = vpop.f32.mrb[0].mxu0
  %v1579 = vadd.f32 %v1290, %v1578
  %v1580 = vpop.f32.mrb[0].mxu0
  %v1581 = vpop.f32.mrb[0].mxu0
  %v1582 = vadd.f32 %v1293, %v1581
  %v1583 = vpop.f32.mrb[0].mxu0
  %1584 = vmatprep.mubr.bf16.mxu0 %v1034
  %1585 = vmatmul.mubr.bf16.gmra.mrb[0].mxu0 %v689
  %v1586 = vpop.f32.mrb[0].mxu0
  %v1587 = vadd.f32 %v1298, %v1586
  %v1588 = vpop.f32.mrb[0].mxu0
  %v1589 = vpop.f32.mrb[0].mxu0
  %v1590 = vadd.f32 %v1301, %v1589
  %v1591 = vpop.f32.mrb[0].mxu0
  %1592 = vmatprep.mubr.bf16.mxu0 %v1037
  %1593 = vmatmul.mubr.bf16.gmra.mrb[0].mxu0 %v693
  %v1594 = vpop.f32.mrb[0].mxu0
  %v1595 = vadd.f32 %v1306, %v1594
  %v1596 = vpop.f32.mrb[0].mxu0
  %v1597 = vpop.f32.mrb[0].mxu0
  %v1598 = vadd.f32 %v1309, %v1597
  %v1599 = vpop.f32.mrb[0].mxu0
  %1600 = vmatprep.mubr.bf16.mxu0 %v1040
  %1601 = vmatmul.mubr.bf16.gmra.mrb[0].mxu0 %v697
  %v1602 = vpop.f32.mrb[0].mxu0
  %v1603 = vadd.f32 %v1314, %v1602
  %v1604 = vpop.f32.mrb[0].mxu0
  %v1605 = vpop.f32.mrb[0].mxu0
  %v1606 = vadd.f32 %v1317, %v1605
  %v1607 = vpop.f32.mrb[0].mxu0
  %1608 = vmatprep.mubr.bf16.mxu0 %v1043
  %1609 = vmatmul.mubr.bf16.gmra.mrb[0].mxu0 %v701
  %v1610 = vpop.f32.mrb[0].mxu0
  %v1611 = vadd.f32 %v1322, %v1610
  %v1612 = vpop.f32.mrb[0].mxu0
  %v1613 = vpop.f32.mrb[0].mxu0
  %v1614 = vadd.f32 %v1325, %v1613
  %v1615 = vpop.f32.mrb[0].mxu0
  %1616 = vmatprep.mubr.bf16.mxu0 %v1046
  %1617 = vmatmul.mubr.bf16.gmra.mrb[0].mxu0 %v705
  %v1618 = vpop.f32.mrb[0].mxu0
  %v1619 = vadd.f32 %v1330, %v1618
  %v1620 = vpop.f32.mrb[0].mxu0
  %v1621 = vpop.f32.mrb[0].mxu0
  %v1622 = vadd.f32 %v1333, %v1621
  %v1623 = vpop.f32.mrb[0].mxu0
  %1624 = vmatprep.mubr.bf16.mxu0 %v1049
  %1625 = vmatmul.mubr.bf16.gmra.mrb[0].mxu0 %v709
  %v1626 = vpop.f32.mrb[0].mxu0
  %v1627 = vadd.f32 %v1338, %v1626
  %v1628 = vpop.f32.mrb[0].mxu0
  %v1629 = vpop.f32.mrb[0].mxu0
  %v1630 = vadd.f32 %v1341, %v1629
  %v1631 = vpop.f32.mrb[0].mxu0
  %1632 = vdwg.mxu0
  %v1633 = vtanh.pop %v1379
  %v1634 = vtanh.pop %v1382
  %v1635 = vtanh.pop %v1387
  %v1636 = vtanh.pop %v1390
  %v1637 = vtanh.pop %v1395
  %v1638 = vtanh.pop %v1398
  %v1639 = vtanh.pop %v1403
  %v1640 = vtanh.pop %v1406
  %v1641 = vtanh.pop %v1411
  %v1642 = vtanh.pop %v1414
  %v1643 = vtanh.pop %v1419
  %v1644 = vtanh.pop %v1422
  %v1645 = vtanh.pop %v1427
  %v1646 = vtanh.pop %v1430
  %v1647 = vtanh.pop %v1435
  %v1648 = vtanh.pop %v1438
  %v1649 = vtanh.pop %v1443
  %v1650 = vtanh.pop %v1446
  %v1651 = vtanh.pop %v1451
  %v1652 = vtanh.pop %v1454
  %v1653 = vtanh.pop %v1459
  %v1654 = vtanh.pop %v1462
  %v1655 = vtanh.pop %v1467
  %v1656 = vtanh.pop %v1470
  %v1657 = vtanh.pop %v1475
  %v1658 = vtanh.pop %v1478
  %v1659 = vtanh.pop %v1483
  %v1660 = vtanh.pop %v1486
  %v1661 = vtanh.pop %v1491
  %v1662 = vtanh.pop %v1494
  %v1663 = vtanh.pop %v1499
  %v1664 = vtanh.pop %v1502
  %v1665 = vtanh.pop %v1507
  %v1666 = vtanh.pop %v1510
  %v1667 = vtanh.pop %v1515
  %v1668 = vtanh.pop %v1518
  %v1669 = vtanh.pop %v1523
  %v1670 = vtanh.pop %v1526
  %v1671 = vtanh.pop %v1531
  %v1672 = vtanh.pop %v1534
  %v1673 = vtanh.pop %v1539
  %v1674 = vtanh.pop %v1542
  %v1675 = vtanh.pop %v1547
  %v1676 = vtanh.pop %v1550
  %v1677 = vtanh.pop %v1555
  %v1678 = vtanh.pop %v1558
  %v1679 = vtanh.pop %v1563
  %v1680 = vtanh.pop %v1566
  %v1681 = vtanh.pop %v1571
  %v1682 = vtanh.pop %v1574
  %v1683 = vtanh.pop %v1579
  %v1684 = vtanh.pop %v1582
  %v1685 = vtanh.pop %v1587
  %v1686 = vtanh.pop %v1590
  %v1687 = vtanh.pop %v1595
  %v1688 = vtanh.pop %v1598
  %v1689 = vtanh.pop %v1603
  %v1690 = vtanh.pop %v1606
  %v1691 = vtanh.pop %v1611
  %v1692 = vtanh.pop %v1614
  %v1693 = vtanh.pop %v1619
  %v1694 = vtanh.pop %v1622
  %v1695 = vtanh.pop %v1627
  %v1696 = vtanh.pop %v1630
  %1697 = vst [vmem:[%s3] sm:$0xff] %v1633
  %1698 = vst [vmem:[%s3 + $0x8] sm:$0xff] %v1634
  %1699 = vst [vmem:[%s3 + $0x10] sm:$0xff] %v1635
  %1700 = vst [vmem:[%s3 + $0x18] sm:$0xff] %v1636
  %1701 = vst [vmem:[%s3 + $0x20] sm:$0xff] %v1637
  %1702 = vst [vmem:[%s3 + $0x28] sm:$0xff] %v1638
  %1703 = vst [vmem:[%s3 + $0x30] sm:$0xff] %v1639
  %1704 = vst [vmem:[%s3 + $0x38] sm:$0xff] %v1640
  %1705 = vst [vmem:[%s3 + $0x40] sm:$0xff] %v1641
  %1706 = vst [vmem:[%s3 + $0x48] sm:$0xff] %v1642
  %1707 = vst [vmem:[%s3 + $0x50] sm:$0xff] %v1643
  %1708 = vst [vmem:[%s3 + $0x58] sm:$0xff] %v1644
  %1709 = vst [vmem:[%s3 + $0x60] sm:$0xff] %v1645
  %1710 = vst [vmem:[%s3 + $0x68] sm:$0xff] %v1646
  %1711 = vst [vmem:[%s3 + $0x70] sm:$0xff] %v1647
  %1712 = vst [vmem:[%s3 + $0x78] sm:$0xff] %v1648
  %1713 = vst [vmem:[%s3 + $0x80] sm:$0xff] %v1649
  %1714 = vst [vmem:[%s3 + $0x88] sm:$0xff] %v1650
  %1715 = vst [vmem:[%s3 + $0x90] sm:$0xff] %v1651
  %1716 = vst [vmem:[%s3 + $0x98] sm:$0xff] %v1652
  %1717 = vst [vmem:[%s3 + $0xa0] sm:$0xff] %v1653
  %1718 = vst [vmem:[%s3 + $0xa8] sm:$0xff] %v1654
  %1719 = vst [vmem:[%s3 + $0xb0] sm:$0xff] %v1655
  %1720 = vst [vmem:[%s3 + $0xb8] sm:$0xff] %v1656
  %1721 = vst [vmem:[%s3 + $0xc0] sm:$0xff] %v1657
  %1722 = vst [vmem:[%s3 + $0xc8] sm:$0xff] %v1658
  %1723 = vst [vmem:[%s3 + $0xd0] sm:$0xff] %v1659
  %1724 = vst [vmem:[%s3 + $0xd8] sm:$0xff] %v1660
  %1725 = vst [vmem:[%s3 + $0xe0] sm:$0xff] %v1661
  %1726 = vst [vmem:[%s3 + $0xe8] sm:$0xff] %v1662
  %1727 = vst [vmem:[%s3 + $0xf0] sm:$0xff] %v1663
  %1728 = vst [vmem:[%s3 + $0xf8] sm:$0xff] %v1664
  %1729 = vst [vmem:[%s3 + $0x100] sm:$0xff] %v1665
  %1730 = vst [vmem:[%s3 + $0x108] sm:$0xff] %v1666
  %1731 = vst [vmem:[%s3 + $0x110] sm:$0xff] %v1667
  %1732 = vst [vmem:[%s3 + $0x118] sm:$0xff] %v1668
  %1733 = vst [vmem:[%s3 + $0x120] sm:$0xff] %v1669
  %1734 = vst [vmem:[%s3 + $0x128] sm:$0xff] %v1670
  %1735 = vst [vmem:[%s3 + $0x130] sm:$0xff] %v1671
  %1736 = vst [vmem:[%s3 + $0x138] sm:$0xff] %v1672
  %1737 = vst [vmem:[%s3 + $0x140] sm:$0xff] %v1673
  %1738 = vst [vmem:[%s3 + $0x148] sm:$0xff] %v1674
  %1739 = vst [vmem:[%s3 + $0x150] sm:$0xff] %v1675
  %1740 = vst [vmem:[%s3 + $0x158] sm:$0xff] %v1676
  %1741 = vst [vmem:[%s3 + $0x160] sm:$0xff] %v1677
  %1742 = vst [vmem:[%s3 + $0x168] sm:$0xff] %v1678
  %1743 = vst [vmem:[%s3 + $0x170] sm:$0xff] %v1679
  %1744 = vst [vmem:[%s3 + $0x178] sm:$0xff] %v1680
  %1745 = vst [vmem:[%s3 + $0x180] sm:$0xff] %v1681
  %1746 = vst [vmem:[%s3 + $0x188] sm:$0xff] %v1682
  %1747 = vst [vmem:[%s3 + $0x190] sm:$0xff] %v1683
  %1748 = vst [vmem:[%s3 + $0x198] sm:$0xff] %v1684
  %1749 = vst [vmem:[%s3 + $0x1a0] sm:$0xff] %v1685
  %1750 = vst [vmem:[%s3 + $0x1a8] sm:$0xff] %v1686
  %1751 = vst [vmem:[%s3 + $0x1b0] sm:$0xff] %v1687
  %1752 = vst [vmem:[%s3 + $0x1b8] sm:$0xff] %v1688
  %1753 = vst [vmem:[%s3 + $0x1c0] sm:$0xff] %v1689
  %1754 = vst [vmem:[%s3 + $0x1c8] sm:$0xff] %v1690
  %1755 = vst [vmem:[%s3 + $0x1d0] sm:$0xff] %v1691
  %1756 = vst [vmem:[%s3 + $0x1d8] sm:$0xff] %v1692
  %1757 = vst [vmem:[%s3 + $0x1e0] sm:$0xff] %v1693
  %1758 = vst [vmem:[%s3 + $0x1e8] sm:$0xff] %v1694
  %1759 = vst [vmem:[%s3 + $0x1f0] sm:$0xff] %v1695
  %1760 = vst [vmem:[%s3 + $0x1f8] sm:$0xff] %v1696
  // Predicated region
  $region14: #{resnet_generator_forward.37} parent=0 // pred_check
    _
  $region15: #{resnet_generator_forward.37} parent=0 // pred_check_branch
    %1762 = sbr.rel (0) target = $region17
  $region16: #{resnet_generator_forward.37} parent=0 // pred_region
    _
  $region17: #{resnet_generator_forward.37} parent=0 // pred_fallthru
    _
  // Predicated region
  $region18: #{resnet_generator_forward.37} parent=0 // pred_check
    _
  $region19: #{resnet_generator_forward.37} parent=0 // pred_check_branch
    %1764 = sbr.rel (0) target = $region21
  $region20: #{resnet_generator_forward.37} parent=0 // pred_region
    _
  $region21: #{resnet_generator_forward.37} parent=0 // pred_fallthru
    _

</llo_original>
